<compile_context>
chip_gen: v5e
topology: v5e:2x2
jax: 0.10.0
libtpu: 0.0.40
codegen_flags: <defaults>
</compile_context>

<pallas_src>
import jax
import jax.numpy as jnp
from jax import lax
from jax.experimental import pallas as pl
from jax.experimental.pallas import tpu as pltpu


# ---------------------------------------------------------------------------
# Fused ResBlockC kernel (one grid step = Nb samples)
# ---------------------------------------------------------------------------
def resblock_kernel(z_ref,     # (Nb, Ho+1, Wo+1, 4*Cin) f32: space-to-depth x, top/left pad
                    w2_ref,    # (4, 4*Cin, 2*Cout) bf16: fused stride-2 weights [c1a | c2]
                    ws1_ref,   # (3, 9, Cout, Cout) bf16: stride-1 weights [c1b, c3a, c3b]
                    b_ref,     # (5, 1, Cout) f32 biases [c1a, c2, c1b, c3a, c3b]
                    o_ref,     # (1, Cout, Nb*Ho*Wo) f32 output (lane-dense)
                    pad_ref):  # (Nb, Ho+2, Wo+2, Cout) f32 scratch for stride-1 convs
    f32, bf16 = jnp.float32, jnp.bfloat16

    Nb, Hp1, Wp1, Cin4 = z_ref.shape
    Ho, Wo = Hp1 - 1, Wp1 - 1
    Cout = pad_ref.shape[-1]
    MT = Nb * Ho * Wo

    bias = b_ref[...]       # (5, 1, Cout) f32, hoisted once per step
    w2 = w2_ref[...]        # (4, 4*Cin, 2*Cout) bf16
    ws1 = ws1_ref[...]      # (3, 9, Cout, Cout) bf16

    # Re-zero only the 1-pixel border of the pad scratch (interior is fully
    # rewritten by each stride-1 conv below).
    zero_row = jnp.zeros((Nb, 1, Wo + 2, Cout), f32)
    zero_col = jnp.zeros((Nb, Ho + 2, 1, Cout), f32)
    pad_ref[:, 0:1, :, :] = zero_row
    pad_ref[:, Ho + 1:Ho + 2, :, :] = zero_row
    pad_ref[:, :, 0:1, :] = zero_col
    pad_ref[:, :, Wo + 1:Wo + 2, :] = zero_col

    # --------------------------------------------------------------------
    # Stage 1: both stride-2 convs fused (weights concatenated along Cout),
    # expressed as a 2x2 conv over the space-to-depth input: 4 taps, one dot
    # per tap producing (MT, 2*Cout).
    # --------------------------------------------------------------------
    acc12 = jnp.zeros((MT, 2 * Cout), f32)
    for dy in range(2):
        for dx in range(2):
            tap = z_ref[:, dy:dy + Ho, dx:dx + Wo, :].reshape(MT, Cin4)
            acc12 = acc12 + jnp.dot(tap.astype(bf16), w2[dy * 2 + dx],
                                    preferred_element_type=f32)
    a = jnp.maximum(acc12[:, :Cout] + bias[0], 0.0)    # conv1[0]: conv+bn+relu
    t2 = acc12[:, Cout:] + bias[1]                     # conv2:    conv+bn

    # --------------------------------------------------------------------
    # Stride-1 conv: rewrite the interior of the zero-bordered scratch, then
    # accumulate 9 shifted-slice dots in f32.
    # --------------------------------------------------------------------
    def conv_s1(v, w_taps):                            # v: (MT, Cout) f32
        pad_ref[:, 1:Ho + 1, 1:Wo + 1, :] = v.reshape(Nb, Ho, Wo, Cout)
        acc = jnp.zeros((MT, Cout), f32)
        for ky in range(3):
            for kx in range(3):
                tap = pad_ref[:, ky:ky + Ho, kx:kx + Wo, :].reshape(MT, Cout)
                acc = acc + jnp.dot(tap.astype(bf16), w_taps[ky * 3 + kx],
                                    preferred_element_type=f32)
        return acc

    # y = relu(conv1(x) + conv2(x))
    y = jnp.maximum(conv_s1(a, ws1[0]) + bias[2] + t2, 0.0)
    # conv3 branch + residual: out = relu(y + conv3(y))
    b3 = jnp.maximum(conv_s1(y, ws1[1]) + bias[3], 0.0)
    out = jnp.maximum(conv_s1(b3, ws1[2]) + bias[4] + y, 0.0)

    # Lane-dense, NCHW-ordered store: (MT, Cout) -> (Cout, MT) via an XLU
    # transpose (no MXU eye-matmul, no per-step iota rebuild).
    o_ref[0] = jnp.transpose(out, (1, 0))


# ---------------------------------------------------------------------------
# Wrapper: space-to-depth x once, launch the fused kernel, reshape to NCHW
# ---------------------------------------------------------------------------
def _pick_group(n):
    """Largest divisor of n that is <= 8 (samples per grid step)."""
    for nb in (8, 4, 2, 1):
        if n % nb == 0:
            return nb
    return 1


def resblock_c(x_nchw, params):
    N, Cin, H, W = x_nchw.shape
    assert H % 2 == 0 and W % 2 == 0, "stride-2 space-to-depth needs even H, W"
    Ho, Wo = H // 2, W // 2
    Cout = params["b"].shape[-1]

    Nb = _pick_group(N)          # samples per grid step (keeps Nb*Ho*Wo >= 128 here)
    G = N // Nb
    MT = Nb * Ho * Wo

    x = x_nchw.astype(jnp.float32)
    # NCHW -> space-to-depth NHWC': (N, Ho, Wo, 4*Cin), channel order (p, q, cin)
    z = x.reshape(N, Cin, Ho, 2, Wo, 2)
    z = jnp.transpose(z, (0, 2, 4, 3, 5, 1)).reshape(N, Ho, Wo, 4 * Cin)
    # 1-pixel zero pad on top/left so every 2x2 tap is a unit-stride slice.
    z_pad = jnp.pad(z, ((0, 0), (1, 0), (1, 0), (0, 0)))      # (N, Ho+1, Wo+1, 4Cin)

    out = pl.pallas_call(
        resblock_kernel,
        out_shape=jax.ShapeDtypeStruct((G, Cout, MT), jnp.float32),
        grid=(G,),
        in_specs=[
            pl.BlockSpec((Nb, Ho + 1, Wo + 1, 4 * Cin), lambda g: (g, 0, 0, 0)),
            pl.BlockSpec((4, 4 * Cin, 2 * Cout), lambda g: (0, 0, 0)),
            pl.BlockSpec((3, 9, Cout, Cout), lambda g: (0, 0, 0, 0)),
            pl.BlockSpec((5, 1, Cout), lambda g: (0, 0, 0)),
        ],
        out_specs=pl.BlockSpec((1, Cout, MT), lambda g: (g, 0, 0)),
        scratch_shapes=[pltpu.VMEM((Nb, Ho + 2, Wo + 2, Cout), jnp.float32)],
        compiler_params=pltpu.CompilerParams(
            dimension_semantics=("parallel",),
            vmem_limit_bytes=32 * 1024 * 1024),   # fits v5e/v6e/v7x budgets at these tiles
    )(z_pad, params["w_s2"], params["w_s1"], params["b"])

    # Tiny output permute: (G, Cout, Nb, Ho, Wo) -> (N, Cout, Ho, Wo)
    out = out.reshape(G, Cout, Nb, Ho, Wo)
    out = jnp.transpose(out, (0, 2, 1, 3, 4)).reshape(N, Cout, Ho, Wo)
    return out


# ---------------------------------------------------------------------------
# Deterministic parameter init (Conv2d + BatchNorm2d folded to scale/bias)
# ---------------------------------------------------------------------------
def init_conv_bn(key, cin, cout):
    k1, k2, k3, k4, k5, k6 = jax.random.split(key, 6)
    w = jax.random.normal(k1, (3, 3, cin, cout), jnp.float32) * 0.1
    conv_b = jax.random.normal(k2, (cout,), jnp.float32) * 0.1
    gamma = jax.random.uniform(k3, (cout,), jnp.float32, 0.5, 1.5)
    beta = jax.random.normal(k4, (cout,), jnp.float32) * 0.1
    mean = jax.random.normal(k5, (cout,), jnp.float32) * 0.1
    var = jax.random.uniform(k6, (cout,), jnp.float32, 0.5, 1.5)
    eps = 1e-5
    scale = gamma / jnp.sqrt(var + eps)
    bias = beta + (conv_b - mean) * scale
    return (w, scale, bias)            # raw (unfolded) per-stage parameters


def init_resblock_c(key, channels_in, channels_out):
    ks = jax.random.split(key, 5)
    return {
        "c1a": init_conv_bn(ks[0], channels_in, channels_out),
        "c1b": init_conv_bn(ks[1], channels_out, channels_out),
        "c2":  init_conv_bn(ks[2], channels_in, channels_out),
        "c3a": init_conv_bn(ks[3], channels_out, channels_out),
        "c3b": init_conv_bn(ks[4], channels_out, channels_out),
    }


def _space_to_depth_weights(w):
    """(3,3,Cin,Cout) stride-2/pad-1 weights -> (4, 4*Cin, Cout) 2x2 weights
    acting on the space-to-depth input (channel order p, q, cin)."""
    cin, cout = w.shape[2], w.shape[3]
    w2 = jnp.zeros((2, 2, 2, 2, cin, cout), w.dtype)
    # ((dy, dx), (p, q)) <- (ky, kx)
    mapping = [((0, 0), (1, 1), (0, 0)),
               ((0, 1), (1, 0), (0, 1)),
               ((0, 1), (1, 1), (0, 2)),
               ((1, 0), (0, 1), (1, 0)),
               ((1, 0), (1, 1), (2, 0)),
               ((1, 1), (0, 0), (1, 1)),
               ((1, 1), (0, 1), (1, 2)),
               ((1, 1), (1, 0), (2, 1)),
               ((1, 1), (1, 1), (2, 2))]
    for (dy, dx), (p, q), (ky, kx) in mapping:
        w2 = w2.at[dy, dx, p, q].set(w[ky, kx])
    return w2.reshape(4, 4 * cin, cout)


def pack_params(raw):
    """Fold BN scale into the weights, fuse/stack per-stage tensors, cast to bf16."""
    def fold(stage):
        w, scale, bias = raw[stage]
        return w * scale, bias

    w1a, b1a = fold("c1a")
    w2_, b2 = fold("c2")
    w1b, b1b = fold("c1b")
    w3a, b3a = fold("c3a")
    w3b, b3b = fold("c3b")
    cout = w1a.shape[-1]

    # Fused stride-2 weights: [conv1[0] | conv2] along Cout.
    w_s2 = jnp.concatenate(
        [_space_to_depth_weights(w1a), _space_to_depth_weights(w2_)],
        axis=-1).astype(jnp.bfloat16)                            # (4, 4Cin, 2Cout)

    def taps9(w):
        return w.reshape(9, w.shape[2], w.shape[3])              # k = ky*3 + kx

    w_s1 = jnp.stack([taps9(w1b), taps9(w3a), taps9(w3b)]).astype(jnp.bfloat16)
    b = jnp.stack([b1a, b2, b1b, b3a, b3b]).reshape(5, 1, cout).astype(jnp.float32)
    return {"w_s2": w_s2, "w_s1": w_s1, "b": b}


# ---------------------------------------------------------------------------
# Pure-JAX reference (same folded inference-mode BN) for correctness check
# ---------------------------------------------------------------------------
def _conv_bn_ref(x, w, scale, bias, stride):
    y = lax.conv_general_dilated(
        x, w, window_strides=(stride, stride), padding=((1, 1), (1, 1)),
        dimension_numbers=("NHWC", "HWIO", "NHWC"))
    return y * scale + bias


def resblock_c_ref(x_nchw, raw):
    x = jnp.transpose(x_nchw, (0, 2, 3, 1)).astype(jnp.float32)
    a = jax.nn.relu(_conv_bn_ref(x, *raw["c1a"], 2))
    c1 = _conv_bn_ref(a, *raw["c1b"], 1)
    c2 = _conv_bn_ref(x, *raw["c2"], 2)
    y = jax.nn.relu(c1 + c2)
    b = jax.nn.relu(_conv_bn_ref(y, *raw["c3a"], 1))
    out = jax.nn.relu(y + _conv_bn_ref(b, *raw["c3b"], 1))
    return jnp.transpose(out, (0, 3, 1, 2))


if __name__ == "__main__":
    key = jax.random.PRNGKey(0)
    k_x, k_p = jax.random.split(key)

    channels_in, channels_out = 4, 8
    N, H, W = 2, 16, 16
    x = jax.random.normal(k_x, (N, channels_in, H, W), jnp.float32)   # NCHW

    raw = init_resblock_c(k_p, channels_in, channels_out)
    packed = pack_params(raw)

    out = jax.jit(resblock_c)(x, packed)
    out = jax.block_until_ready(out)

    assert out.shape == (N, channels_out, H // 2, W // 2), out.shape
    assert bool(jnp.all(jnp.isfinite(out)))
    assert bool(jnp.all(out >= 0.0))       # final ReLU

    ref = resblock_c_ref(x, raw)
    ref_max = float(jnp.max(jnp.abs(ref)))
    max_err = float(jnp.max(jnp.abs(out - ref)))
    # bf16 matmul operands / f32 accumulation through 4 chained convs.
    assert max_err <= 3e-2 * max(1.0, ref_max), (max_err, ref_max)

    print("KERNEL_OK")
</pallas_src>

<mosaic_0001>
module attributes {stable_mosaic.version = 11 : i64} {
  func.func @resblock_kernel(%arg0: i32, %arg1: memref<2x9x9x16xf32, #tpu.memory_space<vmem>>, %arg2: memref<4x16x16xbf16, #tpu.memory_space<vmem>>, %arg3: memref<3x9x8x8xbf16, #tpu.memory_space<vmem>>, %arg4: memref<5x1x8xf32, #tpu.memory_space<vmem>>, %arg5: memref<1x8x128xf32, #tpu.memory_space<vmem>>, %arg6: memref<2x10x10x8xf32, #tpu.memory_space<vmem>>) attributes {dimension_semantics = [#tpu.dimension_semantics<parallel>], iteration_bounds = array<i64: 1>, scalar_prefetch = 0 : i64, scratch_operands = 1 : i64, tpu.core_type = #tpu.core_type<tc>, window_params = [{transform_indices = @transform_0, window_bounds = array<i64: 2, 9, 9, 16>}, {pipeline_mode = #tpu.pipeline_mode<synchronous>, transform_indices = @transform_1, window_bounds = array<i64: 4, 16, 16>}, {pipeline_mode = #tpu.pipeline_mode<synchronous>, transform_indices = @transform_2, window_bounds = array<i64: 3, 9, 8, 8>}, {pipeline_mode = #tpu.pipeline_mode<synchronous>, transform_indices = @transform_3, window_bounds = array<i64: 5, 1, 8>}, {transform_indices = @transform_4, window_bounds = array<i64: 1, 8, 128>}]} {
    %c0 = arith.constant 0 : index
    %c0_0 = arith.constant 0 : index
    %c0_1 = arith.constant 0 : index
    %0 = vector.load %arg4[%c0, %c0_0, %c0_1] : memref<5x1x8xf32, #tpu.memory_space<vmem>>, vector<5x1x8xf32>
    %c0_2 = arith.constant 0 : index
    %c0_3 = arith.constant 0 : index
    %c0_4 = arith.constant 0 : index
    %1 = vector.load %arg2[%c0_2, %c0_3, %c0_4] : memref<4x16x16xbf16, #tpu.memory_space<vmem>>, vector<4x16x16xbf16>
    %c0_5 = arith.constant 0 : index
    %c0_6 = arith.constant 0 : index
    %c0_7 = arith.constant 0 : index
    %c0_8 = arith.constant 0 : index
    %2 = vector.load %arg3[%c0_5, %c0_6, %c0_7, %c0_8] : memref<3x9x8x8xbf16, #tpu.memory_space<vmem>>, vector<3x9x8x8xbf16>
    %cst = arith.constant 0.000000e+00 : f32
    %3 = vector.broadcast %cst : f32 to vector<2x1x10x8xf32>
    %cst_9 = arith.constant 0.000000e+00 : f32
    %4 = vector.broadcast %cst_9 : f32 to vector<2x10x1x8xf32>
    %c0_10 = arith.constant 0 : index
    %c0_11 = arith.constant 0 : index
    %c0_12 = arith.constant 0 : index
    %c0_13 = arith.constant 0 : index
    %5 = vector.load %arg6[%c0_10, %c0_11, %c0_12, %c0_13] : memref<2x10x10x8xf32, #tpu.memory_space<vmem>>, vector<2x1x10x8xf32>
    tpu.vector_store %arg6[%c0_10, %c0_11, %c0_12, %c0_13], %3 {strides = array<i32>} : memref<2x10x10x8xf32, #tpu.memory_space<vmem>>, vector<2x1x10x8xf32>,
    %c0_14 = arith.constant 0 : index
    %c9 = arith.constant 9 : index
    %c0_15 = arith.constant 0 : index
    %c0_16 = arith.constant 0 : index
    %6 = vector.load %arg6[%c0_14, %c9, %c0_15, %c0_16] : memref<2x10x10x8xf32, #tpu.memory_space<vmem>>, vector<2x1x10x8xf32>
    tpu.vector_store %arg6[%c0_14, %c9, %c0_15, %c0_16], %3 {strides = array<i32>} : memref<2x10x10x8xf32, #tpu.memory_space<vmem>>, vector<2x1x10x8xf32>,
    %c0_17 = arith.constant 0 : index
    %c0_18 = arith.constant 0 : index
    %c0_19 = arith.constant 0 : index
    %c0_20 = arith.constant 0 : index
    %7 = vector.load %arg6[%c0_17, %c0_18, %c0_19, %c0_20] : memref<2x10x10x8xf32, #tpu.memory_space<vmem>>, vector<2x10x1x8xf32>
    tpu.vector_store %arg6[%c0_17, %c0_18, %c0_19, %c0_20], %4 {strides = array<i32>} : memref<2x10x10x8xf32, #tpu.memory_space<vmem>>, vector<2x10x1x8xf32>,
    %c0_21 = arith.constant 0 : index
    %c0_22 = arith.constant 0 : index
    %c9_23 = arith.constant 9 : index
    %c0_24 = arith.constant 0 : index
    %8 = vector.load %arg6[%c0_21, %c0_22, %c9_23, %c0_24] : memref<2x10x10x8xf32, #tpu.memory_space<vmem>>, vector<2x10x1x8xf32>
    tpu.vector_store %arg6[%c0_21, %c0_22, %c9_23, %c0_24], %4 {strides = array<i32>} : memref<2x10x10x8xf32, #tpu.memory_space<vmem>>, vector<2x10x1x8xf32>,
    %cst_25 = arith.constant 0.000000e+00 : f32
    %9 = vector.broadcast %cst_25 : f32 to vector<128x16xf32>
    %c0_26 = arith.constant 0 : index
    %c0_27 = arith.constant 0 : index
    %c0_28 = arith.constant 0 : index
    %c0_29 = arith.constant 0 : index
    %10 = vector.load %arg1[%c0_26, %c0_27, %c0_28, %c0_29] : memref<2x9x9x16xf32, #tpu.memory_space<vmem>>, vector<2x8x8x16xf32>
    %11 = vector.shape_cast %10 : vector<2x8x8x16xf32> to vector<128x16xf32>
    %12 = arith.truncf %11 : vector<128x16xf32> to vector<128x16xbf16>
    %13 = vector.extract_strided_slice %1 {offsets = [0, 0, 0], sizes = [1, 16, 16], strides = [1, 1, 1]} : vector<4x16x16xbf16> to vector<1x16x16xbf16>
    %14 = vector.shape_cast %13 : vector<1x16x16xbf16> to vector<16x16xbf16>
    %cst_30 = arith.constant dense<0.000000e+00> : vector<128x16xf32>
    %15 = tpu.matmul %12, %14, %cst_30 {dimension_numbers = #tpu.dot_dimension_numbers<[1], [0], [0], [1], [0, 0, 1, 1], [], []>} : vector<128x16xbf16>, vector<16x16xbf16>, vector<128x16xf32> -> vector<128x16xf32>
    %16 = arith.addf %9, %15 : vector<128x16xf32>
    %c0_31 = arith.constant 0 : index
    %c0_32 = arith.constant 0 : index
    %c1 = arith.constant 1 : index
    %c0_33 = arith.constant 0 : index
    %17 = vector.load %arg1[%c0_31, %c0_32, %c1, %c0_33] : memref<2x9x9x16xf32, #tpu.memory_space<vmem>>, vector<2x8x8x16xf32>
    %18 = vector.shape_cast %17 : vector<2x8x8x16xf32> to vector<128x16xf32>
    %19 = arith.truncf %18 : vector<128x16xf32> to vector<128x16xbf16>
    %20 = vector.extract_strided_slice %1 {offsets = [1, 0, 0], sizes = [1, 16, 16], strides = [1, 1, 1]} : vector<4x16x16xbf16> to vector<1x16x16xbf16>
    %21 = vector.shape_cast %20 : vector<1x16x16xbf16> to vector<16x16xbf16>
    %cst_34 = arith.constant dense<0.000000e+00> : vector<128x16xf32>
    %22 = tpu.matmul %19, %21, %cst_34 {dimension_numbers = #tpu.dot_dimension_numbers<[1], [0], [0], [1], [0, 0, 1, 1], [], []>} : vector<128x16xbf16>, vector<16x16xbf16>, vector<128x16xf32> -> vector<128x16xf32>
    %23 = arith.addf %16, %22 : vector<128x16xf32>
    %c0_35 = arith.constant 0 : index
    %c1_36 = arith.constant 1 : index
    %c0_37 = arith.constant 0 : index
    %c0_38 = arith.constant 0 : index
    %24 = vector.load %arg1[%c0_35, %c1_36, %c0_37, %c0_38] : memref<2x9x9x16xf32, #tpu.memory_space<vmem>>, vector<2x8x8x16xf32>
    %25 = vector.shape_cast %24 : vector<2x8x8x16xf32> to vector<128x16xf32>
    %26 = arith.truncf %25 : vector<128x16xf32> to vector<128x16xbf16>
    %27 = vector.extract_strided_slice %1 {offsets = [2, 0, 0], sizes = [1, 16, 16], strides = [1, 1, 1]} : vector<4x16x16xbf16> to vector<1x16x16xbf16>
    %28 = vector.shape_cast %27 : vector<1x16x16xbf16> to vector<16x16xbf16>
    %cst_39 = arith.constant dense<0.000000e+00> : vector<128x16xf32>
    %29 = tpu.matmul %26, %28, %cst_39 {dimension_numbers = #tpu.dot_dimension_numbers<[1], [0], [0], [1], [0, 0, 1, 1], [], []>} : vector<128x16xbf16>, vector<16x16xbf16>, vector<128x16xf32> -> vector<128x16xf32>
    %30 = arith.addf %23, %29 : vector<128x16xf32>
    %c0_40 = arith.constant 0 : index
    %c1_41 = arith.constant 1 : index
    %c1_42 = arith.constant 1 : index
    %c0_43 = arith.constant 0 : index
    %31 = vector.load %arg1[%c0_40, %c1_41, %c1_42, %c0_43] : memref<2x9x9x16xf32, #tpu.memory_space<vmem>>, vector<2x8x8x16xf32>
    %32 = vector.shape_cast %31 : vector<2x8x8x16xf32> to vector<128x16xf32>
    %33 = arith.truncf %32 : vector<128x16xf32> to vector<128x16xbf16>
    %34 = vector.extract_strided_slice %1 {offsets = [3, 0, 0], sizes = [1, 16, 16], strides = [1, 1, 1]} : vector<4x16x16xbf16> to vector<1x16x16xbf16>
    %35 = vector.shape_cast %34 : vector<1x16x16xbf16> to vector<16x16xbf16>
    %cst_44 = arith.constant dense<0.000000e+00> : vector<128x16xf32>
    %36 = tpu.matmul %33, %35, %cst_44 {dimension_numbers = #tpu.dot_dimension_numbers<[1], [0], [0], [1], [0, 0, 1, 1], [], []>} : vector<128x16xbf16>, vector<16x16xbf16>, vector<128x16xf32> -> vector<128x16xf32>
    %37 = arith.addf %30, %36 : vector<128x16xf32>
    %38 = vector.extract_strided_slice %37 {offsets = [0, 0], sizes = [128, 8], strides = [1, 1]} : vector<128x16xf32> to vector<128x8xf32>
    %39 = vector.extract_strided_slice %0 {offsets = [0, 0, 0], sizes = [1, 1, 8], strides = [1, 1, 1]} : vector<5x1x8xf32> to vector<1x1x8xf32>
    %40 = vector.shape_cast %39 : vector<1x1x8xf32> to vector<1x8xf32>
    %41 = vector.broadcast %40 : vector<1x8xf32> to vector<128x8xf32>
    %42 = arith.addf %38, %41 : vector<128x8xf32>
    %cst_45 = arith.constant 0.000000e+00 : f32
    %43 = vector.broadcast %cst_45 : f32 to vector<128x8xf32>
    %44 = arith.maximumf %42, %43 : vector<128x8xf32>
    %45 = vector.extract_strided_slice %37 {offsets = [0, 8], sizes = [128, 8], strides = [1, 1]} : vector<128x16xf32> to vector<128x8xf32>
    %46 = vector.extract_strided_slice %0 {offsets = [1, 0, 0], sizes = [1, 1, 8], strides = [1, 1, 1]} : vector<5x1x8xf32> to vector<1x1x8xf32>
    %47 = vector.shape_cast %46 : vector<1x1x8xf32> to vector<1x8xf32>
    %48 = vector.broadcast %47 : vector<1x8xf32> to vector<128x8xf32>
    %49 = arith.addf %45, %48 : vector<128x8xf32>
    %50 = vector.extract_strided_slice %2 {offsets = [0, 0, 0, 0], sizes = [1, 9, 8, 8], strides = [1, 1, 1, 1]} : vector<3x9x8x8xbf16> to vector<1x9x8x8xbf16>
    %51 = vector.shape_cast %50 : vector<1x9x8x8xbf16> to vector<9x8x8xbf16>
    %52 = vector.shape_cast %44 : vector<128x8xf32> to vector<2x8x8x8xf32>
    %c0_46 = arith.constant 0 : index
    %c1_47 = arith.constant 1 : index
    %c1_48 = arith.constant 1 : index
    %c0_49 = arith.constant 0 : index
    %53 = vector.load %arg6[%c0_46, %c1_47, %c1_48, %c0_49] : memref<2x10x10x8xf32, #tpu.memory_space<vmem>>, vector<2x8x8x8xf32>
    tpu.vector_store %arg6[%c0_46, %c1_47, %c1_48, %c0_49], %52 {strides = array<i32>} : memref<2x10x10x8xf32, #tpu.memory_space<vmem>>, vector<2x8x8x8xf32>,
    %cst_50 = arith.constant 0.000000e+00 : f32
    %54 = vector.broadcast %cst_50 : f32 to vector<128x8xf32>
    %c0_51 = arith.constant 0 : index
    %c0_52 = arith.constant 0 : index
    %c0_53 = arith.constant 0 : index
    %c0_54 = arith.constant 0 : index
    %55 = vector.load %arg6[%c0_51, %c0_52, %c0_53, %c0_54] : memref<2x10x10x8xf32, #tpu.memory_space<vmem>>, vector<2x8x8x8xf32>
    %56 = vector.shape_cast %55 : vector<2x8x8x8xf32> to vector<128x8xf32>
    %57 = arith.truncf %56 : vector<128x8xf32> to vector<128x8xbf16>
    %58 = vector.extract_strided_slice %51 {offsets = [0, 0, 0], sizes = [1, 8, 8], strides = [1, 1, 1]} : vector<9x8x8xbf16> to vector<1x8x8xbf16>
    %59 = vector.shape_cast %58 : vector<1x8x8xbf16> to vector<8x8xbf16>
    %cst_55 = arith.constant dense<0.000000e+00> : vector<128x8xf32>
    %60 = tpu.matmul %57, %59, %cst_55 {dimension_numbers = #tpu.dot_dimension_numbers<[1], [0], [0], [1], [0, 0, 1, 1], [], []>} : vector<128x8xbf16>, vector<8x8xbf16>, vector<128x8xf32> -> vector<128x8xf32>
    %61 = arith.addf %54, %60 : vector<128x8xf32>
    %c0_56 = arith.constant 0 : index
    %c0_57 = arith.constant 0 : index
    %c1_58 = arith.constant 1 : index
    %c0_59 = arith.constant 0 : index
    %62 = vector.load %arg6[%c0_56, %c0_57, %c1_58, %c0_59] : memref<2x10x10x8xf32, #tpu.memory_space<vmem>>, vector<2x8x8x8xf32>
    %63 = vector.shape_cast %62 : vector<2x8x8x8xf32> to vector<128x8xf32>
    %64 = arith.truncf %63 : vector<128x8xf32> to vector<128x8xbf16>
    %65 = vector.extract_strided_slice %51 {offsets = [1, 0, 0], sizes = [1, 8, 8], strides = [1, 1, 1]} : vector<9x8x8xbf16> to vector<1x8x8xbf16>
    %66 = vector.shape_cast %65 : vector<1x8x8xbf16> to vector<8x8xbf16>
    %cst_60 = arith.constant dense<0.000000e+00> : vector<128x8xf32>
    %67 = tpu.matmul %64, %66, %cst_60 {dimension_numbers = #tpu.dot_dimension_numbers<[1], [0], [0], [1], [0, 0, 1, 1], [], []>} : vector<128x8xbf16>, vector<8x8xbf16>, vector<128x8xf32> -> vector<128x8xf32>
    %68 = arith.addf %61, %67 : vector<128x8xf32>
    %c0_61 = arith.constant 0 : index
    %c0_62 = arith.constant 0 : index
    %c2 = arith.constant 2 : index
    %c0_63 = arith.constant 0 : index
    %69 = vector.load %arg6[%c0_61, %c0_62, %c2, %c0_63] : memref<2x10x10x8xf32, #tpu.memory_space<vmem>>, vector<2x8x8x8xf32>
    %70 = vector.shape_cast %69 : vector<2x8x8x8xf32> to vector<128x8xf32>
    %71 = arith.truncf %70 : vector<128x8xf32> to vector<128x8xbf16>
    %72 = vector.extract_strided_slice %51 {offsets = [2, 0, 0], sizes = [1, 8, 8], strides = [1, 1, 1]} : vector<9x8x8xbf16> to vector<1x8x8xbf16>
    %73 = vector.shape_cast %72 : vector<1x8x8xbf16> to vector<8x8xbf16>
    %cst_64 = arith.constant dense<0.000000e+00> : vector<128x8xf32>
    %74 = tpu.matmul %71, %73, %cst_64 {dimension_numbers = #tpu.dot_dimension_numbers<[1], [0], [0], [1], [0, 0, 1, 1], [], []>} : vector<128x8xbf16>, vector<8x8xbf16>, vector<128x8xf32> -> vector<128x8xf32>
    %75 = arith.addf %68, %74 : vector<128x8xf32>
    %c0_65 = arith.constant 0 : index
    %c1_66 = arith.constant 1 : index
    %c0_67 = arith.constant 0 : index
    %c0_68 = arith.constant 0 : index
    %76 = vector.load %arg6[%c0_65, %c1_66, %c0_67, %c0_68] : memref<2x10x10x8xf32, #tpu.memory_space<vmem>>, vector<2x8x8x8xf32>
    %77 = vector.shape_cast %76 : vector<2x8x8x8xf32> to vector<128x8xf32>
    %78 = arith.truncf %77 : vector<128x8xf32> to vector<128x8xbf16>
    %79 = vector.extract_strided_slice %51 {offsets = [3, 0, 0], sizes = [1, 8, 8], strides = [1, 1, 1]} : vector<9x8x8xbf16> to vector<1x8x8xbf16>
    %80 = vector.shape_cast %79 : vector<1x8x8xbf16> to vector<8x8xbf16>
    %cst_69 = arith.constant dense<0.000000e+00> : vector<128x8xf32>
    %81 = tpu.matmul %78, %80, %cst_69 {dimension_numbers = #tpu.dot_dimension_numbers<[1], [0], [0], [1], [0, 0, 1, 1], [], []>} : vector<128x8xbf16>, vector<8x8xbf16>, vector<128x8xf32> -> vector<128x8xf32>
    %82 = arith.addf %75, %81 : vector<128x8xf32>
    %c0_70 = arith.constant 0 : index
    %c1_71 = arith.constant 1 : index
    %c1_72 = arith.constant 1 : index
    %c0_73 = arith.constant 0 : index
    %83 = vector.load %arg6[%c0_70, %c1_71, %c1_72, %c0_73] : memref<2x10x10x8xf32, #tpu.memory_space<vmem>>, vector<2x8x8x8xf32>
    %84 = vector.shape_cast %83 : vector<2x8x8x8xf32> to vector<128x8xf32>
    %85 = arith.truncf %84 : vector<128x8xf32> to vector<128x8xbf16>
    %86 = vector.extract_strided_slice %51 {offsets = [4, 0, 0], sizes = [1, 8, 8], strides = [1, 1, 1]} : vector<9x8x8xbf16> to vector<1x8x8xbf16>
    %87 = vector.shape_cast %86 : vector<1x8x8xbf16> to vector<8x8xbf16>
    %cst_74 = arith.constant dense<0.000000e+00> : vector<128x8xf32>
    %88 = tpu.matmul %85, %87, %cst_74 {dimension_numbers = #tpu.dot_dimension_numbers<[1], [0], [0], [1], [0, 0, 1, 1], [], []>} : vector<128x8xbf16>, vector<8x8xbf16>, vector<128x8xf32> -> vector<128x8xf32>
    %89 = arith.addf %82, %88 : vector<128x8xf32>
    %c0_75 = arith.constant 0 : index
    %c1_76 = arith.constant 1 : index
    %c2_77 = arith.constant 2 : index
    %c0_78 = arith.constant 0 : index
    %90 = vector.load %arg6[%c0_75, %c1_76, %c2_77, %c0_78] : memref<2x10x10x8xf32, #tpu.memory_space<vmem>>, vector<2x8x8x8xf32>
    %91 = vector.shape_cast %90 : vector<2x8x8x8xf32> to vector<128x8xf32>
    %92 = arith.truncf %91 : vector<128x8xf32> to vector<128x8xbf16>
    %93 = vector.extract_strided_slice %51 {offsets = [5, 0, 0], sizes = [1, 8, 8], strides = [1, 1, 1]} : vector<9x8x8xbf16> to vector<1x8x8xbf16>
    %94 = vector.shape_cast %93 : vector<1x8x8xbf16> to vector<8x8xbf16>
    %cst_79 = arith.constant dense<0.000000e+00> : vector<128x8xf32>
    %95 = tpu.matmul %92, %94, %cst_79 {dimension_numbers = #tpu.dot_dimension_numbers<[1], [0], [0], [1], [0, 0, 1, 1], [], []>} : vector<128x8xbf16>, vector<8x8xbf16>, vector<128x8xf32> -> vector<128x8xf32>
    %96 = arith.addf %89, %95 : vector<128x8xf32>
    %c0_80 = arith.constant 0 : index
    %c2_81 = arith.constant 2 : index
    %c0_82 = arith.constant 0 : index
    %c0_83 = arith.constant 0 : index
    %97 = vector.load %arg6[%c0_80, %c2_81, %c0_82, %c0_83] : memref<2x10x10x8xf32, #tpu.memory_space<vmem>>, vector<2x8x8x8xf32>
    %98 = vector.shape_cast %97 : vector<2x8x8x8xf32> to vector<128x8xf32>
    %99 = arith.truncf %98 : vector<128x8xf32> to vector<128x8xbf16>
    %100 = vector.extract_strided_slice %51 {offsets = [6, 0, 0], sizes = [1, 8, 8], strides = [1, 1, 1]} : vector<9x8x8xbf16> to vector<1x8x8xbf16>
    %101 = vector.shape_cast %100 : vector<1x8x8xbf16> to vector<8x8xbf16>
    %cst_84 = arith.constant dense<0.000000e+00> : vector<128x8xf32>
    %102 = tpu.matmul %99, %101, %cst_84 {dimension_numbers = #tpu.dot_dimension_numbers<[1], [0], [0], [1], [0, 0, 1, 1], [], []>} : vector<128x8xbf16>, vector<8x8xbf16>, vector<128x8xf32> -> vector<128x8xf32>
    %103 = arith.addf %96, %102 : vector<128x8xf32>
    %c0_85 = arith.constant 0 : index
    %c2_86 = arith.constant 2 : index
    %c1_87 = arith.constant 1 : index
    %c0_88 = arith.constant 0 : index
    %104 = vector.load %arg6[%c0_85, %c2_86, %c1_87, %c0_88] : memref<2x10x10x8xf32, #tpu.memory_space<vmem>>, vector<2x8x8x8xf32>
    %105 = vector.shape_cast %104 : vector<2x8x8x8xf32> to vector<128x8xf32>
    %106 = arith.truncf %105 : vector<128x8xf32> to vector<128x8xbf16>
    %107 = vector.extract_strided_slice %51 {offsets = [7, 0, 0], sizes = [1, 8, 8], strides = [1, 1, 1]} : vector<9x8x8xbf16> to vector<1x8x8xbf16>
    %108 = vector.shape_cast %107 : vector<1x8x8xbf16> to vector<8x8xbf16>
    %cst_89 = arith.constant dense<0.000000e+00> : vector<128x8xf32>
    %109 = tpu.matmul %106, %108, %cst_89 {dimension_numbers = #tpu.dot_dimension_numbers<[1], [0], [0], [1], [0, 0, 1, 1], [], []>} : vector<128x8xbf16>, vector<8x8xbf16>, vector<128x8xf32> -> vector<128x8xf32>
    %110 = arith.addf %103, %109 : vector<128x8xf32>
    %c0_90 = arith.constant 0 : index
    %c2_91 = arith.constant 2 : index
    %c2_92 = arith.constant 2 : index
    %c0_93 = arith.constant 0 : index
    %111 = vector.load %arg6[%c0_90, %c2_91, %c2_92, %c0_93] : memref<2x10x10x8xf32, #tpu.memory_space<vmem>>, vector<2x8x8x8xf32>
    %112 = vector.shape_cast %111 : vector<2x8x8x8xf32> to vector<128x8xf32>
    %113 = arith.truncf %112 : vector<128x8xf32> to vector<128x8xbf16>
    %114 = vector.extract_strided_slice %51 {offsets = [8, 0, 0], sizes = [1, 8, 8], strides = [1, 1, 1]} : vector<9x8x8xbf16> to vector<1x8x8xbf16>
    %115 = vector.shape_cast %114 : vector<1x8x8xbf16> to vector<8x8xbf16>
    %cst_94 = arith.constant dense<0.000000e+00> : vector<128x8xf32>
    %116 = tpu.matmul %113, %115, %cst_94 {dimension_numbers = #tpu.dot_dimension_numbers<[1], [0], [0], [1], [0, 0, 1, 1], [], []>} : vector<128x8xbf16>, vector<8x8xbf16>, vector<128x8xf32> -> vector<128x8xf32>
    %117 = arith.addf %110, %116 : vector<128x8xf32>
    %118 = vector.extract_strided_slice %0 {offsets = [2, 0, 0], sizes = [1, 1, 8], strides = [1, 1, 1]} : vector<5x1x8xf32> to vector<1x1x8xf32>
    %119 = vector.shape_cast %118 : vector<1x1x8xf32> to vector<1x8xf32>
    %120 = vector.broadcast %119 : vector<1x8xf32> to vector<128x8xf32>
    %121 = arith.addf %117, %120 : vector<128x8xf32>
    %122 = arith.addf %121, %49 : vector<128x8xf32>
    %cst_95 = arith.constant 0.000000e+00 : f32
    %123 = vector.broadcast %cst_95 : f32 to vector<128x8xf32>
    %124 = arith.maximumf %122, %123 : vector<128x8xf32>
    %125 = vector.extract_strided_slice %2 {offsets = [1, 0, 0, 0], sizes = [1, 9, 8, 8], strides = [1, 1, 1, 1]} : vector<3x9x8x8xbf16> to vector<1x9x8x8xbf16>
    %126 = vector.shape_cast %125 : vector<1x9x8x8xbf16> to vector<9x8x8xbf16>
    %127 = vector.shape_cast %124 : vector<128x8xf32> to vector<2x8x8x8xf32>
    %c0_96 = arith.constant 0 : index
    %c1_97 = arith.constant 1 : index
    %c1_98 = arith.constant 1 : index
    %c0_99 = arith.constant 0 : index
    %128 = vector.load %arg6[%c0_96, %c1_97, %c1_98, %c0_99] : memref<2x10x10x8xf32, #tpu.memory_space<vmem>>, vector<2x8x8x8xf32>
    tpu.vector_store %arg6[%c0_96, %c1_97, %c1_98, %c0_99], %127 {strides = array<i32>} : memref<2x10x10x8xf32, #tpu.memory_space<vmem>>, vector<2x8x8x8xf32>,
    %cst_100 = arith.constant 0.000000e+00 : f32
    %129 = vector.broadcast %cst_100 : f32 to vector<128x8xf32>
    %c0_101 = arith.constant 0 : index
    %c0_102 = arith.constant 0 : index
    %c0_103 = arith.constant 0 : index
    %c0_104 = arith.constant 0 : index
    %130 = vector.load %arg6[%c0_101, %c0_102, %c0_103, %c0_104] : memref<2x10x10x8xf32, #tpu.memory_space<vmem>>, vector<2x8x8x8xf32>
    %131 = vector.shape_cast %130 : vector<2x8x8x8xf32> to vector<128x8xf32>
    %132 = arith.truncf %131 : vector<128x8xf32> to vector<128x8xbf16>
    %133 = vector.extract_strided_slice %126 {offsets = [0, 0, 0], sizes = [1, 8, 8], strides = [1, 1, 1]} : vector<9x8x8xbf16> to vector<1x8x8xbf16>
    %134 = vector.shape_cast %133 : vector<1x8x8xbf16> to vector<8x8xbf16>
    %cst_105 = arith.constant dense<0.000000e+00> : vector<128x8xf32>
    %135 = tpu.matmul %132, %134, %cst_105 {dimension_numbers = #tpu.dot_dimension_numbers<[1], [0], [0], [1], [0, 0, 1, 1], [], []>} : vector<128x8xbf16>, vector<8x8xbf16>, vector<128x8xf32> -> vector<128x8xf32>
    %136 = arith.addf %129, %135 : vector<128x8xf32>
    %c0_106 = arith.constant 0 : index
    %c0_107 = arith.constant 0 : index
    %c1_108 = arith.constant 1 : index
    %c0_109 = arith.constant 0 : index
    %137 = vector.load %arg6[%c0_106, %c0_107, %c1_108, %c0_109] : memref<2x10x10x8xf32, #tpu.memory_space<vmem>>, vector<2x8x8x8xf32>
    %138 = vector.shape_cast %137 : vector<2x8x8x8xf32> to vector<128x8xf32>
    %139 = arith.truncf %138 : vector<128x8xf32> to vector<128x8xbf16>
    %140 = vector.extract_strided_slice %126 {offsets = [1, 0, 0], sizes = [1, 8, 8], strides = [1, 1, 1]} : vector<9x8x8xbf16> to vector<1x8x8xbf16>
    %141 = vector.shape_cast %140 : vector<1x8x8xbf16> to vector<8x8xbf16>
    %cst_110 = arith.constant dense<0.000000e+00> : vector<128x8xf32>
    %142 = tpu.matmul %139, %141, %cst_110 {dimension_numbers = #tpu.dot_dimension_numbers<[1], [0], [0], [1], [0, 0, 1, 1], [], []>} : vector<128x8xbf16>, vector<8x8xbf16>, vector<128x8xf32> -> vector<128x8xf32>
    %143 = arith.addf %136, %142 : vector<128x8xf32>
    %c0_111 = arith.constant 0 : index
    %c0_112 = arith.constant 0 : index
    %c2_113 = arith.constant 2 : index
    %c0_114 = arith.constant 0 : index
    %144 = vector.load %arg6[%c0_111, %c0_112, %c2_113, %c0_114] : memref<2x10x10x8xf32, #tpu.memory_space<vmem>>, vector<2x8x8x8xf32>
    %145 = vector.shape_cast %144 : vector<2x8x8x8xf32> to vector<128x8xf32>
    %146 = arith.truncf %145 : vector<128x8xf32> to vector<128x8xbf16>
    %147 = vector.extract_strided_slice %126 {offsets = [2, 0, 0], sizes = [1, 8, 8], strides = [1, 1, 1]} : vector<9x8x8xbf16> to vector<1x8x8xbf16>
    %148 = vector.shape_cast %147 : vector<1x8x8xbf16> to vector<8x8xbf16>
    %cst_115 = arith.constant dense<0.000000e+00> : vector<128x8xf32>
    %149 = tpu.matmul %146, %148, %cst_115 {dimension_numbers = #tpu.dot_dimension_numbers<[1], [0], [0], [1], [0, 0, 1, 1], [], []>} : vector<128x8xbf16>, vector<8x8xbf16>, vector<128x8xf32> -> vector<128x8xf32>
    %150 = arith.addf %143, %149 : vector<128x8xf32>
    %c0_116 = arith.constant 0 : index
    %c1_117 = arith.constant 1 : index
    %c0_118 = arith.constant 0 : index
    %c0_119 = arith.constant 0 : index
    %151 = vector.load %arg6[%c0_116, %c1_117, %c0_118, %c0_119] : memref<2x10x10x8xf32, #tpu.memory_space<vmem>>, vector<2x8x8x8xf32>
    %152 = vector.shape_cast %151 : vector<2x8x8x8xf32> to vector<128x8xf32>
    %153 = arith.truncf %152 : vector<128x8xf32> to vector<128x8xbf16>
    %154 = vector.extract_strided_slice %126 {offsets = [3, 0, 0], sizes = [1, 8, 8], strides = [1, 1, 1]} : vector<9x8x8xbf16> to vector<1x8x8xbf16>
    %155 = vector.shape_cast %154 : vector<1x8x8xbf16> to vector<8x8xbf16>
    %cst_120 = arith.constant dense<0.000000e+00> : vector<128x8xf32>
    %156 = tpu.matmul %153, %155, %cst_120 {dimension_numbers = #tpu.dot_dimension_numbers<[1], [0], [0], [1], [0, 0, 1, 1], [], []>} : vector<128x8xbf16>, vector<8x8xbf16>, vector<128x8xf32> -> vector<128x8xf32>
    %157 = arith.addf %150, %156 : vector<128x8xf32>
    %c0_121 = arith.constant 0 : index
    %c1_122 = arith.constant 1 : index
    %c1_123 = arith.constant 1 : index
    %c0_124 = arith.constant 0 : index
    %158 = vector.load %arg6[%c0_121, %c1_122, %c1_123, %c0_124] : memref<2x10x10x8xf32, #tpu.memory_space<vmem>>, vector<2x8x8x8xf32>
    %159 = vector.shape_cast %158 : vector<2x8x8x8xf32> to vector<128x8xf32>
    %160 = arith.truncf %159 : vector<128x8xf32> to vector<128x8xbf16>
    %161 = vector.extract_strided_slice %126 {offsets = [4, 0, 0], sizes = [1, 8, 8], strides = [1, 1, 1]} : vector<9x8x8xbf16> to vector<1x8x8xbf16>
    %162 = vector.shape_cast %161 : vector<1x8x8xbf16> to vector<8x8xbf16>
    %cst_125 = arith.constant dense<0.000000e+00> : vector<128x8xf32>
    %163 = tpu.matmul %160, %162, %cst_125 {dimension_numbers = #tpu.dot_dimension_numbers<[1], [0], [0], [1], [0, 0, 1, 1], [], []>} : vector<128x8xbf16>, vector<8x8xbf16>, vector<128x8xf32> -> vector<128x8xf32>
    %164 = arith.addf %157, %163 : vector<128x8xf32>
    %c0_126 = arith.constant 0 : index
    %c1_127 = arith.constant 1 : index
    %c2_128 = arith.constant 2 : index
    %c0_129 = arith.constant 0 : index
    %165 = vector.load %arg6[%c0_126, %c1_127, %c2_128, %c0_129] : memref<2x10x10x8xf32, #tpu.memory_space<vmem>>, vector<2x8x8x8xf32>
    %166 = vector.shape_cast %165 : vector<2x8x8x8xf32> to vector<128x8xf32>
    %167 = arith.truncf %166 : vector<128x8xf32> to vector<128x8xbf16>
    %168 = vector.extract_strided_slice %126 {offsets = [5, 0, 0], sizes = [1, 8, 8], strides = [1, 1, 1]} : vector<9x8x8xbf16> to vector<1x8x8xbf16>
    %169 = vector.shape_cast %168 : vector<1x8x8xbf16> to vector<8x8xbf16>
    %cst_130 = arith.constant dense<0.000000e+00> : vector<128x8xf32>
    %170 = tpu.matmul %167, %169, %cst_130 {dimension_numbers = #tpu.dot_dimension_numbers<[1], [0], [0], [1], [0, 0, 1, 1], [], []>} : vector<128x8xbf16>, vector<8x8xbf16>, vector<128x8xf32> -> vector<128x8xf32>
    %171 = arith.addf %164, %170 : vector<128x8xf32>
    %c0_131 = arith.constant 0 : index
    %c2_132 = arith.constant 2 : index
    %c0_133 = arith.constant 0 : index
    %c0_134 = arith.constant 0 : index
    %172 = vector.load %arg6[%c0_131, %c2_132, %c0_133, %c0_134] : memref<2x10x10x8xf32, #tpu.memory_space<vmem>>, vector<2x8x8x8xf32>
    %173 = vector.shape_cast %172 : vector<2x8x8x8xf32> to vector<128x8xf32>
    %174 = arith.truncf %173 : vector<128x8xf32> to vector<128x8xbf16>
    %175 = vector.extract_strided_slice %126 {offsets = [6, 0, 0], sizes = [1, 8, 8], strides = [1, 1, 1]} : vector<9x8x8xbf16> to vector<1x8x8xbf16>
    %176 = vector.shape_cast %175 : vector<1x8x8xbf16> to vector<8x8xbf16>
    %cst_135 = arith.constant dense<0.000000e+00> : vector<128x8xf32>
    %177 = tpu.matmul %174, %176, %cst_135 {dimension_numbers = #tpu.dot_dimension_numbers<[1], [0], [0], [1], [0, 0, 1, 1], [], []>} : vector<128x8xbf16>, vector<8x8xbf16>, vector<128x8xf32> -> vector<128x8xf32>
    %178 = arith.addf %171, %177 : vector<128x8xf32>
    %c0_136 = arith.constant 0 : index
    %c2_137 = arith.constant 2 : index
    %c1_138 = arith.constant 1 : index
    %c0_139 = arith.constant 0 : index
    %179 = vector.load %arg6[%c0_136, %c2_137, %c1_138, %c0_139] : memref<2x10x10x8xf32, #tpu.memory_space<vmem>>, vector<2x8x8x8xf32>
    %180 = vector.shape_cast %179 : vector<2x8x8x8xf32> to vector<128x8xf32>
    %181 = arith.truncf %180 : vector<128x8xf32> to vector<128x8xbf16>
    %182 = vector.extract_strided_slice %126 {offsets = [7, 0, 0], sizes = [1, 8, 8], strides = [1, 1, 1]} : vector<9x8x8xbf16> to vector<1x8x8xbf16>
    %183 = vector.shape_cast %182 : vector<1x8x8xbf16> to vector<8x8xbf16>
    %cst_140 = arith.constant dense<0.000000e+00> : vector<128x8xf32>
    %184 = tpu.matmul %181, %183, %cst_140 {dimension_numbers = #tpu.dot_dimension_numbers<[1], [0], [0], [1], [0, 0, 1, 1], [], []>} : vector<128x8xbf16>, vector<8x8xbf16>, vector<128x8xf32> -> vector<128x8xf32>
    %185 = arith.addf %178, %184 : vector<128x8xf32>
    %c0_141 = arith.constant 0 : index
    %c2_142 = arith.constant 2 : index
    %c2_143 = arith.constant 2 : index
    %c0_144 = arith.constant 0 : index
    %186 = vector.load %arg6[%c0_141, %c2_142, %c2_143, %c0_144] : memref<2x10x10x8xf32, #tpu.memory_space<vmem>>, vector<2x8x8x8xf32>
    %187 = vector.shape_cast %186 : vector<2x8x8x8xf32> to vector<128x8xf32>
    %188 = arith.truncf %187 : vector<128x8xf32> to vector<128x8xbf16>
    %189 = vector.extract_strided_slice %126 {offsets = [8, 0, 0], sizes = [1, 8, 8], strides = [1, 1, 1]} : vector<9x8x8xbf16> to vector<1x8x8xbf16>
    %190 = vector.shape_cast %189 : vector<1x8x8xbf16> to vector<8x8xbf16>
    %cst_145 = arith.constant dense<0.000000e+00> : vector<128x8xf32>
    %191 = tpu.matmul %188, %190, %cst_145 {dimension_numbers = #tpu.dot_dimension_numbers<[1], [0], [0], [1], [0, 0, 1, 1], [], []>} : vector<128x8xbf16>, vector<8x8xbf16>, vector<128x8xf32> -> vector<128x8xf32>
    %192 = arith.addf %185, %191 : vector<128x8xf32>
    %193 = vector.extract_strided_slice %0 {offsets = [3, 0, 0], sizes = [1, 1, 8], strides = [1, 1, 1]} : vector<5x1x8xf32> to vector<1x1x8xf32>
    %194 = vector.shape_cast %193 : vector<1x1x8xf32> to vector<1x8xf32>
    %195 = vector.broadcast %194 : vector<1x8xf32> to vector<128x8xf32>
    %196 = arith.addf %192, %195 : vector<128x8xf32>
    %cst_146 = arith.constant 0.000000e+00 : f32
    %197 = vector.broadcast %cst_146 : f32 to vector<128x8xf32>
    %198 = arith.maximumf %196, %197 : vector<128x8xf32>
    %199 = vector.extract_strided_slice %2 {offsets = [2, 0, 0, 0], sizes = [1, 9, 8, 8], strides = [1, 1, 1, 1]} : vector<3x9x8x8xbf16> to vector<1x9x8x8xbf16>
    %200 = vector.shape_cast %199 : vector<1x9x8x8xbf16> to vector<9x8x8xbf16>
    %201 = vector.shape_cast %198 : vector<128x8xf32> to vector<2x8x8x8xf32>
    %c0_147 = arith.constant 0 : index
    %c1_148 = arith.constant 1 : index
    %c1_149 = arith.constant 1 : index
    %c0_150 = arith.constant 0 : index
    %202 = vector.load %arg6[%c0_147, %c1_148, %c1_149, %c0_150] : memref<2x10x10x8xf32, #tpu.memory_space<vmem>>, vector<2x8x8x8xf32>
    tpu.vector_store %arg6[%c0_147, %c1_148, %c1_149, %c0_150], %201 {strides = array<i32>} : memref<2x10x10x8xf32, #tpu.memory_space<vmem>>, vector<2x8x8x8xf32>,
    %cst_151 = arith.constant 0.000000e+00 : f32
    %203 = vector.broadcast %cst_151 : f32 to vector<128x8xf32>
    %c0_152 = arith.constant 0 : index
    %c0_153 = arith.constant 0 : index
    %c0_154 = arith.constant 0 : index
    %c0_155 = arith.constant 0 : index
    %204 = vector.load %arg6[%c0_152, %c0_153, %c0_154, %c0_155] : memref<2x10x10x8xf32, #tpu.memory_space<vmem>>, vector<2x8x8x8xf32>
    %205 = vector.shape_cast %204 : vector<2x8x8x8xf32> to vector<128x8xf32>
    %206 = arith.truncf %205 : vector<128x8xf32> to vector<128x8xbf16>
    %207 = vector.extract_strided_slice %200 {offsets = [0, 0, 0], sizes = [1, 8, 8], strides = [1, 1, 1]} : vector<9x8x8xbf16> to vector<1x8x8xbf16>
    %208 = vector.shape_cast %207 : vector<1x8x8xbf16> to vector<8x8xbf16>
    %cst_156 = arith.constant dense<0.000000e+00> : vector<128x8xf32>
    %209 = tpu.matmul %206, %208, %cst_156 {dimension_numbers = #tpu.dot_dimension_numbers<[1], [0], [0], [1], [0, 0, 1, 1], [], []>} : vector<128x8xbf16>, vector<8x8xbf16>, vector<128x8xf32> -> vector<128x8xf32>
    %210 = arith.addf %203, %209 : vector<128x8xf32>
    %c0_157 = arith.constant 0 : index
    %c0_158 = arith.constant 0 : index
    %c1_159 = arith.constant 1 : index
    %c0_160 = arith.constant 0 : index
    %211 = vector.load %arg6[%c0_157, %c0_158, %c1_159, %c0_160] : memref<2x10x10x8xf32, #tpu.memory_space<vmem>>, vector<2x8x8x8xf32>
    %212 = vector.shape_cast %211 : vector<2x8x8x8xf32> to vector<128x8xf32>
    %213 = arith.truncf %212 : vector<128x8xf32> to vector<128x8xbf16>
    %214 = vector.extract_strided_slice %200 {offsets = [1, 0, 0], sizes = [1, 8, 8], strides = [1, 1, 1]} : vector<9x8x8xbf16> to vector<1x8x8xbf16>
    %215 = vector.shape_cast %214 : vector<1x8x8xbf16> to vector<8x8xbf16>
    %cst_161 = arith.constant dense<0.000000e+00> : vector<128x8xf32>
    %216 = tpu.matmul %213, %215, %cst_161 {dimension_numbers = #tpu.dot_dimension_numbers<[1], [0], [0], [1], [0, 0, 1, 1], [], []>} : vector<128x8xbf16>, vector<8x8xbf16>, vector<128x8xf32> -> vector<128x8xf32>
    %217 = arith.addf %210, %216 : vector<128x8xf32>
    %c0_162 = arith.constant 0 : index
    %c0_163 = arith.constant 0 : index
    %c2_164 = arith.constant 2 : index
    %c0_165 = arith.constant 0 : index
    %218 = vector.load %arg6[%c0_162, %c0_163, %c2_164, %c0_165] : memref<2x10x10x8xf32, #tpu.memory_space<vmem>>, vector<2x8x8x8xf32>
    %219 = vector.shape_cast %218 : vector<2x8x8x8xf32> to vector<128x8xf32>
    %220 = arith.truncf %219 : vector<128x8xf32> to vector<128x8xbf16>
    %221 = vector.extract_strided_slice %200 {offsets = [2, 0, 0], sizes = [1, 8, 8], strides = [1, 1, 1]} : vector<9x8x8xbf16> to vector<1x8x8xbf16>
    %222 = vector.shape_cast %221 : vector<1x8x8xbf16> to vector<8x8xbf16>
    %cst_166 = arith.constant dense<0.000000e+00> : vector<128x8xf32>
    %223 = tpu.matmul %220, %222, %cst_166 {dimension_numbers = #tpu.dot_dimension_numbers<[1], [0], [0], [1], [0, 0, 1, 1], [], []>} : vector<128x8xbf16>, vector<8x8xbf16>, vector<128x8xf32> -> vector<128x8xf32>
    %224 = arith.addf %217, %223 : vector<128x8xf32>
    %c0_167 = arith.constant 0 : index
    %c1_168 = arith.constant 1 : index
    %c0_169 = arith.constant 0 : index
    %c0_170 = arith.constant 0 : index
    %225 = vector.load %arg6[%c0_167, %c1_168, %c0_169, %c0_170] : memref<2x10x10x8xf32, #tpu.memory_space<vmem>>, vector<2x8x8x8xf32>
    %226 = vector.shape_cast %225 : vector<2x8x8x8xf32> to vector<128x8xf32>
    %227 = arith.truncf %226 : vector<128x8xf32> to vector<128x8xbf16>
    %228 = vector.extract_strided_slice %200 {offsets = [3, 0, 0], sizes = [1, 8, 8], strides = [1, 1, 1]} : vector<9x8x8xbf16> to vector<1x8x8xbf16>
    %229 = vector.shape_cast %228 : vector<1x8x8xbf16> to vector<8x8xbf16>
    %cst_171 = arith.constant dense<0.000000e+00> : vector<128x8xf32>
    %230 = tpu.matmul %227, %229, %cst_171 {dimension_numbers = #tpu.dot_dimension_numbers<[1], [0], [0], [1], [0, 0, 1, 1], [], []>} : vector<128x8xbf16>, vector<8x8xbf16>, vector<128x8xf32> -> vector<128x8xf32>
    %231 = arith.addf %224, %230 : vector<128x8xf32>
    %c0_172 = arith.constant 0 : index
    %c1_173 = arith.constant 1 : index
    %c1_174 = arith.constant 1 : index
    %c0_175 = arith.constant 0 : index
    %232 = vector.load %arg6[%c0_172, %c1_173, %c1_174, %c0_175] : memref<2x10x10x8xf32, #tpu.memory_space<vmem>>, vector<2x8x8x8xf32>
    %233 = vector.shape_cast %232 : vector<2x8x8x8xf32> to vector<128x8xf32>
    %234 = arith.truncf %233 : vector<128x8xf32> to vector<128x8xbf16>
    %235 = vector.extract_strided_slice %200 {offsets = [4, 0, 0], sizes = [1, 8, 8], strides = [1, 1, 1]} : vector<9x8x8xbf16> to vector<1x8x8xbf16>
    %236 = vector.shape_cast %235 : vector<1x8x8xbf16> to vector<8x8xbf16>
    %cst_176 = arith.constant dense<0.000000e+00> : vector<128x8xf32>
    %237 = tpu.matmul %234, %236, %cst_176 {dimension_numbers = #tpu.dot_dimension_numbers<[1], [0], [0], [1], [0, 0, 1, 1], [], []>} : vector<128x8xbf16>, vector<8x8xbf16>, vector<128x8xf32> -> vector<128x8xf32>
    %238 = arith.addf %231, %237 : vector<128x8xf32>
    %c0_177 = arith.constant 0 : index
    %c1_178 = arith.constant 1 : index
    %c2_179 = arith.constant 2 : index
    %c0_180 = arith.constant 0 : index
    %239 = vector.load %arg6[%c0_177, %c1_178, %c2_179, %c0_180] : memref<2x10x10x8xf32, #tpu.memory_space<vmem>>, vector<2x8x8x8xf32>
    %240 = vector.shape_cast %239 : vector<2x8x8x8xf32> to vector<128x8xf32>
    %241 = arith.truncf %240 : vector<128x8xf32> to vector<128x8xbf16>
    %242 = vector.extract_strided_slice %200 {offsets = [5, 0, 0], sizes = [1, 8, 8], strides = [1, 1, 1]} : vector<9x8x8xbf16> to vector<1x8x8xbf16>
    %243 = vector.shape_cast %242 : vector<1x8x8xbf16> to vector<8x8xbf16>
    %cst_181 = arith.constant dense<0.000000e+00> : vector<128x8xf32>
    %244 = tpu.matmul %241, %243, %cst_181 {dimension_numbers = #tpu.dot_dimension_numbers<[1], [0], [0], [1], [0, 0, 1, 1], [], []>} : vector<128x8xbf16>, vector<8x8xbf16>, vector<128x8xf32> -> vector<128x8xf32>
    %245 = arith.addf %238, %244 : vector<128x8xf32>
    %c0_182 = arith.constant 0 : index
    %c2_183 = arith.constant 2 : index
    %c0_184 = arith.constant 0 : index
    %c0_185 = arith.constant 0 : index
    %246 = vector.load %arg6[%c0_182, %c2_183, %c0_184, %c0_185] : memref<2x10x10x8xf32, #tpu.memory_space<vmem>>, vector<2x8x8x8xf32>
    %247 = vector.shape_cast %246 : vector<2x8x8x8xf32> to vector<128x8xf32>
    %248 = arith.truncf %247 : vector<128x8xf32> to vector<128x8xbf16>
    %249 = vector.extract_strided_slice %200 {offsets = [6, 0, 0], sizes = [1, 8, 8], strides = [1, 1, 1]} : vector<9x8x8xbf16> to vector<1x8x8xbf16>
    %250 = vector.shape_cast %249 : vector<1x8x8xbf16> to vector<8x8xbf16>
    %cst_186 = arith.constant dense<0.000000e+00> : vector<128x8xf32>
    %251 = tpu.matmul %248, %250, %cst_186 {dimension_numbers = #tpu.dot_dimension_numbers<[1], [0], [0], [1], [0, 0, 1, 1], [], []>} : vector<128x8xbf16>, vector<8x8xbf16>, vector<128x8xf32> -> vector<128x8xf32>
    %252 = arith.addf %245, %251 : vector<128x8xf32>
    %c0_187 = arith.constant 0 : index
    %c2_188 = arith.constant 2 : index
    %c1_189 = arith.constant 1 : index
    %c0_190 = arith.constant 0 : index
    %253 = vector.load %arg6[%c0_187, %c2_188, %c1_189, %c0_190] : memref<2x10x10x8xf32, #tpu.memory_space<vmem>>, vector<2x8x8x8xf32>
    %254 = vector.shape_cast %253 : vector<2x8x8x8xf32> to vector<128x8xf32>
    %255 = arith.truncf %254 : vector<128x8xf32> to vector<128x8xbf16>
    %256 = vector.extract_strided_slice %200 {offsets = [7, 0, 0], sizes = [1, 8, 8], strides = [1, 1, 1]} : vector<9x8x8xbf16> to vector<1x8x8xbf16>
    %257 = vector.shape_cast %256 : vector<1x8x8xbf16> to vector<8x8xbf16>
    %cst_191 = arith.constant dense<0.000000e+00> : vector<128x8xf32>
    %258 = tpu.matmul %255, %257, %cst_191 {dimension_numbers = #tpu.dot_dimension_numbers<[1], [0], [0], [1], [0, 0, 1, 1], [], []>} : vector<128x8xbf16>, vector<8x8xbf16>, vector<128x8xf32> -> vector<128x8xf32>
    %259 = arith.addf %252, %258 : vector<128x8xf32>
    %c0_192 = arith.constant 0 : index
    %c2_193 = arith.constant 2 : index
    %c2_194 = arith.constant 2 : index
    %c0_195 = arith.constant 0 : index
    %260 = vector.load %arg6[%c0_192, %c2_193, %c2_194, %c0_195] : memref<2x10x10x8xf32, #tpu.memory_space<vmem>>, vector<2x8x8x8xf32>
    %261 = vector.shape_cast %260 : vector<2x8x8x8xf32> to vector<128x8xf32>
    %262 = arith.truncf %261 : vector<128x8xf32> to vector<128x8xbf16>
    %263 = vector.extract_strided_slice %200 {offsets = [8, 0, 0], sizes = [1, 8, 8], strides = [1, 1, 1]} : vector<9x8x8xbf16> to vector<1x8x8xbf16>
    %264 = vector.shape_cast %263 : vector<1x8x8xbf16> to vector<8x8xbf16>
    %cst_196 = arith.constant dense<0.000000e+00> : vector<128x8xf32>
    %265 = tpu.matmul %262, %264, %cst_196 {dimension_numbers = #tpu.dot_dimension_numbers<[1], [0], [0], [1], [0, 0, 1, 1], [], []>} : vector<128x8xbf16>, vector<8x8xbf16>, vector<128x8xf32> -> vector<128x8xf32>
    %266 = arith.addf %259, %265 : vector<128x8xf32>
    %267 = vector.extract_strided_slice %0 {offsets = [4, 0, 0], sizes = [1, 1, 8], strides = [1, 1, 1]} : vector<5x1x8xf32> to vector<1x1x8xf32>
    %268 = vector.shape_cast %267 : vector<1x1x8xf32> to vector<1x8xf32>
    %269 = vector.broadcast %268 : vector<1x8xf32> to vector<128x8xf32>
    %270 = arith.addf %266, %269 : vector<128x8xf32>
    %271 = arith.addf %270, %124 : vector<128x8xf32>
    %cst_197 = arith.constant 0.000000e+00 : f32
    %272 = vector.broadcast %cst_197 : f32 to vector<128x8xf32>
    %273 = arith.maximumf %271, %272 : vector<128x8xf32>
    %274 = tpu.transpose %273, [1, 0] : vector<128x8xf32> -> vector<8x128xf32>
    %c0_198 = arith.constant 0 : index
    %c0_199 = arith.constant 0 : index
    %c0_200 = arith.constant 0 : index
    %275 = vector.load %arg5[%c0_198, %c0_199, %c0_200] : memref<1x8x128xf32, #tpu.memory_space<vmem>>, vector<1x8x128xf32>
    %276 = vector.shape_cast %275 : vector<1x8x128xf32> to vector<8x128xf32>
    %277 = vector.shape_cast %274 : vector<8x128xf32> to vector<1x8x128xf32>
    tpu.vector_store %arg5[%c0_198, %c0_199, %c0_200], %277 {strides = array<i32>} : memref<1x8x128xf32, #tpu.memory_space<vmem>>, vector<1x8x128xf32>,
    return
  }
  func.func @transform_0(%arg0: i32) -> (i32, i32, i32, i32) {
    %c0_i32 = arith.constant 0 : i32
    %c0_i32_0 = arith.constant 0 : i32
    %c0_i32_1 = arith.constant 0 : i32
    %c0_i32_2 = arith.constant 0 : i32
    return %arg0, %c0_i32, %c0_i32_0, %c0_i32_1 : i32, i32, i32, i32
  }
  func.func @transform_1(%arg0: i32) -> (i32, i32, i32) {
    %c0_i32 = arith.constant 0 : i32
    %c0_i32_0 = arith.constant 0 : i32
    %c0_i32_1 = arith.constant 0 : i32
    %c0_i32_2 = arith.constant 0 : i32
    return %c0_i32, %c0_i32_0, %c0_i32_1 : i32, i32, i32
  }
  func.func @transform_2(%arg0: i32) -> (i32, i32, i32, i32) {
    %c0_i32 = arith.constant 0 : i32
    %c0_i32_0 = arith.constant 0 : i32
    %c0_i32_1 = arith.constant 0 : i32
    %c0_i32_2 = arith.constant 0 : i32
    %c0_i32_3 = arith.constant 0 : i32
    return %c0_i32, %c0_i32_0, %c0_i32_1, %c0_i32_2 : i32, i32, i32, i32
  }
  func.func @transform_3(%arg0: i32) -> (i32, i32, i32) {
    %c0_i32 = arith.constant 0 : i32
    %c0_i32_0 = arith.constant 0 : i32
    %c0_i32_1 = arith.constant 0 : i32
    %c0_i32_2 = arith.constant 0 : i32
    return %c0_i32, %c0_i32_0, %c0_i32_1 : i32, i32, i32
  }
  func.func @transform_4(%arg0: i32) -> (i32, i32, i32) {
    %c0_i32 = arith.constant 0 : i32
    %c0_i32_0 = arith.constant 0 : i32
    %c0_i32_1 = arith.constant 0 : i32
    return %arg0, %c0_i32, %c0_i32_0 : i32, i32, i32
  }
}

</mosaic_0001>

<llo_original>
// kernel: resblock_c.1
$region0: #{resblock_c.1}
  #allocation0 [shape = 'u32[]', space=smem, size = 0x4, offset = 0x4, fixed_abs, tag = 'smem constant byte address 0x4 - core index']
  #allocation1 [shape = 'u32[72,128]{1,0:T(1,128)}', space=vmem, size = 0x9000, scoped, tag = 'internal scratch']
  #allocation2 [shape = 'f32[2,10,10,8]{3,2,1,0:T(8,128)}', space=vmem, size = 0x28000, scoped, tag = 'scratch operand']
  %s0 = inlined_call_operand.vmem [shape: f32[2,9,9,16], index: 0, kind: input, shape index: {}]
  %s1 = inlined_call_operand.vmem [shape: bf16[4,16,16], index: 1, kind: input, shape index: {}]
  %s2 = inlined_call_operand.vmem [shape: bf16[3,9,8,8], index: 2, kind: input, shape index: {}]
  %s3 = inlined_call_operand.vmem [shape: f32[5,1,8], index: 3, kind: input, shape index: {}]
  %s4 = inlined_call_operand.vmem [shape: f32[1,8,128], index: 4, kind: output, shape index: {}]
  %s5 = sld [smem:[#allocation0]]
  $region26: #{resblock_c.1} parent=0
    _
  %s7 = ssub.s32 1, %s5
  %s8 = scalar_select 0, %s7, %s5
  // Predicated region
  $region2: #{resblock_c.1} parent=0 // pred_check
    _
  $region3: #{resblock_c.1} parent=0 // pred_check_branch
    %10 = sbr.rel (0) target = $region5
  $region4: #{resblock_c.1} parent=0 // pred_region
    _
  $region5: #{resblock_c.1} parent=0 // pred_fallthru
    _
  // Predicated region
  $region6: #{resblock_c.1} parent=0 // pred_check
    _
  $region7: #{resblock_c.1} parent=0 // pred_check_branch
    %12 = sbr.rel (0) target = $region9
  $region8: #{resblock_c.1} parent=0 // pred_region
    _
  $region9: #{resblock_c.1} parent=0 // pred_fallthru
    _
  // Predicated region
  $region10: #{resblock_c.1} parent=0 // pred_check
    _
  $region11: #{resblock_c.1} parent=0 // pred_check_branch
    %14 = sbr.rel (0) target = $region13
  $region12: #{resblock_c.1} parent=0 // pred_region
    _
  $region13: #{resblock_c.1} parent=0 // pred_fallthru
    _
  // Predicated region
  $region14: #{resblock_c.1} parent=0 // pred_check
    _
  $region15: #{resblock_c.1} parent=0 // pred_check_branch
    %16 = sbr.rel (0) target = $region17
  $region16: #{resblock_c.1} parent=0 // pred_region
    _
  $region17: #{resblock_c.1} parent=0 // pred_fallthru
    _
  %v18 = vld [vmem:[%s3] sm:$0x1]
  %v19 = vld [vmem:[%s3 + $0x1] sm:$0x1]
  %v20 = vld [vmem:[%s3 + $0x2] sm:$0x1]
  %v21 = vld [vmem:[%s3 + $0x3] sm:$0x1]
  %v22 = vld [vmem:[%s3 + $0x4] sm:$0x1]
  %v23 = vld [vmem:[%s1] sm:$0xf]
  %v24 = vld [vmem:[%s1 + $0x4] sm:$0xf]
  %v25 = vld [vmem:[%s1 + $0x8] sm:$0xf]
  %v26 = vld [vmem:[%s1 + $0xc] sm:$0xf]
  %v27 = vld [vmem:[%s1 + $0x10] sm:$0xf]
  %v28 = vld [vmem:[%s1 + $0x14] sm:$0xf]
  %v29 = vld [vmem:[%s1 + $0x18] sm:$0xf]
  %v30 = vld [vmem:[%s1 + $0x1c] sm:$0xf]
  %v31 = vld [vmem:[%s2] sm:$0xf]
  %v32 = vld [vmem:[%s2 + $0x4] sm:$0xf]
  %v33 = vld [vmem:[%s2 + $0x8] sm:$0xf]
  %v34 = vld [vmem:[%s2 + $0xc] sm:$0xf]
  %v35 = vld [vmem:[%s2 + $0x10] sm:$0xf]
  %v36 = vld [vmem:[%s2 + $0x14] sm:$0xf]
  %v37 = vld [vmem:[%s2 + $0x18] sm:$0xf]
  %v38 = vld [vmem:[%s2 + $0x1c] sm:$0xf]
  %v39 = vld [vmem:[%s2 + $0x20] sm:$0xf]
  %v40 = vld [vmem:[%s2 + $0x24] sm:$0xf]
  %v41 = vld [vmem:[%s2 + $0x28] sm:$0xf]
  %v42 = vld [vmem:[%s2 + $0x2c] sm:$0xf]
  %v43 = vld [vmem:[%s2 + $0x30] sm:$0xf]
  %v44 = vld [vmem:[%s2 + $0x34] sm:$0xf]
  %v45 = vld [vmem:[%s2 + $0x38] sm:$0xf]
  %v46 = vld [vmem:[%s2 + $0x3c] sm:$0xf]
  %v47 = vld [vmem:[%s2 + $0x40] sm:$0xf]
  %v48 = vld [vmem:[%s2 + $0x44] sm:$0xf]
  %v49 = vld [vmem:[%s2 + $0x48] sm:$0xf]
  %v50 = vld [vmem:[%s2 + $0x4c] sm:$0xf]
  %v51 = vld [vmem:[%s2 + $0x50] sm:$0xf]
  %v52 = vld [vmem:[%s2 + $0x54] sm:$0xf]
  %v53 = vld [vmem:[%s2 + $0x58] sm:$0xf]
  %v54 = vld [vmem:[%s2 + $0x5c] sm:$0xf]
  %v55 = vld [vmem:[%s2 + $0x60] sm:$0xf]
  %v56 = vld [vmem:[%s2 + $0x64] sm:$0xf]
  %v57 = vld [vmem:[%s2 + $0x68] sm:$0xf]
  %vm58 = vcmask 64512
  %59 = vst.msk [vmem:[#allocation2] sm:$0xff] %vm58, 0.0
  %vm60 = vcmask 58368
  %61 = vst.msk [vmem:[#allocation2 + $0x8] sm:$0x3] %vm60, 0.0
  %62 = vst.msk [vmem:[#allocation2 + $0xa0] sm:$0xff] %vm58, 0.0
  %63 = vst.msk [vmem:[#allocation2 + $0xa8] sm:$0x3] %vm60, 0.0
  %s64 = scalar_lea.vmem [#allocation2], 144
  %65 = vst.msk [vmem:[%s64] sm:$0xff] %vm58, 0.0
  %66 = vst.msk [vmem:[%s64 + $0x8] sm:$0x3] %vm60, 0.0
  %67 = vst.msk [vmem:[%s64 + $0xa0] sm:$0xff] %vm58, 0.0
  %68 = vst.msk [vmem:[%s64 + $0xa8] sm:$0x3] %vm60, 0.0
  %vm69 = vcmask 57344
  %70 = vst.msk [vmem:[#allocation2] sm:$0x1] %vm69, 0.0
  %71 = vst.msk [vmem:[#allocation2 + $0x10] sm:$0x1] %vm69, 0.0
  %72 = vst.msk [vmem:[#allocation2 + $0x20] sm:$0x1] %vm69, 0.0
  %73 = vst.msk [vmem:[#allocation2 + $0x30] sm:$0x1] %vm69, 0.0
  %74 = vst.msk [vmem:[#allocation2 + $0x40] sm:$0x1] %vm69, 0.0
  %75 = vst.msk [vmem:[#allocation2 + $0x50] sm:$0x1] %vm69, 0.0
  %76 = vst.msk [vmem:[#allocation2 + $0x60] sm:$0x1] %vm69, 0.0
  %77 = vst.msk [vmem:[#allocation2 + $0x70] sm:$0x1] %vm69, 0.0
  %78 = vst.msk [vmem:[#allocation2 + $0x80] sm:$0x1] %vm69, 0.0
  %79 = vst.msk [vmem:[#allocation2 + $0x90] sm:$0x1] %vm69, 0.0
  %80 = vst.msk [vmem:[#allocation2 + $0xa0] sm:$0x1] %vm69, 0.0
  %81 = vst.msk [vmem:[#allocation2 + $0xb0] sm:$0x1] %vm69, 0.0
  %82 = vst.msk [vmem:[#allocation2 + $0xc0] sm:$0x1] %vm69, 0.0
  %83 = vst.msk [vmem:[#allocation2 + $0xd0] sm:$0x1] %vm69, 0.0
  %84 = vst.msk [vmem:[#allocation2 + $0xe0] sm:$0x1] %vm69, 0.0
  %85 = vst.msk [vmem:[#allocation2 + $0xf0] sm:$0x1] %vm69, 0.0
  %86 = vst.msk [vmem:[#allocation2 + $0x100] sm:$0x1] %vm69, 0.0
  %87 = vst.msk [vmem:[#allocation2 + $0x110] sm:$0x1] %vm69, 0.0
  %88 = vst.msk [vmem:[#allocation2 + $0x120] sm:$0x1] %vm69, 0.0
  %89 = vst.msk [vmem:[#allocation2 + $0x130] sm:$0x1] %vm69, 0.0
  %90 = vst.msk [vmem:[#allocation2 + $0x9] sm:$0x1] %vm69, 0.0
  %91 = vst.msk [vmem:[#allocation2 + $0x19] sm:$0x1] %vm69, 0.0
  %92 = vst.msk [vmem:[#allocation2 + $0x29] sm:$0x1] %vm69, 0.0
  %93 = vst.msk [vmem:[#allocation2 + $0x39] sm:$0x1] %vm69, 0.0
  %94 = vst.msk [vmem:[#allocation2 + $0x49] sm:$0x1] %vm69, 0.0
  %95 = vst.msk [vmem:[#allocation2 + $0x59] sm:$0x1] %vm69, 0.0
  %96 = vst.msk [vmem:[#allocation2 + $0x69] sm:$0x1] %vm69, 0.0
  %97 = vst.msk [vmem:[#allocation2 + $0x79] sm:$0x1] %vm69, 0.0
  %98 = vst.msk [vmem:[#allocation2 + $0x89] sm:$0x1] %vm69, 0.0
  %99 = vst.msk [vmem:[#allocation2 + $0x99] sm:$0x1] %vm69, 0.0
  %100 = vst.msk [vmem:[#allocation2 + $0xa9] sm:$0x1] %vm69, 0.0
  %101 = vst.msk [vmem:[#allocation2 + $0xb9] sm:$0x1] %vm69, 0.0
  %102 = vst.msk [vmem:[#allocation2 + $0xc9] sm:$0x1] %vm69, 0.0
  %103 = vst.msk [vmem:[#allocation2 + $0xd9] sm:$0x1] %vm69, 0.0
  %104 = vst.msk [vmem:[#allocation2 + $0xe9] sm:$0x1] %vm69, 0.0
  %105 = vst.msk [vmem:[#allocation2 + $0xf9] sm:$0x1] %vm69, 0.0
  %106 = vst.msk [vmem:[#allocation2 + $0x109] sm:$0x1] %vm69, 0.0
  %107 = vst.msk [vmem:[#allocation2 + $0x119] sm:$0x1] %vm69, 0.0
  %108 = vst.msk [vmem:[#allocation2 + $0x129] sm:$0x1] %vm69, 0.0
  %109 = vst.msk [vmem:[#allocation2 + $0x139] sm:$0x1] %vm69, 0.0
  %v110 = vld [vmem:[%s0] sm:$0xff]
  %v111 = vld [vmem:[%s0 + $0x10] sm:$0xff]
  %v112 = vld [vmem:[%s0 + $0x20] sm:$0xff]
  %v113 = vld [vmem:[%s0 + $0x30] sm:$0xff]
  %v114 = vld [vmem:[%s0 + $0x40] sm:$0xff]
  %v115 = vld [vmem:[%s0 + $0x50] sm:$0xff]
  %v116 = vld [vmem:[%s0 + $0x60] sm:$0xff]
  %v117 = vld [vmem:[%s0 + $0x70] sm:$0xff]
  %v118 = vld [vmem:[%s0 + $0x90] sm:$0xff]
  %v119 = vld [vmem:[%s0 + $0xa0] sm:$0xff]
  %v120 = vld [vmem:[%s0 + $0xb0] sm:$0xff]
  %v121 = vld [vmem:[%s0 + $0xc0] sm:$0xff]
  %v122 = vld [vmem:[%s0 + $0xd0] sm:$0xff]
  %v123 = vld [vmem:[%s0 + $0xe0] sm:$0xff]
  %v124 = vld [vmem:[%s0 + $0xf0] sm:$0xff]
  %v125 = vld [vmem:[%s0 + $0x100] sm:$0xff]
  %v126 = vpack.c.bf16 %v111, %v110
  %v127 = vpack.c.bf16 %v113, %v112
  %v128 = vpack.c.bf16 %v115, %v114
  %v129 = vpack.c.bf16 %v117, %v116
  %v130 = vpack.c.bf16 %v119, %v118
  %v131 = vpack.c.bf16 %v121, %v120
  %v132 = vpack.c.bf16 %v123, %v122
  %v133 = vpack.c.bf16 %v125, %v124
  %v134 = vld [vmem:[%s0 + $0x1] sm:$0xff]
  %v135 = vld [vmem:[%s0 + $0x11] sm:$0xff]
  %v136 = vld [vmem:[%s0 + $0x21] sm:$0xff]
  %v137 = vld [vmem:[%s0 + $0x31] sm:$0xff]
  %v138 = vld [vmem:[%s0 + $0x41] sm:$0xff]
  %v139 = vld [vmem:[%s0 + $0x51] sm:$0xff]
  %v140 = vld [vmem:[%s0 + $0x61] sm:$0xff]
  %v141 = vld [vmem:[%s0 + $0x71] sm:$0xff]
  %v142 = vld [vmem:[%s0 + $0x91] sm:$0xff]
  %v143 = vld [vmem:[%s0 + $0xa1] sm:$0xff]
  %v144 = vld [vmem:[%s0 + $0xb1] sm:$0xff]
  %v145 = vld [vmem:[%s0 + $0xc1] sm:$0xff]
  %v146 = vld [vmem:[%s0 + $0xd1] sm:$0xff]
  %v147 = vld [vmem:[%s0 + $0xe1] sm:$0xff]
  %v148 = vld [vmem:[%s0 + $0xf1] sm:$0xff]
  %v149 = vld [vmem:[%s0 + $0x101] sm:$0xff]
  %v150 = vpack.c.bf16 %v135, %v134
  %v151 = vpack.c.bf16 %v137, %v136
  %v152 = vpack.c.bf16 %v139, %v138
  %v153 = vpack.c.bf16 %v141, %v140
  %v154 = vpack.c.bf16 %v143, %v142
  %v155 = vpack.c.bf16 %v145, %v144
  %v156 = vpack.c.bf16 %v147, %v146
  %v157 = vpack.c.bf16 %v149, %v148
  %v160 = vunpack.c.l.b16 %v25
  %v161 = vunpack.c.l.b16 %v26
  %v162 = vpack.c.b16 %v161, %v160
  %vm164 = vcmask 130048
  %v166 = vsel %vm164, %v150, 0
  %v169 = vsel %vm164, %v151, 0
  %v172 = vsel %vm164, %v152, 0
  %v175 = vsel %vm164, %v153, 0
  %v178 = vsel %vm164, %v154, 0
  %v181 = vsel %vm164, %v155, 0
  %v184 = vsel %vm164, %v156, 0
  %v187 = vsel %vm164, %v157, 0
  %189 = vmatpush.bf16.msra.mxu0 0
  %190 = vmatpush.bf16.msra.mxu0 0
  %191 = vmatpush.bf16.msra.mxu0 0
  %192 = vmatpush.bf16.msra.mxu0 0
  %193 = vmatpush.bf16.msra.mxu0 0
  %194 = vmatpush.bf16.msra.mxu0 0
  %195 = vmatpush.bf16.msra.mxu0 0
  %196 = vmatpush.bf16.msra.mxu0 %v162
  %197 = vmatmul.bf16.gmra.mxu0 %v166
  %v198 = vpop.f32.mrf.mxu0
  %v199 = vadd.f32 0.0, %v198
  %v200 = vpop.f32.mrf.mxu0
  %v201 = vadd.f32 0.0, %v200
  %202 = vmatmul.bf16.gmra.mxu0 %v169
  %v203 = vpop.f32.mrf.mxu0
  %v204 = vadd.f32 0.0, %v203
  %v205 = vpop.f32.mrf.mxu0
  %v206 = vadd.f32 0.0, %v205
  %207 = vmatmul.bf16.gmra.mxu0 %v172
  %v208 = vpop.f32.mrf.mxu0
  %v209 = vadd.f32 0.0, %v208
  %v210 = vpop.f32.mrf.mxu0
  %v211 = vadd.f32 0.0, %v210
  %212 = vmatmul.bf16.gmra.mxu0 %v175
  %v213 = vpop.f32.mrf.mxu0
  %v214 = vadd.f32 0.0, %v213
  %v215 = vpop.f32.mrf.mxu0
  %v216 = vadd.f32 0.0, %v215
  %217 = vmatmul.bf16.gmra.mxu0 %v178
  %v218 = vpop.f32.mrf.mxu0
  %v219 = vadd.f32 0.0, %v218
  %v220 = vpop.f32.mrf.mxu0
  %v221 = vadd.f32 0.0, %v220
  %222 = vmatmul.bf16.gmra.mxu0 %v181
  %v223 = vpop.f32.mrf.mxu0
  %v224 = vadd.f32 0.0, %v223
  %v225 = vpop.f32.mrf.mxu0
  %v226 = vadd.f32 0.0, %v225
  %227 = vmatmul.bf16.gmra.mxu0 %v184
  %v228 = vpop.f32.mrf.mxu0
  %v229 = vadd.f32 0.0, %v228
  %v230 = vpop.f32.mrf.mxu0
  %v231 = vadd.f32 0.0, %v230
  %232 = vmatmul.bf16.gmra.mxu0 %v187
  %v233 = vpop.f32.mrf.mxu0
  %v234 = vadd.f32 0.0, %v233
  %v235 = vpop.f32.mrf.mxu0
  %v236 = vadd.f32 0.0, %v235
  %237 = vdwg.mxu0
  %v240 = vunpack.c.l.b16 %v23
  %v241 = vunpack.c.l.b16 %v24
  %v242 = vpack.c.b16 %v241, %v240
  %v245 = vsel %vm164, %v126, 0
  %v248 = vsel %vm164, %v127, 0
  %v251 = vsel %vm164, %v128, 0
  %v254 = vsel %vm164, %v129, 0
  %v257 = vsel %vm164, %v130, 0
  %v260 = vsel %vm164, %v131, 0
  %v263 = vsel %vm164, %v132, 0
  %v266 = vsel %vm164, %v133, 0
  %268 = vmatpush.bf16.msra.mxu0 0
  %269 = vmatpush.bf16.msra.mxu0 0
  %270 = vmatpush.bf16.msra.mxu0 0
  %271 = vmatpush.bf16.msra.mxu0 0
  %272 = vmatpush.bf16.msra.mxu0 0
  %273 = vmatpush.bf16.msra.mxu0 0
  %274 = vmatpush.bf16.msra.mxu0 0
  %275 = vmatpush.bf16.msra.mxu0 %v242
  %276 = vmatmul.bf16.gmra.mxu0 %v245
  %v277 = vpop.f32.mrf.mxu0
  %v278 = vadd.f32 %v199, %v277
  %v279 = vpop.f32.mrf.mxu0
  %v280 = vadd.f32 %v201, %v279
  %281 = vmatmul.bf16.gmra.mxu0 %v248
  %v282 = vpop.f32.mrf.mxu0
  %v283 = vadd.f32 %v204, %v282
  %v284 = vpop.f32.mrf.mxu0
  %v285 = vadd.f32 %v206, %v284
  %286 = vmatmul.bf16.gmra.mxu0 %v251
  %v287 = vpop.f32.mrf.mxu0
  %v288 = vadd.f32 %v209, %v287
  %v289 = vpop.f32.mrf.mxu0
  %v290 = vadd.f32 %v211, %v289
  %291 = vmatmul.bf16.gmra.mxu0 %v254
  %v292 = vpop.f32.mrf.mxu0
  %v293 = vadd.f32 %v214, %v292
  %v294 = vpop.f32.mrf.mxu0
  %v295 = vadd.f32 %v216, %v294
  %296 = vmatmul.bf16.gmra.mxu0 %v257
  %v297 = vpop.f32.mrf.mxu0
  %v298 = vadd.f32 %v219, %v297
  %v299 = vpop.f32.mrf.mxu0
  %v300 = vadd.f32 %v221, %v299
  %301 = vmatmul.bf16.gmra.mxu0 %v260
  %v302 = vpop.f32.mrf.mxu0
  %v303 = vadd.f32 %v224, %v302
  %v304 = vpop.f32.mrf.mxu0
  %v305 = vadd.f32 %v226, %v304
  %306 = vmatmul.bf16.gmra.mxu0 %v263
  %v307 = vpop.f32.mrf.mxu0
  %v308 = vadd.f32 %v229, %v307
  %v309 = vpop.f32.mrf.mxu0
  %v310 = vadd.f32 %v231, %v309
  %311 = vmatmul.bf16.gmra.mxu0 %v266
  %v312 = vpop.f32.mrf.mxu0
  %v313 = vadd.f32 %v234, %v312
  %v314 = vpop.f32.mrf.mxu0
  %v315 = vadd.f32 %v236, %v314
  %316 = vdwg.mxu0
  %s317 = scalar_lea.vmem %s0, 16
  %v318 = vld [vmem:[%s317] sm:$0xff]
  %v319 = vld [vmem:[%s317 + $0x10] sm:$0xff]
  %v320 = vld [vmem:[%s317 + $0x20] sm:$0xff]
  %v321 = vld [vmem:[%s317 + $0x30] sm:$0xff]
  %v322 = vld [vmem:[%s317 + $0x40] sm:$0xff]
  %v323 = vld [vmem:[%s317 + $0x50] sm:$0xff]
  %v324 = vld [vmem:[%s317 + $0x60] sm:$0xff]
  %v325 = vld [vmem:[%s317 + $0x70] sm:$0xff]
  %v326 = vld [vmem:[%s317 + $0x90] sm:$0xff]
  %v327 = vld [vmem:[%s317 + $0xa0] sm:$0xff]
  %v328 = vld [vmem:[%s317 + $0xb0] sm:$0xff]
  %v329 = vld [vmem:[%s317 + $0xc0] sm:$0xff]
  %v330 = vld [vmem:[%s317 + $0xd0] sm:$0xff]
  %v331 = vld [vmem:[%s317 + $0xe0] sm:$0xff]
  %v332 = vld [vmem:[%s317 + $0xf0] sm:$0xff]
  %v333 = vld [vmem:[%s317 + $0x100] sm:$0xff]
  %v334 = vpack.c.bf16 %v319, %v318
  %v335 = vpack.c.bf16 %v321, %v320
  %v336 = vpack.c.bf16 %v323, %v322
  %v337 = vpack.c.bf16 %v325, %v324
  %v338 = vpack.c.bf16 %v327, %v326
  %v339 = vpack.c.bf16 %v329, %v328
  %v340 = vpack.c.bf16 %v331, %v330
  %v341 = vpack.c.bf16 %v333, %v332
  %v344 = vunpack.c.l.b16 %v27
  %v345 = vunpack.c.l.b16 %v28
  %v346 = vpack.c.b16 %v345, %v344
  %v349 = vsel %vm164, %v334, 0
  %v352 = vsel %vm164, %v335, 0
  %v355 = vsel %vm164, %v336, 0
  %v358 = vsel %vm164, %v337, 0
  %v361 = vsel %vm164, %v338, 0
  %v364 = vsel %vm164, %v339, 0
  %v367 = vsel %vm164, %v340, 0
  %v370 = vsel %vm164, %v341, 0
  %372 = vmatpush.bf16.msra.mxu0 0
  %373 = vmatpush.bf16.msra.mxu0 0
  %374 = vmatpush.bf16.msra.mxu0 0
  %375 = vmatpush.bf16.msra.mxu0 0
  %376 = vmatpush.bf16.msra.mxu0 0
  %377 = vmatpush.bf16.msra.mxu0 0
  %378 = vmatpush.bf16.msra.mxu0 0
  %379 = vmatpush.bf16.msra.mxu0 %v346
  %380 = vmatmul.bf16.gmra.mxu0 %v349
  %v381 = vpop.f32.mrf.mxu0
  %v382 = vadd.f32 0.0, %v381
  %v383 = vpop.f32.mrf.mxu0
  %v384 = vadd.f32 0.0, %v383
  %385 = vmatmul.bf16.gmra.mxu0 %v352
  %v386 = vpop.f32.mrf.mxu0
  %v387 = vadd.f32 0.0, %v386
  %v388 = vpop.f32.mrf.mxu0
  %v389 = vadd.f32 0.0, %v388
  %390 = vmatmul.bf16.gmra.mxu0 %v355
  %v391 = vpop.f32.mrf.mxu0
  %v392 = vadd.f32 0.0, %v391
  %v393 = vpop.f32.mrf.mxu0
  %v394 = vadd.f32 0.0, %v393
  %395 = vmatmul.bf16.gmra.mxu0 %v358
  %v396 = vpop.f32.mrf.mxu0
  %v397 = vadd.f32 0.0, %v396
  %v398 = vpop.f32.mrf.mxu0
  %v399 = vadd.f32 0.0, %v398
  %400 = vmatmul.bf16.gmra.mxu0 %v361
  %v401 = vpop.f32.mrf.mxu0
  %v402 = vadd.f32 0.0, %v401
  %v403 = vpop.f32.mrf.mxu0
  %v404 = vadd.f32 0.0, %v403
  %405 = vmatmul.bf16.gmra.mxu0 %v364
  %v406 = vpop.f32.mrf.mxu0
  %v407 = vadd.f32 0.0, %v406
  %v408 = vpop.f32.mrf.mxu0
  %v409 = vadd.f32 0.0, %v408
  %410 = vmatmul.bf16.gmra.mxu0 %v367
  %v411 = vpop.f32.mrf.mxu0
  %v412 = vadd.f32 0.0, %v411
  %v413 = vpop.f32.mrf.mxu0
  %v414 = vadd.f32 0.0, %v413
  %415 = vmatmul.bf16.gmra.mxu0 %v370
  %v416 = vpop.f32.mrf.mxu0
  %v417 = vadd.f32 0.0, %v416
  %v418 = vpop.f32.mrf.mxu0
  %v419 = vadd.f32 0.0, %v418
  %420 = vdwg.mxu0
  %v421 = vadd.f32 %v278, %v382
  %v422 = vadd.f32 %v280, %v384
  %v423 = vadd.f32 %v283, %v387
  %v424 = vadd.f32 %v285, %v389
  %v425 = vadd.f32 %v288, %v392
  %v426 = vadd.f32 %v290, %v394
  %v427 = vadd.f32 %v293, %v397
  %v428 = vadd.f32 %v295, %v399
  %v429 = vadd.f32 %v298, %v402
  %v430 = vadd.f32 %v300, %v404
  %v431 = vadd.f32 %v303, %v407
  %v432 = vadd.f32 %v305, %v409
  %v433 = vadd.f32 %v308, %v412
  %v434 = vadd.f32 %v310, %v414
  %v435 = vadd.f32 %v313, %v417
  %v436 = vadd.f32 %v315, %v419
  %v437 = vld [vmem:[%s317 + $0x1] sm:$0xff]
  %v438 = vld [vmem:[%s317 + $0x11] sm:$0xff]
  %v439 = vld [vmem:[%s317 + $0x21] sm:$0xff]
  %v440 = vld [vmem:[%s317 + $0x31] sm:$0xff]
  %v441 = vld [vmem:[%s317 + $0x41] sm:$0xff]
  %v442 = vld [vmem:[%s317 + $0x51] sm:$0xff]
  %v443 = vld [vmem:[%s317 + $0x61] sm:$0xff]
  %v444 = vld [vmem:[%s317 + $0x71] sm:$0xff]
  %v445 = vld [vmem:[%s317 + $0x91] sm:$0xff]
  %v446 = vld [vmem:[%s317 + $0xa1] sm:$0xff]
  %v447 = vld [vmem:[%s317 + $0xb1] sm:$0xff]
  %v448 = vld [vmem:[%s317 + $0xc1] sm:$0xff]
  %v449 = vld [vmem:[%s317 + $0xd1] sm:$0xff]
  %v450 = vld [vmem:[%s317 + $0xe1] sm:$0xff]
  %v451 = vld [vmem:[%s317 + $0xf1] sm:$0xff]
  %v452 = vld [vmem:[%s317 + $0x101] sm:$0xff]
  %v453 = vpack.c.bf16 %v438, %v437
  %v454 = vpack.c.bf16 %v440, %v439
  %v455 = vpack.c.bf16 %v442, %v441
  %v456 = vpack.c.bf16 %v444, %v443
  %v457 = vpack.c.bf16 %v446, %v445
  %v458 = vpack.c.bf16 %v448, %v447
  %v459 = vpack.c.bf16 %v450, %v449
  %v460 = vpack.c.bf16 %v452, %v451
  %v463 = vunpack.c.l.b16 %v29
  %v464 = vunpack.c.l.b16 %v30
  %v465 = vpack.c.b16 %v464, %v463
  %v468 = vsel %vm164, %v453, 0
  %v471 = vsel %vm164, %v454, 0
  %v474 = vsel %vm164, %v455, 0
  %v477 = vsel %vm164, %v456, 0
  %v480 = vsel %vm164, %v457, 0
  %v483 = vsel %vm164, %v458, 0
  %v486 = vsel %vm164, %v459, 0
  %v489 = vsel %vm164, %v460, 0
  %491 = vmatpush.bf16.msra.mxu0 0
  %492 = vmatpush.bf16.msra.mxu0 0
  %493 = vmatpush.bf16.msra.mxu0 0
  %494 = vmatpush.bf16.msra.mxu0 0
  %495 = vmatpush.bf16.msra.mxu0 0
  %496 = vmatpush.bf16.msra.mxu0 0
  %497 = vmatpush.bf16.msra.mxu0 0
  %498 = vmatpush.bf16.msra.mxu0 %v465
  %499 = vmatmul.bf16.gmra.mxu0 %v468
  %v500 = vpop.f32.mrf.mxu0
  %v501 = vadd.f32 0.0, %v500
  %v502 = vpop.f32.mrf.mxu0
  %v503 = vadd.f32 0.0, %v502
  %504 = vmatmul.bf16.gmra.mxu0 %v471
  %v505 = vpop.f32.mrf.mxu0
  %v506 = vadd.f32 0.0, %v505
  %v507 = vpop.f32.mrf.mxu0
  %v508 = vadd.f32 0.0, %v507
  %509 = vmatmul.bf16.gmra.mxu0 %v474
  %v510 = vpop.f32.mrf.mxu0
  %v511 = vadd.f32 0.0, %v510
  %v512 = vpop.f32.mrf.mxu0
  %v513 = vadd.f32 0.0, %v512
  %514 = vmatmul.bf16.gmra.mxu0 %v477
  %v515 = vpop.f32.mrf.mxu0
  %v516 = vadd.f32 0.0, %v515
  %v517 = vpop.f32.mrf.mxu0
  %v518 = vadd.f32 0.0, %v517
  %519 = vmatmul.bf16.gmra.mxu0 %v480
  %v520 = vpop.f32.mrf.mxu0
  %v521 = vadd.f32 0.0, %v520
  %v522 = vpop.f32.mrf.mxu0
  %v523 = vadd.f32 0.0, %v522
  %524 = vmatmul.bf16.gmra.mxu0 %v483
  %v525 = vpop.f32.mrf.mxu0
  %v526 = vadd.f32 0.0, %v525
  %v527 = vpop.f32.mrf.mxu0
  %v528 = vadd.f32 0.0, %v527
  %529 = vmatmul.bf16.gmra.mxu0 %v486
  %v530 = vpop.f32.mrf.mxu0
  %v531 = vadd.f32 0.0, %v530
  %v532 = vpop.f32.mrf.mxu0
  %v533 = vadd.f32 0.0, %v532
  %534 = vmatmul.bf16.gmra.mxu0 %v489
  %v535 = vpop.f32.mrf.mxu0
  %v536 = vadd.f32 0.0, %v535
  %v537 = vpop.f32.mrf.mxu0
  %v538 = vadd.f32 0.0, %v537
  %539 = vdwg.mxu0
  %v540 = vadd.f32 %v421, %v501
  %v541 = vadd.f32 %v422, %v503
  %v542 = vadd.f32 %v423, %v506
  %v543 = vadd.f32 %v424, %v508
  %v544 = vadd.f32 %v425, %v511
  %v545 = vadd.f32 %v426, %v513
  %v546 = vadd.f32 %v427, %v516
  %v547 = vadd.f32 %v428, %v518
  %v548 = vadd.f32 %v429, %v521
  %v549 = vadd.f32 %v430, %v523
  %v550 = vadd.f32 %v431, %v526
  %v551 = vadd.f32 %v432, %v528
  %v552 = vadd.f32 %v433, %v531
  %v553 = vadd.f32 %v434, %v533
  %v554 = vadd.f32 %v435, %v536
  %v555 = vadd.f32 %v436, %v538
  %v557 = vperm.slane %v18, 0
  %v559 = vadd.f32 %v540, %v557
  %v560 = vadd.f32 %v541, %v557
  %v561 = vadd.f32 %v542, %v557
  %v562 = vadd.f32 %v543, %v557
  %v563 = vadd.f32 %v544, %v557
  %v564 = vadd.f32 %v545, %v557
  %v565 = vadd.f32 %v546, %v557
  %v566 = vadd.f32 %v547, %v557
  %v567 = vadd.f32 %v548, %v557
  %v568 = vadd.f32 %v549, %v557
  %v569 = vadd.f32 %v550, %v557
  %v570 = vadd.f32 %v551, %v557
  %v571 = vadd.f32 %v552, %v557
  %v572 = vadd.f32 %v553, %v557
  %v573 = vadd.f32 %v554, %v557
  %v574 = vadd.f32 %v555, %v557
  %v575 = vmax.f32 %v559, 0.0
  %v576 = vmax.f32 %v560, 0.0
  %v577 = vmax.f32 %v561, 0.0
  %v578 = vmax.f32 %v562, 0.0
  %v579 = vmax.f32 %v563, 0.0
  %v580 = vmax.f32 %v564, 0.0
  %v581 = vmax.f32 %v565, 0.0
  %v582 = vmax.f32 %v566, 0.0
  %v583 = vmax.f32 %v567, 0.0
  %v584 = vmax.f32 %v568, 0.0
  %v585 = vmax.f32 %v569, 0.0
  %v586 = vmax.f32 %v570, 0.0
  %v587 = vmax.f32 %v571, 0.0
  %v588 = vmax.f32 %v572, 0.0
  %v589 = vmax.f32 %v573, 0.0
  %v590 = vmax.f32 %v574, 0.0
  %v592 = vperm.slane %v19, 0
  %593 = vrot.lane.b32.xlu0 %v592, 8
  %v594 = vpop.permute.xlu0 %593
  %v596 = vadd.f32 %v540, %v594
  %v597 = vadd.f32 %v541, %v594
  %v598 = vadd.f32 %v542, %v594
  %v599 = vadd.f32 %v543, %v594
  %v600 = vadd.f32 %v544, %v594
  %v601 = vadd.f32 %v545, %v594
  %v602 = vadd.f32 %v546, %v594
  %v603 = vadd.f32 %v547, %v594
  %v604 = vadd.f32 %v548, %v594
  %v605 = vadd.f32 %v549, %v594
  %v606 = vadd.f32 %v550, %v594
  %v607 = vadd.f32 %v551, %v594
  %v608 = vadd.f32 %v552, %v594
  %v609 = vadd.f32 %v553, %v594
  %v610 = vadd.f32 %v554, %v594
  %v611 = vadd.f32 %v555, %v594
  %s612 = scalar_lea.vmem [#allocation2], 16
  %613 = vst.msk [vmem:[%s612 + $0x1] sm:$0xff] %vm58, %v575
  %614 = vst.msk [vmem:[%s612 + $0x11] sm:$0xff] %vm58, %v576
  %615 = vst.msk [vmem:[%s612 + $0x21] sm:$0xff] %vm58, %v577
  %616 = vst.msk [vmem:[%s612 + $0x31] sm:$0xff] %vm58, %v578
  %617 = vst.msk [vmem:[%s612 + $0x41] sm:$0xff] %vm58, %v579
  %618 = vst.msk [vmem:[%s612 + $0x51] sm:$0xff] %vm58, %v580
  %619 = vst.msk [vmem:[%s612 + $0x61] sm:$0xff] %vm58, %v581
  %620 = vst.msk [vmem:[%s612 + $0x71] sm:$0xff] %vm58, %v582
  %621 = vst.msk [vmem:[%s612 + $0xa1] sm:$0xff] %vm58, %v583
  %622 = vst.msk [vmem:[%s612 + $0xb1] sm:$0xff] %vm58, %v584
  %623 = vst.msk [vmem:[%s612 + $0xc1] sm:$0xff] %vm58, %v585
  %624 = vst.msk [vmem:[%s612 + $0xd1] sm:$0xff] %vm58, %v586
  %625 = vst.msk [vmem:[%s612 + $0xe1] sm:$0xff] %vm58, %v587
  %626 = vst.msk [vmem:[%s612 + $0xf1] sm:$0xff] %vm58, %v588
  %627 = vst.msk [vmem:[%s612 + $0x101] sm:$0xff] %vm58, %v589
  %628 = vst.msk [vmem:[%s612 + $0x111] sm:$0xff] %vm58, %v590
  %v629 = vld [vmem:[#allocation2] sm:$0xff]
  %v630 = vld [vmem:[#allocation2 + $0x10] sm:$0xff]
  %v631 = vld [vmem:[#allocation2 + $0x20] sm:$0xff]
  %v632 = vld [vmem:[#allocation2 + $0x30] sm:$0xff]
  %v633 = vld [vmem:[#allocation2 + $0x40] sm:$0xff]
  %v634 = vld [vmem:[#allocation2 + $0x50] sm:$0xff]
  %v635 = vld [vmem:[#allocation2 + $0x60] sm:$0xff]
  %v636 = vld [vmem:[#allocation2 + $0x70] sm:$0xff]
  %v637 = vld [vmem:[#allocation2 + $0xa0] sm:$0xff]
  %v638 = vld [vmem:[#allocation2 + $0xb0] sm:$0xff]
  %v639 = vld [vmem:[#allocation2 + $0xc0] sm:$0xff]
  %v640 = vld [vmem:[#allocation2 + $0xd0] sm:$0xff]
  %v641 = vld [vmem:[#allocation2 + $0xe0] sm:$0xff]
  %v642 = vld [vmem:[#allocation2 + $0xf0] sm:$0xff]
  %v643 = vld [vmem:[#allocation2 + $0x100] sm:$0xff]
  %v644 = vld [vmem:[#allocation2 + $0x110] sm:$0xff]
  %v645 = vpack.c.bf16 %v630, %v629
  %v646 = vpack.c.bf16 %v632, %v631
  %v647 = vpack.c.bf16 %v634, %v633
  %v648 = vpack.c.bf16 %v636, %v635
  %v649 = vpack.c.bf16 %v638, %v637
  %v650 = vpack.c.bf16 %v640, %v639
  %v651 = vpack.c.bf16 %v642, %v641
  %v652 = vpack.c.bf16 %v644, %v643
  %v653 = vld [vmem:[#allocation2 + $0x1] sm:$0xff]
  %v654 = vld [vmem:[#allocation2 + $0x11] sm:$0xff]
  %v655 = vld [vmem:[#allocation2 + $0x21] sm:$0xff]
  %v656 = vld [vmem:[#allocation2 + $0x31] sm:$0xff]
  %v657 = vld [vmem:[#allocation2 + $0x41] sm:$0xff]
  %v658 = vld [vmem:[#allocation2 + $0x51] sm:$0xff]
  %v659 = vld [vmem:[#allocation2 + $0x61] sm:$0xff]
  %v660 = vld [vmem:[#allocation2 + $0x71] sm:$0xff]
  %v661 = vld [vmem:[#allocation2 + $0xa1] sm:$0xff]
  %v662 = vld [vmem:[#allocation2 + $0xb1] sm:$0xff]
  %v663 = vld [vmem:[#allocation2 + $0xc1] sm:$0xff]
  %v664 = vld [vmem:[#allocation2 + $0xd1] sm:$0xff]
  %v665 = vld [vmem:[#allocation2 + $0xe1] sm:$0xff]
  %v666 = vld [vmem:[#allocation2 + $0xf1] sm:$0xff]
  %v667 = vld [vmem:[#allocation2 + $0x101] sm:$0xff]
  %v668 = vld [vmem:[#allocation2 + $0x111] sm:$0xff]
  %v669 = vpack.c.bf16 %v654, %v653
  %v670 = vpack.c.bf16 %v656, %v655
  %v671 = vpack.c.bf16 %v658, %v657
  %v672 = vpack.c.bf16 %v660, %v659
  %v673 = vpack.c.bf16 %v662, %v661
  %v674 = vpack.c.bf16 %v664, %v663
  %v675 = vpack.c.bf16 %v666, %v665
  %v676 = vpack.c.bf16 %v668, %v667
  %v678 = vsel %vm58, %v669, 0
  %v681 = vsel %vm58, %v670, 0
  %v684 = vsel %vm58, %v671, 0
  %v687 = vsel %vm58, %v672, 0
  %v690 = vsel %vm58, %v673, 0
  %v693 = vsel %vm58, %v674, 0
  %v696 = vsel %vm58, %v675, 0
  %v699 = vsel %vm58, %v676, 0
  %vm701 = vcmask 1043456
  %v703 = vsel %vm701, %v32, 0
  %705 = vmatpush.bf16.msra.mxu0 0
  %706 = vmatpush.bf16.msra.mxu0 0
  %707 = vmatpush.bf16.msra.mxu0 0
  %708 = vmatpush.bf16.msra.mxu0 0
  %709 = vmatpush.bf16.msra.mxu0 0
  %710 = vmatpush.bf16.msra.mxu0 0
  %711 = vmatpush.bf16.msra.mxu0 0
  %712 = vmatpush.bf16.msra.mxu0 %v703
  %713 = vmatmul.bf16.gmra.mxu0 %v678
  %v714 = vpop.f32.mrf.mxu0
  %v715 = vadd.f32 0.0, %v714
  %v716 = vpop.f32.mrf.mxu0
  %v717 = vadd.f32 0.0, %v716
  %718 = vmatmul.bf16.gmra.mxu0 %v681
  %v719 = vpop.f32.mrf.mxu0
  %v720 = vadd.f32 0.0, %v719
  %v721 = vpop.f32.mrf.mxu0
  %v722 = vadd.f32 0.0, %v721
  %723 = vmatmul.bf16.gmra.mxu0 %v684
  %v724 = vpop.f32.mrf.mxu0
  %v725 = vadd.f32 0.0, %v724
  %v726 = vpop.f32.mrf.mxu0
  %v727 = vadd.f32 0.0, %v726
  %728 = vmatmul.bf16.gmra.mxu0 %v687
  %v729 = vpop.f32.mrf.mxu0
  %v730 = vadd.f32 0.0, %v729
  %v731 = vpop.f32.mrf.mxu0
  %v732 = vadd.f32 0.0, %v731
  %733 = vmatmul.bf16.gmra.mxu0 %v690
  %v734 = vpop.f32.mrf.mxu0
  %v735 = vadd.f32 0.0, %v734
  %v736 = vpop.f32.mrf.mxu0
  %v737 = vadd.f32 0.0, %v736
  %738 = vmatmul.bf16.gmra.mxu0 %v693
  %v739 = vpop.f32.mrf.mxu0
  %v740 = vadd.f32 0.0, %v739
  %v741 = vpop.f32.mrf.mxu0
  %v742 = vadd.f32 0.0, %v741
  %743 = vmatmul.bf16.gmra.mxu0 %v696
  %v744 = vpop.f32.mrf.mxu0
  %v745 = vadd.f32 0.0, %v744
  %v746 = vpop.f32.mrf.mxu0
  %v747 = vadd.f32 0.0, %v746
  %748 = vmatmul.bf16.gmra.mxu0 %v699
  %v749 = vpop.f32.mrf.mxu0
  %v750 = vadd.f32 0.0, %v749
  %v751 = vpop.f32.mrf.mxu0
  %v752 = vadd.f32 0.0, %v751
  %753 = vdwg.mxu0
  %v755 = vsel %vm58, %v645, 0
  %v758 = vsel %vm58, %v646, 0
  %v761 = vsel %vm58, %v647, 0
  %v764 = vsel %vm58, %v648, 0
  %v767 = vsel %vm58, %v649, 0
  %v770 = vsel %vm58, %v650, 0
  %v773 = vsel %vm58, %v651, 0
  %v776 = vsel %vm58, %v652, 0
  %v779 = vsel %vm701, %v31, 0
  %781 = vmatpush.bf16.msra.mxu0 0
  %782 = vmatpush.bf16.msra.mxu0 0
  %783 = vmatpush.bf16.msra.mxu0 0
  %784 = vmatpush.bf16.msra.mxu0 0
  %785 = vmatpush.bf16.msra.mxu0 0
  %786 = vmatpush.bf16.msra.mxu0 0
  %787 = vmatpush.bf16.msra.mxu0 0
  %788 = vmatpush.bf16.msra.mxu0 %v779
  %789 = vmatmul.bf16.gmra.mxu0 %v755
  %v790 = vpop.f32.mrf.mxu0
  %v791 = vadd.f32 %v715, %v790
  %v792 = vpop.f32.mrf.mxu0
  %v793 = vadd.f32 %v717, %v792
  %794 = vmatmul.bf16.gmra.mxu0 %v758
  %v795 = vpop.f32.mrf.mxu0
  %v796 = vadd.f32 %v720, %v795
  %v797 = vpop.f32.mrf.mxu0
  %v798 = vadd.f32 %v722, %v797
  %799 = vmatmul.bf16.gmra.mxu0 %v761
  %v800 = vpop.f32.mrf.mxu0
  %v801 = vadd.f32 %v725, %v800
  %v802 = vpop.f32.mrf.mxu0
  %v803 = vadd.f32 %v727, %v802
  %804 = vmatmul.bf16.gmra.mxu0 %v764
  %v805 = vpop.f32.mrf.mxu0
  %v806 = vadd.f32 %v730, %v805
  %v807 = vpop.f32.mrf.mxu0
  %v808 = vadd.f32 %v732, %v807
  %809 = vmatmul.bf16.gmra.mxu0 %v767
  %v810 = vpop.f32.mrf.mxu0
  %v811 = vadd.f32 %v735, %v810
  %v812 = vpop.f32.mrf.mxu0
  %v813 = vadd.f32 %v737, %v812
  %814 = vmatmul.bf16.gmra.mxu0 %v770
  %v815 = vpop.f32.mrf.mxu0
  %v816 = vadd.f32 %v740, %v815
  %v817 = vpop.f32.mrf.mxu0
  %v818 = vadd.f32 %v742, %v817
  %819 = vmatmul.bf16.gmra.mxu0 %v773
  %v820 = vpop.f32.mrf.mxu0
  %v821 = vadd.f32 %v745, %v820
  %v822 = vpop.f32.mrf.mxu0
  %v823 = vadd.f32 %v747, %v822
  %824 = vmatmul.bf16.gmra.mxu0 %v776
  %v825 = vpop.f32.mrf.mxu0
  %v826 = vadd.f32 %v750, %v825
  %v827 = vpop.f32.mrf.mxu0
  %v828 = vadd.f32 %v752, %v827
  %829 = vdwg.mxu0
  %v830 = vld [vmem:[#allocation2 + $0x2] sm:$0xff]
  %v831 = vld [vmem:[#allocation2 + $0x12] sm:$0xff]
  %v832 = vld [vmem:[#allocation2 + $0x22] sm:$0xff]
  %v833 = vld [vmem:[#allocation2 + $0x32] sm:$0xff]
  %v834 = vld [vmem:[#allocation2 + $0x42] sm:$0xff]
  %v835 = vld [vmem:[#allocation2 + $0x52] sm:$0xff]
  %v836 = vld [vmem:[#allocation2 + $0x62] sm:$0xff]
  %v837 = vld [vmem:[#allocation2 + $0x72] sm:$0xff]
  %v838 = vld [vmem:[#allocation2 + $0xa2] sm:$0xff]
  %v839 = vld [vmem:[#allocation2 + $0xb2] sm:$0xff]
  %v840 = vld [vmem:[#allocation2 + $0xc2] sm:$0xff]
  %v841 = vld [vmem:[#allocation2 + $0xd2] sm:$0xff]
  %v842 = vld [vmem:[#allocation2 + $0xe2] sm:$0xff]
  %v843 = vld [vmem:[#allocation2 + $0xf2] sm:$0xff]
  %v844 = vld [vmem:[#allocation2 + $0x102] sm:$0xff]
  %v845 = vld [vmem:[#allocation2 + $0x112] sm:$0xff]
  %v846 = vpack.c.bf16 %v831, %v830
  %v847 = vpack.c.bf16 %v833, %v832
  %v848 = vpack.c.bf16 %v835, %v834
  %v849 = vpack.c.bf16 %v837, %v836
  %v850 = vpack.c.bf16 %v839, %v838
  %v851 = vpack.c.bf16 %v841, %v840
  %v852 = vpack.c.bf16 %v843, %v842
  %v853 = vpack.c.bf16 %v845, %v844
  %v855 = vsel %vm58, %v846, 0
  %v858 = vsel %vm58, %v847, 0
  %v861 = vsel %vm58, %v848, 0
  %v864 = vsel %vm58, %v849, 0
  %v867 = vsel %vm58, %v850, 0
  %v870 = vsel %vm58, %v851, 0
  %v873 = vsel %vm58, %v852, 0
  %v876 = vsel %vm58, %v853, 0
  %v879 = vsel %vm701, %v33, 0
  %881 = vmatpush.bf16.msra.mxu0 0
  %882 = vmatpush.bf16.msra.mxu0 0
  %883 = vmatpush.bf16.msra.mxu0 0
  %884 = vmatpush.bf16.msra.mxu0 0
  %885 = vmatpush.bf16.msra.mxu0 0
  %886 = vmatpush.bf16.msra.mxu0 0
  %887 = vmatpush.bf16.msra.mxu0 0
  %888 = vmatpush.bf16.msra.mxu0 %v879
  %889 = vmatmul.bf16.gmra.mxu0 %v855
  %v890 = vpop.f32.mrf.mxu0
  %v891 = vadd.f32 0.0, %v890
  %v892 = vpop.f32.mrf.mxu0
  %v893 = vadd.f32 0.0, %v892
  %894 = vmatmul.bf16.gmra.mxu0 %v858
  %v895 = vpop.f32.mrf.mxu0
  %v896 = vadd.f32 0.0, %v895
  %v897 = vpop.f32.mrf.mxu0
  %v898 = vadd.f32 0.0, %v897
  %899 = vmatmul.bf16.gmra.mxu0 %v861
  %v900 = vpop.f32.mrf.mxu0
  %v901 = vadd.f32 0.0, %v900
  %v902 = vpop.f32.mrf.mxu0
  %v903 = vadd.f32 0.0, %v902
  %904 = vmatmul.bf16.gmra.mxu0 %v864
  %v905 = vpop.f32.mrf.mxu0
  %v906 = vadd.f32 0.0, %v905
  %v907 = vpop.f32.mrf.mxu0
  %v908 = vadd.f32 0.0, %v907
  %909 = vmatmul.bf16.gmra.mxu0 %v867
  %v910 = vpop.f32.mrf.mxu0
  %v911 = vadd.f32 0.0, %v910
  %v912 = vpop.f32.mrf.mxu0
  %v913 = vadd.f32 0.0, %v912
  %914 = vmatmul.bf16.gmra.mxu0 %v870
  %v915 = vpop.f32.mrf.mxu0
  %v916 = vadd.f32 0.0, %v915
  %v917 = vpop.f32.mrf.mxu0
  %v918 = vadd.f32 0.0, %v917
  %919 = vmatmul.bf16.gmra.mxu0 %v873
  %v920 = vpop.f32.mrf.mxu0
  %v921 = vadd.f32 0.0, %v920
  %v922 = vpop.f32.mrf.mxu0
  %v923 = vadd.f32 0.0, %v922
  %924 = vmatmul.bf16.gmra.mxu0 %v876
  %v925 = vpop.f32.mrf.mxu0
  %v926 = vadd.f32 0.0, %v925
  %v927 = vpop.f32.mrf.mxu0
  %v928 = vadd.f32 0.0, %v927
  %929 = vdwg.mxu0
  %v930 = vadd.f32 %v791, %v891
  %v931 = vadd.f32 %v793, %v893
  %v932 = vadd.f32 %v796, %v896
  %v933 = vadd.f32 %v798, %v898
  %v934 = vadd.f32 %v801, %v901
  %v935 = vadd.f32 %v803, %v903
  %v936 = vadd.f32 %v806, %v906
  %v937 = vadd.f32 %v808, %v908
  %v938 = vadd.f32 %v811, %v911
  %v939 = vadd.f32 %v813, %v913
  %v940 = vadd.f32 %v816, %v916
  %v941 = vadd.f32 %v818, %v918
  %v942 = vadd.f32 %v821, %v921
  %v943 = vadd.f32 %v823, %v923
  %v944 = vadd.f32 %v826, %v926
  %v945 = vadd.f32 %v828, %v928
  %v946 = vld [vmem:[%s612] sm:$0xff]
  %v947 = vld [vmem:[%s612 + $0x10] sm:$0xff]
  %v948 = vld [vmem:[%s612 + $0x20] sm:$0xff]
  %v949 = vld [vmem:[%s612 + $0x30] sm:$0xff]
  %v950 = vld [vmem:[%s612 + $0x40] sm:$0xff]
  %v951 = vld [vmem:[%s612 + $0x50] sm:$0xff]
  %v952 = vld [vmem:[%s612 + $0x60] sm:$0xff]
  %v953 = vld [vmem:[%s612 + $0x70] sm:$0xff]
  %v954 = vld [vmem:[%s612 + $0xa0] sm:$0xff]
  %v955 = vld [vmem:[%s612 + $0xb0] sm:$0xff]
  %v956 = vld [vmem:[%s612 + $0xc0] sm:$0xff]
  %v957 = vld [vmem:[%s612 + $0xd0] sm:$0xff]
  %v958 = vld [vmem:[%s612 + $0xe0] sm:$0xff]
  %v959 = vld [vmem:[%s612 + $0xf0] sm:$0xff]
  %v960 = vld [vmem:[%s612 + $0x100] sm:$0xff]
  %v961 = vld [vmem:[%s612 + $0x110] sm:$0xff]
  %v962 = vpack.c.bf16 %v947, %v946
  %v963 = vpack.c.bf16 %v949, %v948
  %v964 = vpack.c.bf16 %v951, %v950
  %v965 = vpack.c.bf16 %v953, %v952
  %v966 = vpack.c.bf16 %v955, %v954
  %v967 = vpack.c.bf16 %v957, %v956
  %v968 = vpack.c.bf16 %v959, %v958
  %v969 = vpack.c.bf16 %v961, %v960
  %v971 = vsel %vm58, %v962, 0
  %v974 = vsel %vm58, %v963, 0
  %v977 = vsel %vm58, %v964, 0
  %v980 = vsel %vm58, %v965, 0
  %v983 = vsel %vm58, %v966, 0
  %v986 = vsel %vm58, %v967, 0
  %v989 = vsel %vm58, %v968, 0
  %v992 = vsel %vm58, %v969, 0
  %v995 = vsel %vm701, %v34, 0
  %997 = vmatpush.bf16.msra.mxu0 0
  %998 = vmatpush.bf16.msra.mxu0 0
  %999 = vmatpush.bf16.msra.mxu0 0
  %1000 = vmatpush.bf16.msra.mxu0 0
  %1001 = vmatpush.bf16.msra.mxu0 0
  %1002 = vmatpush.bf16.msra.mxu0 0
  %1003 = vmatpush.bf16.msra.mxu0 0
  %1004 = vmatpush.bf16.msra.mxu0 %v995
  %1005 = vmatmul.bf16.gmra.mxu0 %v971
  %v1006 = vpop.f32.mrf.mxu0
  %v1007 = vadd.f32 0.0, %v1006
  %v1008 = vpop.f32.mrf.mxu0
  %v1009 = vadd.f32 0.0, %v1008
  %1010 = vmatmul.bf16.gmra.mxu0 %v974
  %v1011 = vpop.f32.mrf.mxu0
  %v1012 = vadd.f32 0.0, %v1011
  %v1013 = vpop.f32.mrf.mxu0
  %v1014 = vadd.f32 0.0, %v1013
  %1015 = vmatmul.bf16.gmra.mxu0 %v977
  %v1016 = vpop.f32.mrf.mxu0
  %v1017 = vadd.f32 0.0, %v1016
  %v1018 = vpop.f32.mrf.mxu0
  %v1019 = vadd.f32 0.0, %v1018
  %1020 = vmatmul.bf16.gmra.mxu0 %v980
  %v1021 = vpop.f32.mrf.mxu0
  %v1022 = vadd.f32 0.0, %v1021
  %v1023 = vpop.f32.mrf.mxu0
  %v1024 = vadd.f32 0.0, %v1023
  %1025 = vmatmul.bf16.gmra.mxu0 %v983
  %v1026 = vpop.f32.mrf.mxu0
  %v1027 = vadd.f32 0.0, %v1026
  %v1028 = vpop.f32.mrf.mxu0
  %v1029 = vadd.f32 0.0, %v1028
  %1030 = vmatmul.bf16.gmra.mxu0 %v986
  %v1031 = vpop.f32.mrf.mxu0
  %v1032 = vadd.f32 0.0, %v1031
  %v1033 = vpop.f32.mrf.mxu0
  %v1034 = vadd.f32 0.0, %v1033
  %1035 = vmatmul.bf16.gmra.mxu0 %v989
  %v1036 = vpop.f32.mrf.mxu0
  %v1037 = vadd.f32 0.0, %v1036
  %v1038 = vpop.f32.mrf.mxu0
  %v1039 = vadd.f32 0.0, %v1038
  %1040 = vmatmul.bf16.gmra.mxu0 %v992
  %v1041 = vpop.f32.mrf.mxu0
  %v1042 = vadd.f32 0.0, %v1041
  %v1043 = vpop.f32.mrf.mxu0
  %v1044 = vadd.f32 0.0, %v1043
  %1045 = vdwg.mxu0
  %v1046 = vadd.f32 %v930, %v1007
  %v1047 = vadd.f32 %v931, %v1009
  %v1048 = vadd.f32 %v932, %v1012
  %v1049 = vadd.f32 %v933, %v1014
  %v1050 = vadd.f32 %v934, %v1017
  %v1051 = vadd.f32 %v935, %v1019
  %v1052 = vadd.f32 %v936, %v1022
  %v1053 = vadd.f32 %v937, %v1024
  %v1054 = vadd.f32 %v938, %v1027
  %v1055 = vadd.f32 %v939, %v1029
  %v1056 = vadd.f32 %v940, %v1032
  %v1057 = vadd.f32 %v941, %v1034
  %v1058 = vadd.f32 %v942, %v1037
  %v1059 = vadd.f32 %v943, %v1039
  %v1060 = vadd.f32 %v944, %v1042
  %v1061 = vadd.f32 %v945, %v1044
  %v1062 = vld [vmem:[%s612 + $0x1] sm:$0xff]
  %v1063 = vld [vmem:[%s612 + $0x11] sm:$0xff]
  %v1064 = vld [vmem:[%s612 + $0x21] sm:$0xff]
  %v1065 = vld [vmem:[%s612 + $0x31] sm:$0xff]
  %v1066 = vld [vmem:[%s612 + $0x41] sm:$0xff]
  %v1067 = vld [vmem:[%s612 + $0x51] sm:$0xff]
  %v1068 = vld [vmem:[%s612 + $0x61] sm:$0xff]
  %v1069 = vld [vmem:[%s612 + $0x71] sm:$0xff]
  %v1070 = vld [vmem:[%s612 + $0xa1] sm:$0xff]
  %v1071 = vld [vmem:[%s612 + $0xb1] sm:$0xff]
  %v1072 = vld [vmem:[%s612 + $0xc1] sm:$0xff]
  %v1073 = vld [vmem:[%s612 + $0xd1] sm:$0xff]
  %v1074 = vld [vmem:[%s612 + $0xe1] sm:$0xff]
  %v1075 = vld [vmem:[%s612 + $0xf1] sm:$0xff]
  %v1076 = vld [vmem:[%s612 + $0x101] sm:$0xff]
  %v1077 = vld [vmem:[%s612 + $0x111] sm:$0xff]
  %v1078 = vpack.c.bf16 %v1063, %v1062
  %v1079 = vpack.c.bf16 %v1065, %v1064
  %v1080 = vpack.c.bf16 %v1067, %v1066
  %v1081 = vpack.c.bf16 %v1069, %v1068
  %v1082 = vpack.c.bf16 %v1071, %v1070
  %v1083 = vpack.c.bf16 %v1073, %v1072
  %v1084 = vpack.c.bf16 %v1075, %v1074
  %v1085 = vpack.c.bf16 %v1077, %v1076
  %v1087 = vsel %vm58, %v1078, 0
  %v1090 = vsel %vm58, %v1079, 0
  %v1093 = vsel %vm58, %v1080, 0
  %v1096 = vsel %vm58, %v1081, 0
  %v1099 = vsel %vm58, %v1082, 0
  %v1102 = vsel %vm58, %v1083, 0
  %v1105 = vsel %vm58, %v1084, 0
  %v1108 = vsel %vm58, %v1085, 0
  %v1111 = vsel %vm701, %v35, 0
  %1113 = vmatpush.bf16.msra.mxu0 0
  %1114 = vmatpush.bf16.msra.mxu0 0
  %1115 = vmatpush.bf16.msra.mxu0 0
  %1116 = vmatpush.bf16.msra.mxu0 0
  %1117 = vmatpush.bf16.msra.mxu0 0
  %1118 = vmatpush.bf16.msra.mxu0 0
  %1119 = vmatpush.bf16.msra.mxu0 0
  %1120 = vmatpush.bf16.msra.mxu0 %v1111
  %1121 = vmatmul.bf16.gmra.mxu0 %v1087
  %v1122 = vpop.f32.mrf.mxu0
  %v1123 = vadd.f32 0.0, %v1122
  %v1124 = vpop.f32.mrf.mxu0
  %v1125 = vadd.f32 0.0, %v1124
  %1126 = vmatmul.bf16.gmra.mxu0 %v1090
  %v1127 = vpop.f32.mrf.mxu0
  %v1128 = vadd.f32 0.0, %v1127
  %v1129 = vpop.f32.mrf.mxu0
  %v1130 = vadd.f32 0.0, %v1129
  %1131 = vmatmul.bf16.gmra.mxu0 %v1093
  %v1132 = vpop.f32.mrf.mxu0
  %v1133 = vadd.f32 0.0, %v1132
  %v1134 = vpop.f32.mrf.mxu0
  %v1135 = vadd.f32 0.0, %v1134
  %1136 = vmatmul.bf16.gmra.mxu0 %v1096
  %v1137 = vpop.f32.mrf.mxu0
  %v1138 = vadd.f32 0.0, %v1137
  %v1139 = vpop.f32.mrf.mxu0
  %v1140 = vadd.f32 0.0, %v1139
  %1141 = vmatmul.bf16.gmra.mxu0 %v1099
  %v1142 = vpop.f32.mrf.mxu0
  %v1143 = vadd.f32 0.0, %v1142
  %v1144 = vpop.f32.mrf.mxu0
  %v1145 = vadd.f32 0.0, %v1144
  %1146 = vmatmul.bf16.gmra.mxu0 %v1102
  %v1147 = vpop.f32.mrf.mxu0
  %v1148 = vadd.f32 0.0, %v1147
  %v1149 = vpop.f32.mrf.mxu0
  %v1150 = vadd.f32 0.0, %v1149
  %1151 = vmatmul.bf16.gmra.mxu0 %v1105
  %v1152 = vpop.f32.mrf.mxu0
  %v1153 = vadd.f32 0.0, %v1152
  %v1154 = vpop.f32.mrf.mxu0
  %v1155 = vadd.f32 0.0, %v1154
  %1156 = vmatmul.bf16.gmra.mxu0 %v1108
  %v1157 = vpop.f32.mrf.mxu0
  %v1158 = vadd.f32 0.0, %v1157
  %v1159 = vpop.f32.mrf.mxu0
  %v1160 = vadd.f32 0.0, %v1159
  %1161 = vdwg.mxu0
  %v1162 = vadd.f32 %v1046, %v1123
  %v1163 = vadd.f32 %v1047, %v1125
  %v1164 = vadd.f32 %v1048, %v1128
  %v1165 = vadd.f32 %v1049, %v1130
  %v1166 = vadd.f32 %v1050, %v1133
  %v1167 = vadd.f32 %v1051, %v1135
  %v1168 = vadd.f32 %v1052, %v1138
  %v1169 = vadd.f32 %v1053, %v1140
  %v1170 = vadd.f32 %v1054, %v1143
  %v1171 = vadd.f32 %v1055, %v1145
  %v1172 = vadd.f32 %v1056, %v1148
  %v1173 = vadd.f32 %v1057, %v1150
  %v1174 = vadd.f32 %v1058, %v1153
  %v1175 = vadd.f32 %v1059, %v1155
  %v1176 = vadd.f32 %v1060, %v1158
  %v1177 = vadd.f32 %v1061, %v1160
  %v1178 = vld [vmem:[%s612 + $0x2] sm:$0xff]
  %v1179 = vld [vmem:[%s612 + $0x12] sm:$0xff]
  %v1180 = vld [vmem:[%s612 + $0x22] sm:$0xff]
  %v1181 = vld [vmem:[%s612 + $0x32] sm:$0xff]
  %v1182 = vld [vmem:[%s612 + $0x42] sm:$0xff]
  %v1183 = vld [vmem:[%s612 + $0x52] sm:$0xff]
  %v1184 = vld [vmem:[%s612 + $0x62] sm:$0xff]
  %v1185 = vld [vmem:[%s612 + $0x72] sm:$0xff]
  %v1186 = vld [vmem:[%s612 + $0xa2] sm:$0xff]
  %v1187 = vld [vmem:[%s612 + $0xb2] sm:$0xff]
  %v1188 = vld [vmem:[%s612 + $0xc2] sm:$0xff]
  %v1189 = vld [vmem:[%s612 + $0xd2] sm:$0xff]
  %v1190 = vld [vmem:[%s612 + $0xe2] sm:$0xff]
  %v1191 = vld [vmem:[%s612 + $0xf2] sm:$0xff]
  %v1192 = vld [vmem:[%s612 + $0x102] sm:$0xff]
  %v1193 = vld [vmem:[%s612 + $0x112] sm:$0xff]
  %v1194 = vpack.c.bf16 %v1179, %v1178
  %v1195 = vpack.c.bf16 %v1181, %v1180
  %v1196 = vpack.c.bf16 %v1183, %v1182
  %v1197 = vpack.c.bf16 %v1185, %v1184
  %v1198 = vpack.c.bf16 %v1187, %v1186
  %v1199 = vpack.c.bf16 %v1189, %v1188
  %v1200 = vpack.c.bf16 %v1191, %v1190
  %v1201 = vpack.c.bf16 %v1193, %v1192
  %v1203 = vsel %vm58, %v1194, 0
  %v1206 = vsel %vm58, %v1195, 0
  %v1209 = vsel %vm58, %v1196, 0
  %v1212 = vsel %vm58, %v1197, 0
  %v1215 = vsel %vm58, %v1198, 0
  %v1218 = vsel %vm58, %v1199, 0
  %v1221 = vsel %vm58, %v1200, 0
  %v1224 = vsel %vm58, %v1201, 0
  %v1227 = vsel %vm701, %v36, 0
  %1229 = vmatpush.bf16.msra.mxu0 0
  %1230 = vmatpush.bf16.msra.mxu0 0
  %1231 = vmatpush.bf16.msra.mxu0 0
  %1232 = vmatpush.bf16.msra.mxu0 0
  %1233 = vmatpush.bf16.msra.mxu0 0
  %1234 = vmatpush.bf16.msra.mxu0 0
  %1235 = vmatpush.bf16.msra.mxu0 0
  %1236 = vmatpush.bf16.msra.mxu0 %v1227
  %1237 = vmatmul.bf16.gmra.mxu0 %v1203
  %v1238 = vpop.f32.mrf.mxu0
  %v1239 = vadd.f32 0.0, %v1238
  %v1240 = vpop.f32.mrf.mxu0
  %v1241 = vadd.f32 0.0, %v1240
  %1242 = vmatmul.bf16.gmra.mxu0 %v1206
  %v1243 = vpop.f32.mrf.mxu0
  %v1244 = vadd.f32 0.0, %v1243
  %v1245 = vpop.f32.mrf.mxu0
  %v1246 = vadd.f32 0.0, %v1245
  %1247 = vmatmul.bf16.gmra.mxu0 %v1209
  %v1248 = vpop.f32.mrf.mxu0
  %v1249 = vadd.f32 0.0, %v1248
  %v1250 = vpop.f32.mrf.mxu0
  %v1251 = vadd.f32 0.0, %v1250
  %1252 = vmatmul.bf16.gmra.mxu0 %v1212
  %v1253 = vpop.f32.mrf.mxu0
  %v1254 = vadd.f32 0.0, %v1253
  %v1255 = vpop.f32.mrf.mxu0
  %v1256 = vadd.f32 0.0, %v1255
  %1257 = vmatmul.bf16.gmra.mxu0 %v1215
  %v1258 = vpop.f32.mrf.mxu0
  %v1259 = vadd.f32 0.0, %v1258
  %v1260 = vpop.f32.mrf.mxu0
  %v1261 = vadd.f32 0.0, %v1260
  %1262 = vmatmul.bf16.gmra.mxu0 %v1218
  %v1263 = vpop.f32.mrf.mxu0
  %v1264 = vadd.f32 0.0, %v1263
  %v1265 = vpop.f32.mrf.mxu0
  %v1266 = vadd.f32 0.0, %v1265
  %1267 = vmatmul.bf16.gmra.mxu0 %v1221
  %v1268 = vpop.f32.mrf.mxu0
  %v1269 = vadd.f32 0.0, %v1268
  %v1270 = vpop.f32.mrf.mxu0
  %v1271 = vadd.f32 0.0, %v1270
  %1272 = vmatmul.bf16.gmra.mxu0 %v1224
  %v1273 = vpop.f32.mrf.mxu0
  %v1274 = vadd.f32 0.0, %v1273
  %v1275 = vpop.f32.mrf.mxu0
  %v1276 = vadd.f32 0.0, %v1275
  %1277 = vdwg.mxu0
  %v1278 = vadd.f32 %v1162, %v1239
  %v1279 = vadd.f32 %v1163, %v1241
  %v1280 = vadd.f32 %v1164, %v1244
  %v1281 = vadd.f32 %v1165, %v1246
  %v1282 = vadd.f32 %v1166, %v1249
  %v1283 = vadd.f32 %v1167, %v1251
  %v1284 = vadd.f32 %v1168, %v1254
  %v1285 = vadd.f32 %v1169, %v1256
  %v1286 = vadd.f32 %v1170, %v1259
  %v1287 = vadd.f32 %v1171, %v1261
  %v1288 = vadd.f32 %v1172, %v1264
  %v1289 = vadd.f32 %v1173, %v1266
  %v1290 = vadd.f32 %v1174, %v1269
  %v1291 = vadd.f32 %v1175, %v1271
  %v1292 = vadd.f32 %v1176, %v1274
  %v1293 = vadd.f32 %v1177, %v1276
  %s1294 = scalar_lea.vmem [#allocation2], 32
  %v1295 = vld [vmem:[%s1294] sm:$0xff]
  %v1296 = vld [vmem:[%s1294 + $0x10] sm:$0xff]
  %v1297 = vld [vmem:[%s1294 + $0x20] sm:$0xff]
  %v1298 = vld [vmem:[%s1294 + $0x30] sm:$0xff]
  %v1299 = vld [vmem:[%s1294 + $0x40] sm:$0xff]
  %v1300 = vld [vmem:[%s1294 + $0x50] sm:$0xff]
  %v1301 = vld [vmem:[%s1294 + $0x60] sm:$0xff]
  %v1302 = vld [vmem:[%s1294 + $0x70] sm:$0xff]
  %v1303 = vld [vmem:[%s1294 + $0xa0] sm:$0xff]
  %v1304 = vld [vmem:[%s1294 + $0xb0] sm:$0xff]
  %v1305 = vld [vmem:[%s1294 + $0xc0] sm:$0xff]
  %v1306 = vld [vmem:[%s1294 + $0xd0] sm:$0xff]
  %v1307 = vld [vmem:[%s1294 + $0xe0] sm:$0xff]
  %v1308 = vld [vmem:[%s1294 + $0xf0] sm:$0xff]
  %v1309 = vld [vmem:[%s1294 + $0x100] sm:$0xff]
  %v1310 = vld [vmem:[%s1294 + $0x110] sm:$0xff]
  %v1311 = vpack.c.bf16 %v1296, %v1295
  %v1312 = vpack.c.bf16 %v1298, %v1297
  %v1313 = vpack.c.bf16 %v1300, %v1299
  %v1314 = vpack.c.bf16 %v1302, %v1301
  %v1315 = vpack.c.bf16 %v1304, %v1303
  %v1316 = vpack.c.bf16 %v1306, %v1305
  %v1317 = vpack.c.bf16 %v1308, %v1307
  %v1318 = vpack.c.bf16 %v1310, %v1309
  %v1320 = vsel %vm58, %v1311, 0
  %v1323 = vsel %vm58, %v1312, 0
  %v1326 = vsel %vm58, %v1313, 0
  %v1329 = vsel %vm58, %v1314, 0
  %v1332 = vsel %vm58, %v1315, 0
  %v1335 = vsel %vm58, %v1316, 0
  %v1338 = vsel %vm58, %v1317, 0
  %v1341 = vsel %vm58, %v1318, 0
  %v1344 = vsel %vm701, %v37, 0
  %1346 = vmatpush.bf16.msra.mxu0 0
  %1347 = vmatpush.bf16.msra.mxu0 0
  %1348 = vmatpush.bf16.msra.mxu0 0
  %1349 = vmatpush.bf16.msra.mxu0 0
  %1350 = vmatpush.bf16.msra.mxu0 0
  %1351 = vmatpush.bf16.msra.mxu0 0
  %1352 = vmatpush.bf16.msra.mxu0 0
  %1353 = vmatpush.bf16.msra.mxu0 %v1344
  %1354 = vmatmul.bf16.gmra.mxu0 %v1320
  %v1355 = vpop.f32.mrf.mxu0
  %v1356 = vadd.f32 0.0, %v1355
  %v1357 = vpop.f32.mrf.mxu0
  %v1358 = vadd.f32 0.0, %v1357
  %1359 = vmatmul.bf16.gmra.mxu0 %v1323
  %v1360 = vpop.f32.mrf.mxu0
  %v1361 = vadd.f32 0.0, %v1360
  %v1362 = vpop.f32.mrf.mxu0
  %v1363 = vadd.f32 0.0, %v1362
  %1364 = vmatmul.bf16.gmra.mxu0 %v1326
  %v1365 = vpop.f32.mrf.mxu0
  %v1366 = vadd.f32 0.0, %v1365
  %v1367 = vpop.f32.mrf.mxu0
  %v1368 = vadd.f32 0.0, %v1367
  %1369 = vmatmul.bf16.gmra.mxu0 %v1329
  %v1370 = vpop.f32.mrf.mxu0
  %v1371 = vadd.f32 0.0, %v1370
  %v1372 = vpop.f32.mrf.mxu0
  %v1373 = vadd.f32 0.0, %v1372
  %1374 = vmatmul.bf16.gmra.mxu0 %v1332
  %v1375 = vpop.f32.mrf.mxu0
  %v1376 = vadd.f32 0.0, %v1375
  %v1377 = vpop.f32.mrf.mxu0
  %v1378 = vadd.f32 0.0, %v1377
  %1379 = vmatmul.bf16.gmra.mxu0 %v1335
  %v1380 = vpop.f32.mrf.mxu0
  %v1381 = vadd.f32 0.0, %v1380
  %v1382 = vpop.f32.mrf.mxu0
  %v1383 = vadd.f32 0.0, %v1382
  %1384 = vmatmul.bf16.gmra.mxu0 %v1338
  %v1385 = vpop.f32.mrf.mxu0
  %v1386 = vadd.f32 0.0, %v1385
  %v1387 = vpop.f32.mrf.mxu0
  %v1388 = vadd.f32 0.0, %v1387
  %1389 = vmatmul.bf16.gmra.mxu0 %v1341
  %v1390 = vpop.f32.mrf.mxu0
  %v1391 = vadd.f32 0.0, %v1390
  %v1392 = vpop.f32.mrf.mxu0
  %v1393 = vadd.f32 0.0, %v1392
  %1394 = vdwg.mxu0
  %v1395 = vadd.f32 %v1278, %v1356
  %v1396 = vadd.f32 %v1279, %v1358
  %v1397 = vadd.f32 %v1280, %v1361
  %v1398 = vadd.f32 %v1281, %v1363
  %v1399 = vadd.f32 %v1282, %v1366
  %v1400 = vadd.f32 %v1283, %v1368
  %v1401 = vadd.f32 %v1284, %v1371
  %v1402 = vadd.f32 %v1285, %v1373
  %v1403 = vadd.f32 %v1286, %v1376
  %v1404 = vadd.f32 %v1287, %v1378
  %v1405 = vadd.f32 %v1288, %v1381
  %v1406 = vadd.f32 %v1289, %v1383
  %v1407 = vadd.f32 %v1290, %v1386
  %v1408 = vadd.f32 %v1291, %v1388
  %v1409 = vadd.f32 %v1292, %v1391
  %v1410 = vadd.f32 %v1293, %v1393
  %v1411 = vld [vmem:[%s1294 + $0x1] sm:$0xff]
  %v1412 = vld [vmem:[%s1294 + $0x11] sm:$0xff]
  %v1413 = vld [vmem:[%s1294 + $0x21] sm:$0xff]
  %v1414 = vld [vmem:[%s1294 + $0x31] sm:$0xff]
  %v1415 = vld [vmem:[%s1294 + $0x41] sm:$0xff]
  %v1416 = vld [vmem:[%s1294 + $0x51] sm:$0xff]
  %v1417 = vld [vmem:[%s1294 + $0x61] sm:$0xff]
  %v1418 = vld [vmem:[%s1294 + $0x71] sm:$0xff]
  %v1419 = vld [vmem:[%s1294 + $0xa1] sm:$0xff]
  %v1420 = vld [vmem:[%s1294 + $0xb1] sm:$0xff]
  %v1421 = vld [vmem:[%s1294 + $0xc1] sm:$0xff]
  %v1422 = vld [vmem:[%s1294 + $0xd1] sm:$0xff]
  %v1423 = vld [vmem:[%s1294 + $0xe1] sm:$0xff]
  %v1424 = vld [vmem:[%s1294 + $0xf1] sm:$0xff]
  %v1425 = vld [vmem:[%s1294 + $0x101] sm:$0xff]
  %v1426 = vld [vmem:[%s1294 + $0x111] sm:$0xff]
  %v1427 = vpack.c.bf16 %v1412, %v1411
  %v1428 = vpack.c.bf16 %v1414, %v1413
  %v1429 = vpack.c.bf16 %v1416, %v1415
  %v1430 = vpack.c.bf16 %v1418, %v1417
  %v1431 = vpack.c.bf16 %v1420, %v1419
  %v1432 = vpack.c.bf16 %v1422, %v1421
  %v1433 = vpack.c.bf16 %v1424, %v1423
  %v1434 = vpack.c.bf16 %v1426, %v1425
  %v1436 = vsel %vm58, %v1427, 0
  %v1439 = vsel %vm58, %v1428, 0
  %v1442 = vsel %vm58, %v1429, 0
  %v1445 = vsel %vm58, %v1430, 0
  %v1448 = vsel %vm58, %v1431, 0
  %v1451 = vsel %vm58, %v1432, 0
  %v1454 = vsel %vm58, %v1433, 0
  %v1457 = vsel %vm58, %v1434, 0
  %v1460 = vsel %vm701, %v38, 0
  %1462 = vmatpush.bf16.msra.mxu0 0
  %1463 = vmatpush.bf16.msra.mxu0 0
  %1464 = vmatpush.bf16.msra.mxu0 0
  %1465 = vmatpush.bf16.msra.mxu0 0
  %1466 = vmatpush.bf16.msra.mxu0 0
  %1467 = vmatpush.bf16.msra.mxu0 0
  %1468 = vmatpush.bf16.msra.mxu0 0
  %1469 = vmatpush.bf16.msra.mxu0 %v1460
  %1470 = vmatmul.bf16.gmra.mxu0 %v1436
  %v1471 = vpop.f32.mrf.mxu0
  %v1472 = vadd.f32 0.0, %v1471
  %v1473 = vpop.f32.mrf.mxu0
  %v1474 = vadd.f32 0.0, %v1473
  %1475 = vmatmul.bf16.gmra.mxu0 %v1439
  %v1476 = vpop.f32.mrf.mxu0
  %v1477 = vadd.f32 0.0, %v1476
  %v1478 = vpop.f32.mrf.mxu0
  %v1479 = vadd.f32 0.0, %v1478
  %1480 = vmatmul.bf16.gmra.mxu0 %v1442
  %v1481 = vpop.f32.mrf.mxu0
  %v1482 = vadd.f32 0.0, %v1481
  %v1483 = vpop.f32.mrf.mxu0
  %v1484 = vadd.f32 0.0, %v1483
  %1485 = vmatmul.bf16.gmra.mxu0 %v1445
  %v1486 = vpop.f32.mrf.mxu0
  %v1487 = vadd.f32 0.0, %v1486
  %v1488 = vpop.f32.mrf.mxu0
  %v1489 = vadd.f32 0.0, %v1488
  %1490 = vmatmul.bf16.gmra.mxu0 %v1448
  %v1491 = vpop.f32.mrf.mxu0
  %v1492 = vadd.f32 0.0, %v1491
  %v1493 = vpop.f32.mrf.mxu0
  %v1494 = vadd.f32 0.0, %v1493
  %1495 = vmatmul.bf16.gmra.mxu0 %v1451
  %v1496 = vpop.f32.mrf.mxu0
  %v1497 = vadd.f32 0.0, %v1496
  %v1498 = vpop.f32.mrf.mxu0
  %v1499 = vadd.f32 0.0, %v1498
  %1500 = vmatmul.bf16.gmra.mxu0 %v1454
  %v1501 = vpop.f32.mrf.mxu0
  %v1502 = vadd.f32 0.0, %v1501
  %v1503 = vpop.f32.mrf.mxu0
  %v1504 = vadd.f32 0.0, %v1503
  %1505 = vmatmul.bf16.gmra.mxu0 %v1457
  %v1506 = vpop.f32.mrf.mxu0
  %v1507 = vadd.f32 0.0, %v1506
  %v1508 = vpop.f32.mrf.mxu0
  %v1509 = vadd.f32 0.0, %v1508
  %1510 = vdwg.mxu0
  %v1511 = vadd.f32 %v1395, %v1472
  %v1512 = vadd.f32 %v1396, %v1474
  %v1513 = vadd.f32 %v1397, %v1477
  %v1514 = vadd.f32 %v1398, %v1479
  %v1515 = vadd.f32 %v1399, %v1482
  %v1516 = vadd.f32 %v1400, %v1484
  %v1517 = vadd.f32 %v1401, %v1487
  %v1518 = vadd.f32 %v1402, %v1489
  %v1519 = vadd.f32 %v1403, %v1492
  %v1520 = vadd.f32 %v1404, %v1494
  %v1521 = vadd.f32 %v1405, %v1497
  %v1522 = vadd.f32 %v1406, %v1499
  %v1523 = vadd.f32 %v1407, %v1502
  %v1524 = vadd.f32 %v1408, %v1504
  %v1525 = vadd.f32 %v1409, %v1507
  %v1526 = vadd.f32 %v1410, %v1509
  %v1527 = vld [vmem:[%s1294 + $0x2] sm:$0xff]
  %v1528 = vld [vmem:[%s1294 + $0x12] sm:$0xff]
  %v1529 = vld [vmem:[%s1294 + $0x22] sm:$0xff]
  %v1530 = vld [vmem:[%s1294 + $0x32] sm:$0xff]
  %v1531 = vld [vmem:[%s1294 + $0x42] sm:$0xff]
  %v1532 = vld [vmem:[%s1294 + $0x52] sm:$0xff]
  %v1533 = vld [vmem:[%s1294 + $0x62] sm:$0xff]
  %v1534 = vld [vmem:[%s1294 + $0x72] sm:$0xff]
  %v1535 = vld [vmem:[%s1294 + $0xa2] sm:$0xff]
  %v1536 = vld [vmem:[%s1294 + $0xb2] sm:$0xff]
  %v1537 = vld [vmem:[%s1294 + $0xc2] sm:$0xff]
  %v1538 = vld [vmem:[%s1294 + $0xd2] sm:$0xff]
  %v1539 = vld [vmem:[%s1294 + $0xe2] sm:$0xff]
  %v1540 = vld [vmem:[%s1294 + $0xf2] sm:$0xff]
  %v1541 = vld [vmem:[%s1294 + $0x102] sm:$0xff]
  %v1542 = vld [vmem:[%s1294 + $0x112] sm:$0xff]
  %v1543 = vpack.c.bf16 %v1528, %v1527
  %v1544 = vpack.c.bf16 %v1530, %v1529
  %v1545 = vpack.c.bf16 %v1532, %v1531
  %v1546 = vpack.c.bf16 %v1534, %v1533
  %v1547 = vpack.c.bf16 %v1536, %v1535
  %v1548 = vpack.c.bf16 %v1538, %v1537
  %v1549 = vpack.c.bf16 %v1540, %v1539
  %v1550 = vpack.c.bf16 %v1542, %v1541
  %v1552 = vsel %vm58, %v1543, 0
  %v1555 = vsel %vm58, %v1544, 0
  %v1558 = vsel %vm58, %v1545, 0
  %v1561 = vsel %vm58, %v1546, 0
  %v1564 = vsel %vm58, %v1547, 0
  %v1567 = vsel %vm58, %v1548, 0
  %v1570 = vsel %vm58, %v1549, 0
  %v1573 = vsel %vm58, %v1550, 0
  %v1576 = vsel %vm701, %v39, 0
  %1578 = vmatpush.bf16.msra.mxu0 0
  %1579 = vmatpush.bf16.msra.mxu0 0
  %1580 = vmatpush.bf16.msra.mxu0 0
  %1581 = vmatpush.bf16.msra.mxu0 0
  %1582 = vmatpush.bf16.msra.mxu0 0
  %1583 = vmatpush.bf16.msra.mxu0 0
  %1584 = vmatpush.bf16.msra.mxu0 0
  %1585 = vmatpush.bf16.msra.mxu0 %v1576
  %1586 = vmatmul.bf16.gmra.mxu0 %v1552
  %v1587 = vpop.f32.mrf.mxu0
  %v1588 = vadd.f32 0.0, %v1587
  %v1589 = vpop.f32.mrf.mxu0
  %v1590 = vadd.f32 0.0, %v1589
  %1591 = vmatmul.bf16.gmra.mxu0 %v1555
  %v1592 = vpop.f32.mrf.mxu0
  %v1593 = vadd.f32 0.0, %v1592
  %v1594 = vpop.f32.mrf.mxu0
  %v1595 = vadd.f32 0.0, %v1594
  %1596 = vmatmul.bf16.gmra.mxu0 %v1558
  %v1597 = vpop.f32.mrf.mxu0
  %v1598 = vadd.f32 0.0, %v1597
  %v1599 = vpop.f32.mrf.mxu0
  %v1600 = vadd.f32 0.0, %v1599
  %1601 = vmatmul.bf16.gmra.mxu0 %v1561
  %v1602 = vpop.f32.mrf.mxu0
  %v1603 = vadd.f32 0.0, %v1602
  %v1604 = vpop.f32.mrf.mxu0
  %v1605 = vadd.f32 0.0, %v1604
  %1606 = vmatmul.bf16.gmra.mxu0 %v1564
  %v1607 = vpop.f32.mrf.mxu0
  %v1608 = vadd.f32 0.0, %v1607
  %v1609 = vpop.f32.mrf.mxu0
  %v1610 = vadd.f32 0.0, %v1609
  %1611 = vmatmul.bf16.gmra.mxu0 %v1567
  %v1612 = vpop.f32.mrf.mxu0
  %v1613 = vadd.f32 0.0, %v1612
  %v1614 = vpop.f32.mrf.mxu0
  %v1615 = vadd.f32 0.0, %v1614
  %1616 = vmatmul.bf16.gmra.mxu0 %v1570
  %v1617 = vpop.f32.mrf.mxu0
  %v1618 = vadd.f32 0.0, %v1617
  %v1619 = vpop.f32.mrf.mxu0
  %v1620 = vadd.f32 0.0, %v1619
  %1621 = vmatmul.bf16.gmra.mxu0 %v1573
  %v1622 = vpop.f32.mrf.mxu0
  %v1623 = vadd.f32 0.0, %v1622
  %v1624 = vpop.f32.mrf.mxu0
  %v1625 = vadd.f32 0.0, %v1624
  %1626 = vdwg.mxu0
  %v1627 = vadd.f32 %v1511, %v1588
  %v1628 = vadd.f32 %v1512, %v1590
  %v1629 = vadd.f32 %v1513, %v1593
  %v1630 = vadd.f32 %v1514, %v1595
  %v1631 = vadd.f32 %v1515, %v1598
  %v1632 = vadd.f32 %v1516, %v1600
  %v1633 = vadd.f32 %v1517, %v1603
  %v1634 = vadd.f32 %v1518, %v1605
  %v1635 = vadd.f32 %v1519, %v1608
  %v1636 = vadd.f32 %v1520, %v1610
  %v1637 = vadd.f32 %v1521, %v1613
  %v1638 = vadd.f32 %v1522, %v1615
  %v1639 = vadd.f32 %v1523, %v1618
  %v1640 = vadd.f32 %v1524, %v1620
  %v1641 = vadd.f32 %v1525, %v1623
  %v1642 = vadd.f32 %v1526, %v1625
  %v1644 = vperm.slane %v20, 0
  %v1646 = vadd.f32 %v1627, %v1644
  %v1647 = vadd.f32 %v1628, %v1644
  %v1648 = vadd.f32 %v1629, %v1644
  %v1649 = vadd.f32 %v1630, %v1644
  %v1650 = vadd.f32 %v1631, %v1644
  %v1651 = vadd.f32 %v1632, %v1644
  %v1652 = vadd.f32 %v1633, %v1644
  %v1653 = vadd.f32 %v1634, %v1644
  %v1654 = vadd.f32 %v1635, %v1644
  %v1655 = vadd.f32 %v1636, %v1644
  %v1656 = vadd.f32 %v1637, %v1644
  %v1657 = vadd.f32 %v1638, %v1644
  %v1658 = vadd.f32 %v1639, %v1644
  %v1659 = vadd.f32 %v1640, %v1644
  %v1660 = vadd.f32 %v1641, %v1644
  %v1661 = vadd.f32 %v1642, %v1644
  %1678 = vrot.lane.b32.xlu0 %v596, 120
  %v1679 = vpop.permute.xlu0 %1678
  %1680 = vrot.lane.b32.xlu0 %v597, 120
  %v1681 = vpop.permute.xlu0 %1680
  %1682 = vrot.lane.b32.xlu0 %v598, 120
  %v1683 = vpop.permute.xlu0 %1682
  %1684 = vrot.lane.b32.xlu0 %v599, 120
  %v1685 = vpop.permute.xlu0 %1684
  %1686 = vrot.lane.b32.xlu0 %v600, 120
  %v1687 = vpop.permute.xlu0 %1686
  %1688 = vrot.lane.b32.xlu0 %v601, 120
  %v1689 = vpop.permute.xlu0 %1688
  %1690 = vrot.lane.b32.xlu0 %v602, 120
  %v1691 = vpop.permute.xlu0 %1690
  %1692 = vrot.lane.b32.xlu0 %v603, 120
  %v1693 = vpop.permute.xlu0 %1692
  %1694 = vrot.lane.b32.xlu0 %v604, 120
  %v1695 = vpop.permute.xlu0 %1694
  %1696 = vrot.lane.b32.xlu0 %v605, 120
  %v1697 = vpop.permute.xlu0 %1696
  %1698 = vrot.lane.b32.xlu0 %v606, 120
  %v1699 = vpop.permute.xlu0 %1698
  %1700 = vrot.lane.b32.xlu0 %v607, 120
  %v1701 = vpop.permute.xlu0 %1700
  %1702 = vrot.lane.b32.xlu0 %v608, 120
  %v1703 = vpop.permute.xlu0 %1702
  %1704 = vrot.lane.b32.xlu0 %v609, 120
  %v1705 = vpop.permute.xlu0 %1704
  %1706 = vrot.lane.b32.xlu0 %v610, 120
  %v1707 = vpop.permute.xlu0 %1706
  %1708 = vrot.lane.b32.xlu0 %v611, 120
  %v1709 = vpop.permute.xlu0 %1708
  %v1726 = vadd.f32 %v1646, %v1679
  %v1727 = vadd.f32 %v1647, %v1681
  %v1728 = vadd.f32 %v1648, %v1683
  %v1729 = vadd.f32 %v1649, %v1685
  %v1730 = vadd.f32 %v1650, %v1687
  %v1731 = vadd.f32 %v1651, %v1689
  %v1732 = vadd.f32 %v1652, %v1691
  %v1733 = vadd.f32 %v1653, %v1693
  %v1734 = vadd.f32 %v1654, %v1695
  %v1735 = vadd.f32 %v1655, %v1697
  %v1736 = vadd.f32 %v1656, %v1699
  %v1737 = vadd.f32 %v1657, %v1701
  %v1738 = vadd.f32 %v1658, %v1703
  %v1739 = vadd.f32 %v1659, %v1705
  %v1740 = vadd.f32 %v1660, %v1707
  %v1741 = vadd.f32 %v1661, %v1709
  %v1742 = vmax.f32 %v1726, 0.0
  %v1743 = vmax.f32 %v1727, 0.0
  %v1744 = vmax.f32 %v1728, 0.0
  %v1745 = vmax.f32 %v1729, 0.0
  %v1746 = vmax.f32 %v1730, 0.0
  %v1747 = vmax.f32 %v1731, 0.0
  %v1748 = vmax.f32 %v1732, 0.0
  %v1749 = vmax.f32 %v1733, 0.0
  %v1750 = vmax.f32 %v1734, 0.0
  %v1751 = vmax.f32 %v1735, 0.0
  %v1752 = vmax.f32 %v1736, 0.0
  %v1753 = vmax.f32 %v1737, 0.0
  %v1754 = vmax.f32 %v1738, 0.0
  %v1755 = vmax.f32 %v1739, 0.0
  %v1756 = vmax.f32 %v1740, 0.0
  %v1757 = vmax.f32 %v1741, 0.0
  %1758 = vst.msk [vmem:[%s612 + $0x1] sm:$0xff] %vm58, %v1742
  %1759 = vst.msk [vmem:[%s612 + $0x11] sm:$0xff] %vm58, %v1743
  %1760 = vst.msk [vmem:[%s612 + $0x21] sm:$0xff] %vm58, %v1744
  %1761 = vst.msk [vmem:[%s612 + $0x31] sm:$0xff] %vm58, %v1745
  %1762 = vst.msk [vmem:[%s612 + $0x41] sm:$0xff] %vm58, %v1746
  %1763 = vst.msk [vmem:[%s612 + $0x51] sm:$0xff] %vm58, %v1747
  %1764 = vst.msk [vmem:[%s612 + $0x61] sm:$0xff] %vm58, %v1748
  %1765 = vst.msk [vmem:[%s612 + $0x71] sm:$0xff] %vm58, %v1749
  %1766 = vst.msk [vmem:[%s612 + $0xa1] sm:$0xff] %vm58, %v1750
  %1767 = vst.msk [vmem:[%s612 + $0xb1] sm:$0xff] %vm58, %v1751
  %1768 = vst.msk [vmem:[%s612 + $0xc1] sm:$0xff] %vm58, %v1752
  %1769 = vst.msk [vmem:[%s612 + $0xd1] sm:$0xff] %vm58, %v1753
  %1770 = vst.msk [vmem:[%s612 + $0xe1] sm:$0xff] %vm58, %v1754
  %1771 = vst.msk [vmem:[%s612 + $0xf1] sm:$0xff] %vm58, %v1755
  %1772 = vst.msk [vmem:[%s612 + $0x101] sm:$0xff] %vm58, %v1756
  %1773 = vst.msk [vmem:[%s612 + $0x111] sm:$0xff] %vm58, %v1757
  %v1774 = vld [vmem:[#allocation2] sm:$0xff]
  %v1775 = vld [vmem:[#allocation2 + $0x10] sm:$0xff]
  %v1776 = vld [vmem:[#allocation2 + $0x20] sm:$0xff]
  %v1777 = vld [vmem:[#allocation2 + $0x30] sm:$0xff]
  %v1778 = vld [vmem:[#allocation2 + $0x40] sm:$0xff]
  %v1779 = vld [vmem:[#allocation2 + $0x50] sm:$0xff]
  %v1780 = vld [vmem:[#allocation2 + $0x60] sm:$0xff]
  %v1781 = vld [vmem:[#allocation2 + $0x70] sm:$0xff]
  %v1782 = vld [vmem:[#allocation2 + $0xa0] sm:$0xff]
  %v1783 = vld [vmem:[#allocation2 + $0xb0] sm:$0xff]
  %v1784 = vld [vmem:[#allocation2 + $0xc0] sm:$0xff]
  %v1785 = vld [vmem:[#allocation2 + $0xd0] sm:$0xff]
  %v1786 = vld [vmem:[#allocation2 + $0xe0] sm:$0xff]
  %v1787 = vld [vmem:[#allocation2 + $0xf0] sm:$0xff]
  %v1788 = vld [vmem:[#allocation2 + $0x100] sm:$0xff]
  %v1789 = vld [vmem:[#allocation2 + $0x110] sm:$0xff]
  %v1790 = vpack.c.bf16 %v1775, %v1774
  %v1791 = vpack.c.bf16 %v1777, %v1776
  %v1792 = vpack.c.bf16 %v1779, %v1778
  %v1793 = vpack.c.bf16 %v1781, %v1780
  %v1794 = vpack.c.bf16 %v1783, %v1782
  %v1795 = vpack.c.bf16 %v1785, %v1784
  %v1796 = vpack.c.bf16 %v1787, %v1786
  %v1797 = vpack.c.bf16 %v1789, %v1788
  %v1798 = vld [vmem:[#allocation2 + $0x1] sm:$0xff]
  %v1799 = vld [vmem:[#allocation2 + $0x11] sm:$0xff]
  %v1800 = vld [vmem:[#allocation2 + $0x21] sm:$0xff]
  %v1801 = vld [vmem:[#allocation2 + $0x31] sm:$0xff]
  %v1802 = vld [vmem:[#allocation2 + $0x41] sm:$0xff]
  %v1803 = vld [vmem:[#allocation2 + $0x51] sm:$0xff]
  %v1804 = vld [vmem:[#allocation2 + $0x61] sm:$0xff]
  %v1805 = vld [vmem:[#allocation2 + $0x71] sm:$0xff]
  %v1806 = vld [vmem:[#allocation2 + $0xa1] sm:$0xff]
  %v1807 = vld [vmem:[#allocation2 + $0xb1] sm:$0xff]
  %v1808 = vld [vmem:[#allocation2 + $0xc1] sm:$0xff]
  %v1809 = vld [vmem:[#allocation2 + $0xd1] sm:$0xff]
  %v1810 = vld [vmem:[#allocation2 + $0xe1] sm:$0xff]
  %v1811 = vld [vmem:[#allocation2 + $0xf1] sm:$0xff]
  %v1812 = vld [vmem:[#allocation2 + $0x101] sm:$0xff]
  %v1813 = vld [vmem:[#allocation2 + $0x111] sm:$0xff]
  %v1814 = vpack.c.bf16 %v1799, %v1798
  %v1815 = vpack.c.bf16 %v1801, %v1800
  %v1816 = vpack.c.bf16 %v1803, %v1802
  %v1817 = vpack.c.bf16 %v1805, %v1804
  %v1818 = vpack.c.bf16 %v1807, %v1806
  %v1819 = vpack.c.bf16 %v1809, %v1808
  %v1820 = vpack.c.bf16 %v1811, %v1810
  %v1821 = vpack.c.bf16 %v1813, %v1812
  %v1823 = vsel %vm58, %v1814, 0
  %v1826 = vsel %vm58, %v1815, 0
  %v1829 = vsel %vm58, %v1816, 0
  %v1832 = vsel %vm58, %v1817, 0
  %v1835 = vsel %vm58, %v1818, 0
  %v1838 = vsel %vm58, %v1819, 0
  %v1841 = vsel %vm58, %v1820, 0
  %v1844 = vsel %vm58, %v1821, 0
  %v1847 = vsel %vm701, %v41, 0
  %1849 = vmatpush.bf16.msra.mxu0 0
  %1850 = vmatpush.bf16.msra.mxu0 0
  %1851 = vmatpush.bf16.msra.mxu0 0
  %1852 = vmatpush.bf16.msra.mxu0 0
  %1853 = vmatpush.bf16.msra.mxu0 0
  %1854 = vmatpush.bf16.msra.mxu0 0
  %1855 = vmatpush.bf16.msra.mxu0 0
  %1856 = vmatpush.bf16.msra.mxu0 %v1847
  %1857 = vmatmul.bf16.gmra.mxu0 %v1823
  %v1858 = vpop.f32.mrf.mxu0
  %v1859 = vadd.f32 0.0, %v1858
  %v1860 = vpop.f32.mrf.mxu0
  %v1861 = vadd.f32 0.0, %v1860
  %1862 = vmatmul.bf16.gmra.mxu0 %v1826
  %v1863 = vpop.f32.mrf.mxu0
  %v1864 = vadd.f32 0.0, %v1863
  %v1865 = vpop.f32.mrf.mxu0
  %v1866 = vadd.f32 0.0, %v1865
  %1867 = vmatmul.bf16.gmra.mxu0 %v1829
  %v1868 = vpop.f32.mrf.mxu0
  %v1869 = vadd.f32 0.0, %v1868
  %v1870 = vpop.f32.mrf.mxu0
  %v1871 = vadd.f32 0.0, %v1870
  %1872 = vmatmul.bf16.gmra.mxu0 %v1832
  %v1873 = vpop.f32.mrf.mxu0
  %v1874 = vadd.f32 0.0, %v1873
  %v1875 = vpop.f32.mrf.mxu0
  %v1876 = vadd.f32 0.0, %v1875
  %1877 = vmatmul.bf16.gmra.mxu0 %v1835
  %v1878 = vpop.f32.mrf.mxu0
  %v1879 = vadd.f32 0.0, %v1878
  %v1880 = vpop.f32.mrf.mxu0
  %v1881 = vadd.f32 0.0, %v1880
  %1882 = vmatmul.bf16.gmra.mxu0 %v1838
  %v1883 = vpop.f32.mrf.mxu0
  %v1884 = vadd.f32 0.0, %v1883
  %v1885 = vpop.f32.mrf.mxu0
  %v1886 = vadd.f32 0.0, %v1885
  %1887 = vmatmul.bf16.gmra.mxu0 %v1841
  %v1888 = vpop.f32.mrf.mxu0
  %v1889 = vadd.f32 0.0, %v1888
  %v1890 = vpop.f32.mrf.mxu0
  %v1891 = vadd.f32 0.0, %v1890
  %1892 = vmatmul.bf16.gmra.mxu0 %v1844
  %v1893 = vpop.f32.mrf.mxu0
  %v1894 = vadd.f32 0.0, %v1893
  %v1895 = vpop.f32.mrf.mxu0
  %v1896 = vadd.f32 0.0, %v1895
  %1897 = vdwg.mxu0
  %v1899 = vsel %vm58, %v1790, 0
  %v1902 = vsel %vm58, %v1791, 0
  %v1905 = vsel %vm58, %v1792, 0
  %v1908 = vsel %vm58, %v1793, 0
  %v1911 = vsel %vm58, %v1794, 0
  %v1914 = vsel %vm58, %v1795, 0
  %v1917 = vsel %vm58, %v1796, 0
  %v1920 = vsel %vm58, %v1797, 0
  %v1923 = vsel %vm701, %v40, 0
  %1925 = vmatpush.bf16.msra.mxu0 0
  %1926 = vmatpush.bf16.msra.mxu0 0
  %1927 = vmatpush.bf16.msra.mxu0 0
  %1928 = vmatpush.bf16.msra.mxu0 0
  %1929 = vmatpush.bf16.msra.mxu0 0
  %1930 = vmatpush.bf16.msra.mxu0 0
  %1931 = vmatpush.bf16.msra.mxu0 0
  %1932 = vmatpush.bf16.msra.mxu0 %v1923
  %1933 = vmatmul.bf16.gmra.mxu0 %v1899
  %v1934 = vpop.f32.mrf.mxu0
  %v1935 = vadd.f32 %v1859, %v1934
  %v1936 = vpop.f32.mrf.mxu0
  %v1937 = vadd.f32 %v1861, %v1936
  %1938 = vmatmul.bf16.gmra.mxu0 %v1902
  %v1939 = vpop.f32.mrf.mxu0
  %v1940 = vadd.f32 %v1864, %v1939
  %v1941 = vpop.f32.mrf.mxu0
  %v1942 = vadd.f32 %v1866, %v1941
  %1943 = vmatmul.bf16.gmra.mxu0 %v1905
  %v1944 = vpop.f32.mrf.mxu0
  %v1945 = vadd.f32 %v1869, %v1944
  %v1946 = vpop.f32.mrf.mxu0
  %v1947 = vadd.f32 %v1871, %v1946
  %1948 = vmatmul.bf16.gmra.mxu0 %v1908
  %v1949 = vpop.f32.mrf.mxu0
  %v1950 = vadd.f32 %v1874, %v1949
  %v1951 = vpop.f32.mrf.mxu0
  %v1952 = vadd.f32 %v1876, %v1951
  %1953 = vmatmul.bf16.gmra.mxu0 %v1911
  %v1954 = vpop.f32.mrf.mxu0
  %v1955 = vadd.f32 %v1879, %v1954
  %v1956 = vpop.f32.mrf.mxu0
  %v1957 = vadd.f32 %v1881, %v1956
  %1958 = vmatmul.bf16.gmra.mxu0 %v1914
  %v1959 = vpop.f32.mrf.mxu0
  %v1960 = vadd.f32 %v1884, %v1959
  %v1961 = vpop.f32.mrf.mxu0
  %v1962 = vadd.f32 %v1886, %v1961
  %1963 = vmatmul.bf16.gmra.mxu0 %v1917
  %v1964 = vpop.f32.mrf.mxu0
  %v1965 = vadd.f32 %v1889, %v1964
  %v1966 = vpop.f32.mrf.mxu0
  %v1967 = vadd.f32 %v1891, %v1966
  %1968 = vmatmul.bf16.gmra.mxu0 %v1920
  %v1969 = vpop.f32.mrf.mxu0
  %v1970 = vadd.f32 %v1894, %v1969
  %v1971 = vpop.f32.mrf.mxu0
  %v1972 = vadd.f32 %v1896, %v1971
  %1973 = vdwg.mxu0
  %v1974 = vld [vmem:[#allocation2 + $0x2] sm:$0xff]
  %v1975 = vld [vmem:[#allocation2 + $0x12] sm:$0xff]
  %v1976 = vld [vmem:[#allocation2 + $0x22] sm:$0xff]
  %v1977 = vld [vmem:[#allocation2 + $0x32] sm:$0xff]
  %v1978 = vld [vmem:[#allocation2 + $0x42] sm:$0xff]
  %v1979 = vld [vmem:[#allocation2 + $0x52] sm:$0xff]
  %v1980 = vld [vmem:[#allocation2 + $0x62] sm:$0xff]
  %v1981 = vld [vmem:[#allocation2 + $0x72] sm:$0xff]
  %v1982 = vld [vmem:[#allocation2 + $0xa2] sm:$0xff]
  %v1983 = vld [vmem:[#allocation2 + $0xb2] sm:$0xff]
  %v1984 = vld [vmem:[#allocation2 + $0xc2] sm:$0xff]
  %v1985 = vld [vmem:[#allocation2 + $0xd2] sm:$0xff]
  %v1986 = vld [vmem:[#allocation2 + $0xe2] sm:$0xff]
  %v1987 = vld [vmem:[#allocation2 + $0xf2] sm:$0xff]
  %v1988 = vld [vmem:[#allocation2 + $0x102] sm:$0xff]
  %v1989 = vld [vmem:[#allocation2 + $0x112] sm:$0xff]
  %v1990 = vpack.c.bf16 %v1975, %v1974
  %v1991 = vpack.c.bf16 %v1977, %v1976
  %v1992 = vpack.c.bf16 %v1979, %v1978
  %v1993 = vpack.c.bf16 %v1981, %v1980
  %v1994 = vpack.c.bf16 %v1983, %v1982
  %v1995 = vpack.c.bf16 %v1985, %v1984
  %v1996 = vpack.c.bf16 %v1987, %v1986
  %v1997 = vpack.c.bf16 %v1989, %v1988
  %v1999 = vsel %vm58, %v1990, 0
  %v2002 = vsel %vm58, %v1991, 0
  %v2005 = vsel %vm58, %v1992, 0
  %v2008 = vsel %vm58, %v1993, 0
  %v2011 = vsel %vm58, %v1994, 0
  %v2014 = vsel %vm58, %v1995, 0
  %v2017 = vsel %vm58, %v1996, 0
  %v2020 = vsel %vm58, %v1997, 0
  %v2023 = vsel %vm701, %v42, 0
  %2025 = vmatpush.bf16.msra.mxu0 0
  %2026 = vmatpush.bf16.msra.mxu0 0
  %2027 = vmatpush.bf16.msra.mxu0 0
  %2028 = vmatpush.bf16.msra.mxu0 0
  %2029 = vmatpush.bf16.msra.mxu0 0
  %2030 = vmatpush.bf16.msra.mxu0 0
  %2031 = vmatpush.bf16.msra.mxu0 0
  %2032 = vmatpush.bf16.msra.mxu0 %v2023
  %2033 = vmatmul.bf16.gmra.mxu0 %v1999
  %v2034 = vpop.f32.mrf.mxu0
  %v2035 = vadd.f32 0.0, %v2034
  %v2036 = vpop.f32.mrf.mxu0
  %v2037 = vadd.f32 0.0, %v2036
  %2038 = vmatmul.bf16.gmra.mxu0 %v2002
  %v2039 = vpop.f32.mrf.mxu0
  %v2040 = vadd.f32 0.0, %v2039
  %v2041 = vpop.f32.mrf.mxu0
  %v2042 = vadd.f32 0.0, %v2041
  %2043 = vmatmul.bf16.gmra.mxu0 %v2005
  %v2044 = vpop.f32.mrf.mxu0
  %v2045 = vadd.f32 0.0, %v2044
  %v2046 = vpop.f32.mrf.mxu0
  %v2047 = vadd.f32 0.0, %v2046
  %2048 = vmatmul.bf16.gmra.mxu0 %v2008
  %v2049 = vpop.f32.mrf.mxu0
  %v2050 = vadd.f32 0.0, %v2049
  %v2051 = vpop.f32.mrf.mxu0
  %v2052 = vadd.f32 0.0, %v2051
  %2053 = vmatmul.bf16.gmra.mxu0 %v2011
  %v2054 = vpop.f32.mrf.mxu0
  %v2055 = vadd.f32 0.0, %v2054
  %v2056 = vpop.f32.mrf.mxu0
  %v2057 = vadd.f32 0.0, %v2056
  %2058 = vmatmul.bf16.gmra.mxu0 %v2014
  %v2059 = vpop.f32.mrf.mxu0
  %v2060 = vadd.f32 0.0, %v2059
  %v2061 = vpop.f32.mrf.mxu0
  %v2062 = vadd.f32 0.0, %v2061
  %2063 = vmatmul.bf16.gmra.mxu0 %v2017
  %v2064 = vpop.f32.mrf.mxu0
  %v2065 = vadd.f32 0.0, %v2064
  %v2066 = vpop.f32.mrf.mxu0
  %v2067 = vadd.f32 0.0, %v2066
  %2068 = vmatmul.bf16.gmra.mxu0 %v2020
  %v2069 = vpop.f32.mrf.mxu0
  %v2070 = vadd.f32 0.0, %v2069
  %v2071 = vpop.f32.mrf.mxu0
  %v2072 = vadd.f32 0.0, %v2071
  %2073 = vdwg.mxu0
  %v2074 = vadd.f32 %v1935, %v2035
  %v2075 = vadd.f32 %v1937, %v2037
  %v2076 = vadd.f32 %v1940, %v2040
  %v2077 = vadd.f32 %v1942, %v2042
  %v2078 = vadd.f32 %v1945, %v2045
  %v2079 = vadd.f32 %v1947, %v2047
  %v2080 = vadd.f32 %v1950, %v2050
  %v2081 = vadd.f32 %v1952, %v2052
  %v2082 = vadd.f32 %v1955, %v2055
  %v2083 = vadd.f32 %v1957, %v2057
  %v2084 = vadd.f32 %v1960, %v2060
  %v2085 = vadd.f32 %v1962, %v2062
  %v2086 = vadd.f32 %v1965, %v2065
  %v2087 = vadd.f32 %v1967, %v2067
  %v2088 = vadd.f32 %v1970, %v2070
  %v2089 = vadd.f32 %v1972, %v2072
  %v2090 = vld [vmem:[%s612] sm:$0xff]
  %v2091 = vld [vmem:[%s612 + $0x10] sm:$0xff]
  %v2092 = vld [vmem:[%s612 + $0x20] sm:$0xff]
  %v2093 = vld [vmem:[%s612 + $0x30] sm:$0xff]
  %v2094 = vld [vmem:[%s612 + $0x40] sm:$0xff]
  %v2095 = vld [vmem:[%s612 + $0x50] sm:$0xff]
  %v2096 = vld [vmem:[%s612 + $0x60] sm:$0xff]
  %v2097 = vld [vmem:[%s612 + $0x70] sm:$0xff]
  %v2098 = vld [vmem:[%s612 + $0xa0] sm:$0xff]
  %v2099 = vld [vmem:[%s612 + $0xb0] sm:$0xff]
  %v2100 = vld [vmem:[%s612 + $0xc0] sm:$0xff]
  %v2101 = vld [vmem:[%s612 + $0xd0] sm:$0xff]
  %v2102 = vld [vmem:[%s612 + $0xe0] sm:$0xff]
  %v2103 = vld [vmem:[%s612 + $0xf0] sm:$0xff]
  %v2104 = vld [vmem:[%s612 + $0x100] sm:$0xff]
  %v2105 = vld [vmem:[%s612 + $0x110] sm:$0xff]
  %v2106 = vpack.c.bf16 %v2091, %v2090
  %v2107 = vpack.c.bf16 %v2093, %v2092
  %v2108 = vpack.c.bf16 %v2095, %v2094
  %v2109 = vpack.c.bf16 %v2097, %v2096
  %v2110 = vpack.c.bf16 %v2099, %v2098
  %v2111 = vpack.c.bf16 %v2101, %v2100
  %v2112 = vpack.c.bf16 %v2103, %v2102
  %v2113 = vpack.c.bf16 %v2105, %v2104
  %v2115 = vsel %vm58, %v2106, 0
  %v2118 = vsel %vm58, %v2107, 0
  %v2121 = vsel %vm58, %v2108, 0
  %v2124 = vsel %vm58, %v2109, 0
  %v2127 = vsel %vm58, %v2110, 0
  %v2130 = vsel %vm58, %v2111, 0
  %v2133 = vsel %vm58, %v2112, 0
  %v2136 = vsel %vm58, %v2113, 0
  %v2139 = vsel %vm701, %v43, 0
  %2141 = vmatpush.bf16.msra.mxu0 0
  %2142 = vmatpush.bf16.msra.mxu0 0
  %2143 = vmatpush.bf16.msra.mxu0 0
  %2144 = vmatpush.bf16.msra.mxu0 0
  %2145 = vmatpush.bf16.msra.mxu0 0
  %2146 = vmatpush.bf16.msra.mxu0 0
  %2147 = vmatpush.bf16.msra.mxu0 0
  %2148 = vmatpush.bf16.msra.mxu0 %v2139
  %2149 = vmatmul.bf16.gmra.mxu0 %v2115
  %v2150 = vpop.f32.mrf.mxu0
  %v2151 = vadd.f32 0.0, %v2150
  %v2152 = vpop.f32.mrf.mxu0
  %v2153 = vadd.f32 0.0, %v2152
  %2154 = vmatmul.bf16.gmra.mxu0 %v2118
  %v2155 = vpop.f32.mrf.mxu0
  %v2156 = vadd.f32 0.0, %v2155
  %v2157 = vpop.f32.mrf.mxu0
  %v2158 = vadd.f32 0.0, %v2157
  %2159 = vmatmul.bf16.gmra.mxu0 %v2121
  %v2160 = vpop.f32.mrf.mxu0
  %v2161 = vadd.f32 0.0, %v2160
  %v2162 = vpop.f32.mrf.mxu0
  %v2163 = vadd.f32 0.0, %v2162
  %2164 = vmatmul.bf16.gmra.mxu0 %v2124
  %v2165 = vpop.f32.mrf.mxu0
  %v2166 = vadd.f32 0.0, %v2165
  %v2167 = vpop.f32.mrf.mxu0
  %v2168 = vadd.f32 0.0, %v2167
  %2169 = vmatmul.bf16.gmra.mxu0 %v2127
  %v2170 = vpop.f32.mrf.mxu0
  %v2171 = vadd.f32 0.0, %v2170
  %v2172 = vpop.f32.mrf.mxu0
  %v2173 = vadd.f32 0.0, %v2172
  %2174 = vmatmul.bf16.gmra.mxu0 %v2130
  %v2175 = vpop.f32.mrf.mxu0
  %v2176 = vadd.f32 0.0, %v2175
  %v2177 = vpop.f32.mrf.mxu0
  %v2178 = vadd.f32 0.0, %v2177
  %2179 = vmatmul.bf16.gmra.mxu0 %v2133
  %v2180 = vpop.f32.mrf.mxu0
  %v2181 = vadd.f32 0.0, %v2180
  %v2182 = vpop.f32.mrf.mxu0
  %v2183 = vadd.f32 0.0, %v2182
  %2184 = vmatmul.bf16.gmra.mxu0 %v2136
  %v2185 = vpop.f32.mrf.mxu0
  %v2186 = vadd.f32 0.0, %v2185
  %v2187 = vpop.f32.mrf.mxu0
  %v2188 = vadd.f32 0.0, %v2187
  %2189 = vdwg.mxu0
  %v2190 = vadd.f32 %v2074, %v2151
  %v2191 = vadd.f32 %v2075, %v2153
  %v2192 = vadd.f32 %v2076, %v2156
  %v2193 = vadd.f32 %v2077, %v2158
  %v2194 = vadd.f32 %v2078, %v2161
  %v2195 = vadd.f32 %v2079, %v2163
  %v2196 = vadd.f32 %v2080, %v2166
  %v2197 = vadd.f32 %v2081, %v2168
  %v2198 = vadd.f32 %v2082, %v2171
  %v2199 = vadd.f32 %v2083, %v2173
  %v2200 = vadd.f32 %v2084, %v2176
  %v2201 = vadd.f32 %v2085, %v2178
  %v2202 = vadd.f32 %v2086, %v2181
  %v2203 = vadd.f32 %v2087, %v2183
  %v2204 = vadd.f32 %v2088, %v2186
  %v2205 = vadd.f32 %v2089, %v2188
  %v2206 = vld [vmem:[%s612 + $0x1] sm:$0xff]
  %v2207 = vld [vmem:[%s612 + $0x11] sm:$0xff]
  %v2208 = vld [vmem:[%s612 + $0x21] sm:$0xff]
  %v2209 = vld [vmem:[%s612 + $0x31] sm:$0xff]
  %v2210 = vld [vmem:[%s612 + $0x41] sm:$0xff]
  %v2211 = vld [vmem:[%s612 + $0x51] sm:$0xff]
  %v2212 = vld [vmem:[%s612 + $0x61] sm:$0xff]
  %v2213 = vld [vmem:[%s612 + $0x71] sm:$0xff]
  %v2214 = vld [vmem:[%s612 + $0xa1] sm:$0xff]
  %v2215 = vld [vmem:[%s612 + $0xb1] sm:$0xff]
  %v2216 = vld [vmem:[%s612 + $0xc1] sm:$0xff]
  %v2217 = vld [vmem:[%s612 + $0xd1] sm:$0xff]
  %v2218 = vld [vmem:[%s612 + $0xe1] sm:$0xff]
  %v2219 = vld [vmem:[%s612 + $0xf1] sm:$0xff]
  %v2220 = vld [vmem:[%s612 + $0x101] sm:$0xff]
  %v2221 = vld [vmem:[%s612 + $0x111] sm:$0xff]
  %v2222 = vpack.c.bf16 %v2207, %v2206
  %v2223 = vpack.c.bf16 %v2209, %v2208
  %v2224 = vpack.c.bf16 %v2211, %v2210
  %v2225 = vpack.c.bf16 %v2213, %v2212
  %v2226 = vpack.c.bf16 %v2215, %v2214
  %v2227 = vpack.c.bf16 %v2217, %v2216
  %v2228 = vpack.c.bf16 %v2219, %v2218
  %v2229 = vpack.c.bf16 %v2221, %v2220
  %v2231 = vsel %vm58, %v2222, 0
  %v2234 = vsel %vm58, %v2223, 0
  %v2237 = vsel %vm58, %v2224, 0
  %v2240 = vsel %vm58, %v2225, 0
  %v2243 = vsel %vm58, %v2226, 0
  %v2246 = vsel %vm58, %v2227, 0
  %v2249 = vsel %vm58, %v2228, 0
  %v2252 = vsel %vm58, %v2229, 0
  %v2255 = vsel %vm701, %v44, 0
  %2257 = vmatpush.bf16.msra.mxu0 0
  %2258 = vmatpush.bf16.msra.mxu0 0
  %2259 = vmatpush.bf16.msra.mxu0 0
  %2260 = vmatpush.bf16.msra.mxu0 0
  %2261 = vmatpush.bf16.msra.mxu0 0
  %2262 = vmatpush.bf16.msra.mxu0 0
  %2263 = vmatpush.bf16.msra.mxu0 0
  %2264 = vmatpush.bf16.msra.mxu0 %v2255
  %2265 = vmatmul.bf16.gmra.mxu0 %v2231
  %v2266 = vpop.f32.mrf.mxu0
  %v2267 = vadd.f32 0.0, %v2266
  %v2268 = vpop.f32.mrf.mxu0
  %v2269 = vadd.f32 0.0, %v2268
  %2270 = vmatmul.bf16.gmra.mxu0 %v2234
  %v2271 = vpop.f32.mrf.mxu0
  %v2272 = vadd.f32 0.0, %v2271
  %v2273 = vpop.f32.mrf.mxu0
  %v2274 = vadd.f32 0.0, %v2273
  %2275 = vmatmul.bf16.gmra.mxu0 %v2237
  %v2276 = vpop.f32.mrf.mxu0
  %v2277 = vadd.f32 0.0, %v2276
  %v2278 = vpop.f32.mrf.mxu0
  %v2279 = vadd.f32 0.0, %v2278
  %2280 = vmatmul.bf16.gmra.mxu0 %v2240
  %v2281 = vpop.f32.mrf.mxu0
  %v2282 = vadd.f32 0.0, %v2281
  %v2283 = vpop.f32.mrf.mxu0
  %v2284 = vadd.f32 0.0, %v2283
  %2285 = vmatmul.bf16.gmra.mxu0 %v2243
  %v2286 = vpop.f32.mrf.mxu0
  %v2287 = vadd.f32 0.0, %v2286
  %v2288 = vpop.f32.mrf.mxu0
  %v2289 = vadd.f32 0.0, %v2288
  %2290 = vmatmul.bf16.gmra.mxu0 %v2246
  %v2291 = vpop.f32.mrf.mxu0
  %v2292 = vadd.f32 0.0, %v2291
  %v2293 = vpop.f32.mrf.mxu0
  %v2294 = vadd.f32 0.0, %v2293
  %2295 = vmatmul.bf16.gmra.mxu0 %v2249
  %v2296 = vpop.f32.mrf.mxu0
  %v2297 = vadd.f32 0.0, %v2296
  %v2298 = vpop.f32.mrf.mxu0
  %v2299 = vadd.f32 0.0, %v2298
  %2300 = vmatmul.bf16.gmra.mxu0 %v2252
  %v2301 = vpop.f32.mrf.mxu0
  %v2302 = vadd.f32 0.0, %v2301
  %v2303 = vpop.f32.mrf.mxu0
  %v2304 = vadd.f32 0.0, %v2303
  %2305 = vdwg.mxu0
  %v2306 = vadd.f32 %v2190, %v2267
  %v2307 = vadd.f32 %v2191, %v2269
  %v2308 = vadd.f32 %v2192, %v2272
  %v2309 = vadd.f32 %v2193, %v2274
  %v2310 = vadd.f32 %v2194, %v2277
  %v2311 = vadd.f32 %v2195, %v2279
  %v2312 = vadd.f32 %v2196, %v2282
  %v2313 = vadd.f32 %v2197, %v2284
  %v2314 = vadd.f32 %v2198, %v2287
  %v2315 = vadd.f32 %v2199, %v2289
  %v2316 = vadd.f32 %v2200, %v2292
  %v2317 = vadd.f32 %v2201, %v2294
  %v2318 = vadd.f32 %v2202, %v2297
  %v2319 = vadd.f32 %v2203, %v2299
  %v2320 = vadd.f32 %v2204, %v2302
  %v2321 = vadd.f32 %v2205, %v2304
  %v2322 = vld [vmem:[%s612 + $0x2] sm:$0xff]
  %v2323 = vld [vmem:[%s612 + $0x12] sm:$0xff]
  %v2324 = vld [vmem:[%s612 + $0x22] sm:$0xff]
  %v2325 = vld [vmem:[%s612 + $0x32] sm:$0xff]
  %v2326 = vld [vmem:[%s612 + $0x42] sm:$0xff]
  %v2327 = vld [vmem:[%s612 + $0x52] sm:$0xff]
  %v2328 = vld [vmem:[%s612 + $0x62] sm:$0xff]
  %v2329 = vld [vmem:[%s612 + $0x72] sm:$0xff]
  %v2330 = vld [vmem:[%s612 + $0xa2] sm:$0xff]
  %v2331 = vld [vmem:[%s612 + $0xb2] sm:$0xff]
  %v2332 = vld [vmem:[%s612 + $0xc2] sm:$0xff]
  %v2333 = vld [vmem:[%s612 + $0xd2] sm:$0xff]
  %v2334 = vld [vmem:[%s612 + $0xe2] sm:$0xff]
  %v2335 = vld [vmem:[%s612 + $0xf2] sm:$0xff]
  %v2336 = vld [vmem:[%s612 + $0x102] sm:$0xff]
  %v2337 = vld [vmem:[%s612 + $0x112] sm:$0xff]
  %v2338 = vpack.c.bf16 %v2323, %v2322
  %v2339 = vpack.c.bf16 %v2325, %v2324
  %v2340 = vpack.c.bf16 %v2327, %v2326
  %v2341 = vpack.c.bf16 %v2329, %v2328
  %v2342 = vpack.c.bf16 %v2331, %v2330
  %v2343 = vpack.c.bf16 %v2333, %v2332
  %v2344 = vpack.c.bf16 %v2335, %v2334
  %v2345 = vpack.c.bf16 %v2337, %v2336
  %v2347 = vsel %vm58, %v2338, 0
  %v2350 = vsel %vm58, %v2339, 0
  %v2353 = vsel %vm58, %v2340, 0
  %v2356 = vsel %vm58, %v2341, 0
  %v2359 = vsel %vm58, %v2342, 0
  %v2362 = vsel %vm58, %v2343, 0
  %v2365 = vsel %vm58, %v2344, 0
  %v2368 = vsel %vm58, %v2345, 0
  %v2371 = vsel %vm701, %v45, 0
  %2373 = vmatpush.bf16.msra.mxu0 0
  %2374 = vmatpush.bf16.msra.mxu0 0
  %2375 = vmatpush.bf16.msra.mxu0 0
  %2376 = vmatpush.bf16.msra.mxu0 0
  %2377 = vmatpush.bf16.msra.mxu0 0
  %2378 = vmatpush.bf16.msra.mxu0 0
  %2379 = vmatpush.bf16.msra.mxu0 0
  %2380 = vmatpush.bf16.msra.mxu0 %v2371
  %2381 = vmatmul.bf16.gmra.mxu0 %v2347
  %v2382 = vpop.f32.mrf.mxu0
  %v2383 = vadd.f32 0.0, %v2382
  %v2384 = vpop.f32.mrf.mxu0
  %v2385 = vadd.f32 0.0, %v2384
  %2386 = vmatmul.bf16.gmra.mxu0 %v2350
  %v2387 = vpop.f32.mrf.mxu0
  %v2388 = vadd.f32 0.0, %v2387
  %v2389 = vpop.f32.mrf.mxu0
  %v2390 = vadd.f32 0.0, %v2389
  %2391 = vmatmul.bf16.gmra.mxu0 %v2353
  %v2392 = vpop.f32.mrf.mxu0
  %v2393 = vadd.f32 0.0, %v2392
  %v2394 = vpop.f32.mrf.mxu0
  %v2395 = vadd.f32 0.0, %v2394
  %2396 = vmatmul.bf16.gmra.mxu0 %v2356
  %v2397 = vpop.f32.mrf.mxu0
  %v2398 = vadd.f32 0.0, %v2397
  %v2399 = vpop.f32.mrf.mxu0
  %v2400 = vadd.f32 0.0, %v2399
  %2401 = vmatmul.bf16.gmra.mxu0 %v2359
  %v2402 = vpop.f32.mrf.mxu0
  %v2403 = vadd.f32 0.0, %v2402
  %v2404 = vpop.f32.mrf.mxu0
  %v2405 = vadd.f32 0.0, %v2404
  %2406 = vmatmul.bf16.gmra.mxu0 %v2362
  %v2407 = vpop.f32.mrf.mxu0
  %v2408 = vadd.f32 0.0, %v2407
  %v2409 = vpop.f32.mrf.mxu0
  %v2410 = vadd.f32 0.0, %v2409
  %2411 = vmatmul.bf16.gmra.mxu0 %v2365
  %v2412 = vpop.f32.mrf.mxu0
  %v2413 = vadd.f32 0.0, %v2412
  %v2414 = vpop.f32.mrf.mxu0
  %v2415 = vadd.f32 0.0, %v2414
  %2416 = vmatmul.bf16.gmra.mxu0 %v2368
  %v2417 = vpop.f32.mrf.mxu0
  %v2418 = vadd.f32 0.0, %v2417
  %v2419 = vpop.f32.mrf.mxu0
  %v2420 = vadd.f32 0.0, %v2419
  %2421 = vdwg.mxu0
  %v2422 = vadd.f32 %v2306, %v2383
  %v2423 = vadd.f32 %v2307, %v2385
  %v2424 = vadd.f32 %v2308, %v2388
  %v2425 = vadd.f32 %v2309, %v2390
  %v2426 = vadd.f32 %v2310, %v2393
  %v2427 = vadd.f32 %v2311, %v2395
  %v2428 = vadd.f32 %v2312, %v2398
  %v2429 = vadd.f32 %v2313, %v2400
  %v2430 = vadd.f32 %v2314, %v2403
  %v2431 = vadd.f32 %v2315, %v2405
  %v2432 = vadd.f32 %v2316, %v2408
  %v2433 = vadd.f32 %v2317, %v2410
  %v2434 = vadd.f32 %v2318, %v2413
  %v2435 = vadd.f32 %v2319, %v2415
  %v2436 = vadd.f32 %v2320, %v2418
  %v2437 = vadd.f32 %v2321, %v2420
  %v2438 = vld [vmem:[%s1294] sm:$0xff]
  %v2439 = vld [vmem:[%s1294 + $0x10] sm:$0xff]
  %v2440 = vld [vmem:[%s1294 + $0x20] sm:$0xff]
  %v2441 = vld [vmem:[%s1294 + $0x30] sm:$0xff]
  %v2442 = vld [vmem:[%s1294 + $0x40] sm:$0xff]
  %v2443 = vld [vmem:[%s1294 + $0x50] sm:$0xff]
  %v2444 = vld [vmem:[%s1294 + $0x60] sm:$0xff]
  %v2445 = vld [vmem:[%s1294 + $0x70] sm:$0xff]
  %v2446 = vld [vmem:[%s1294 + $0xa0] sm:$0xff]
  %v2447 = vld [vmem:[%s1294 + $0xb0] sm:$0xff]
  %v2448 = vld [vmem:[%s1294 + $0xc0] sm:$0xff]
  %v2449 = vld [vmem:[%s1294 + $0xd0] sm:$0xff]
  %v2450 = vld [vmem:[%s1294 + $0xe0] sm:$0xff]
  %v2451 = vld [vmem:[%s1294 + $0xf0] sm:$0xff]
  %v2452 = vld [vmem:[%s1294 + $0x100] sm:$0xff]
  %v2453 = vld [vmem:[%s1294 + $0x110] sm:$0xff]
  %v2454 = vpack.c.bf16 %v2439, %v2438
  %v2455 = vpack.c.bf16 %v2441, %v2440
  %v2456 = vpack.c.bf16 %v2443, %v2442
  %v2457 = vpack.c.bf16 %v2445, %v2444
  %v2458 = vpack.c.bf16 %v2447, %v2446
  %v2459 = vpack.c.bf16 %v2449, %v2448
  %v2460 = vpack.c.bf16 %v2451, %v2450
  %v2461 = vpack.c.bf16 %v2453, %v2452
  %v2463 = vsel %vm58, %v2454, 0
  %v2466 = vsel %vm58, %v2455, 0
  %v2469 = vsel %vm58, %v2456, 0
  %v2472 = vsel %vm58, %v2457, 0
  %v2475 = vsel %vm58, %v2458, 0
  %v2478 = vsel %vm58, %v2459, 0
  %v2481 = vsel %vm58, %v2460, 0
  %v2484 = vsel %vm58, %v2461, 0
  %v2487 = vsel %vm701, %v46, 0
  %2489 = vmatpush.bf16.msra.mxu0 0
  %2490 = vmatpush.bf16.msra.mxu0 0
  %2491 = vmatpush.bf16.msra.mxu0 0
  %2492 = vmatpush.bf16.msra.mxu0 0
  %2493 = vmatpush.bf16.msra.mxu0 0
  %2494 = vmatpush.bf16.msra.mxu0 0
  %2495 = vmatpush.bf16.msra.mxu0 0
  %2496 = vmatpush.bf16.msra.mxu0 %v2487
  %2497 = vmatmul.bf16.gmra.mxu0 %v2463
  %v2498 = vpop.f32.mrf.mxu0
  %v2499 = vadd.f32 0.0, %v2498
  %v2500 = vpop.f32.mrf.mxu0
  %v2501 = vadd.f32 0.0, %v2500
  %2502 = vmatmul.bf16.gmra.mxu0 %v2466
  %v2503 = vpop.f32.mrf.mxu0
  %v2504 = vadd.f32 0.0, %v2503
  %v2505 = vpop.f32.mrf.mxu0
  %v2506 = vadd.f32 0.0, %v2505
  %2507 = vmatmul.bf16.gmra.mxu0 %v2469
  %v2508 = vpop.f32.mrf.mxu0
  %v2509 = vadd.f32 0.0, %v2508
  %v2510 = vpop.f32.mrf.mxu0
  %v2511 = vadd.f32 0.0, %v2510
  %2512 = vmatmul.bf16.gmra.mxu0 %v2472
  %v2513 = vpop.f32.mrf.mxu0
  %v2514 = vadd.f32 0.0, %v2513
  %v2515 = vpop.f32.mrf.mxu0
  %v2516 = vadd.f32 0.0, %v2515
  %2517 = vmatmul.bf16.gmra.mxu0 %v2475
  %v2518 = vpop.f32.mrf.mxu0
  %v2519 = vadd.f32 0.0, %v2518
  %v2520 = vpop.f32.mrf.mxu0
  %v2521 = vadd.f32 0.0, %v2520
  %2522 = vmatmul.bf16.gmra.mxu0 %v2478
  %v2523 = vpop.f32.mrf.mxu0
  %v2524 = vadd.f32 0.0, %v2523
  %v2525 = vpop.f32.mrf.mxu0
  %v2526 = vadd.f32 0.0, %v2525
  %2527 = vmatmul.bf16.gmra.mxu0 %v2481
  %v2528 = vpop.f32.mrf.mxu0
  %v2529 = vadd.f32 0.0, %v2528
  %v2530 = vpop.f32.mrf.mxu0
  %v2531 = vadd.f32 0.0, %v2530
  %2532 = vmatmul.bf16.gmra.mxu0 %v2484
  %v2533 = vpop.f32.mrf.mxu0
  %v2534 = vadd.f32 0.0, %v2533
  %v2535 = vpop.f32.mrf.mxu0
  %v2536 = vadd.f32 0.0, %v2535
  %2537 = vdwg.mxu0
  %v2538 = vadd.f32 %v2422, %v2499
  %v2539 = vadd.f32 %v2423, %v2501
  %v2540 = vadd.f32 %v2424, %v2504
  %v2541 = vadd.f32 %v2425, %v2506
  %v2542 = vadd.f32 %v2426, %v2509
  %v2543 = vadd.f32 %v2427, %v2511
  %v2544 = vadd.f32 %v2428, %v2514
  %v2545 = vadd.f32 %v2429, %v2516
  %v2546 = vadd.f32 %v2430, %v2519
  %v2547 = vadd.f32 %v2431, %v2521
  %v2548 = vadd.f32 %v2432, %v2524
  %v2549 = vadd.f32 %v2433, %v2526
  %v2550 = vadd.f32 %v2434, %v2529
  %v2551 = vadd.f32 %v2435, %v2531
  %v2552 = vadd.f32 %v2436, %v2534
  %v2553 = vadd.f32 %v2437, %v2536
  %v2554 = vld [vmem:[%s1294 + $0x1] sm:$0xff]
  %v2555 = vld [vmem:[%s1294 + $0x11] sm:$0xff]
  %v2556 = vld [vmem:[%s1294 + $0x21] sm:$0xff]
  %v2557 = vld [vmem:[%s1294 + $0x31] sm:$0xff]
  %v2558 = vld [vmem:[%s1294 + $0x41] sm:$0xff]
  %v2559 = vld [vmem:[%s1294 + $0x51] sm:$0xff]
  %v2560 = vld [vmem:[%s1294 + $0x61] sm:$0xff]
  %v2561 = vld [vmem:[%s1294 + $0x71] sm:$0xff]
  %v2562 = vld [vmem:[%s1294 + $0xa1] sm:$0xff]
  %v2563 = vld [vmem:[%s1294 + $0xb1] sm:$0xff]
  %v2564 = vld [vmem:[%s1294 + $0xc1] sm:$0xff]
  %v2565 = vld [vmem:[%s1294 + $0xd1] sm:$0xff]
  %v2566 = vld [vmem:[%s1294 + $0xe1] sm:$0xff]
  %v2567 = vld [vmem:[%s1294 + $0xf1] sm:$0xff]
  %v2568 = vld [vmem:[%s1294 + $0x101] sm:$0xff]
  %v2569 = vld [vmem:[%s1294 + $0x111] sm:$0xff]
  %v2570 = vpack.c.bf16 %v2555, %v2554
  %v2571 = vpack.c.bf16 %v2557, %v2556
  %v2572 = vpack.c.bf16 %v2559, %v2558
  %v2573 = vpack.c.bf16 %v2561, %v2560
  %v2574 = vpack.c.bf16 %v2563, %v2562
  %v2575 = vpack.c.bf16 %v2565, %v2564
  %v2576 = vpack.c.bf16 %v2567, %v2566
  %v2577 = vpack.c.bf16 %v2569, %v2568
  %v2579 = vsel %vm58, %v2570, 0
  %v2582 = vsel %vm58, %v2571, 0
  %v2585 = vsel %vm58, %v2572, 0
  %v2588 = vsel %vm58, %v2573, 0
  %v2591 = vsel %vm58, %v2574, 0
  %v2594 = vsel %vm58, %v2575, 0
  %v2597 = vsel %vm58, %v2576, 0
  %v2600 = vsel %vm58, %v2577, 0
  %v2603 = vsel %vm701, %v47, 0
  %2605 = vmatpush.bf16.msra.mxu0 0
  %2606 = vmatpush.bf16.msra.mxu0 0
  %2607 = vmatpush.bf16.msra.mxu0 0
  %2608 = vmatpush.bf16.msra.mxu0 0
  %2609 = vmatpush.bf16.msra.mxu0 0
  %2610 = vmatpush.bf16.msra.mxu0 0
  %2611 = vmatpush.bf16.msra.mxu0 0
  %2612 = vmatpush.bf16.msra.mxu0 %v2603
  %2613 = vmatmul.bf16.gmra.mxu0 %v2579
  %v2614 = vpop.f32.mrf.mxu0
  %v2615 = vadd.f32 0.0, %v2614
  %v2616 = vpop.f32.mrf.mxu0
  %v2617 = vadd.f32 0.0, %v2616
  %2618 = vmatmul.bf16.gmra.mxu0 %v2582
  %v2619 = vpop.f32.mrf.mxu0
  %v2620 = vadd.f32 0.0, %v2619
  %v2621 = vpop.f32.mrf.mxu0
  %v2622 = vadd.f32 0.0, %v2621
  %2623 = vmatmul.bf16.gmra.mxu0 %v2585
  %v2624 = vpop.f32.mrf.mxu0
  %v2625 = vadd.f32 0.0, %v2624
  %v2626 = vpop.f32.mrf.mxu0
  %v2627 = vadd.f32 0.0, %v2626
  %2628 = vmatmul.bf16.gmra.mxu0 %v2588
  %v2629 = vpop.f32.mrf.mxu0
  %v2630 = vadd.f32 0.0, %v2629
  %v2631 = vpop.f32.mrf.mxu0
  %v2632 = vadd.f32 0.0, %v2631
  %2633 = vmatmul.bf16.gmra.mxu0 %v2591
  %v2634 = vpop.f32.mrf.mxu0
  %v2635 = vadd.f32 0.0, %v2634
  %v2636 = vpop.f32.mrf.mxu0
  %v2637 = vadd.f32 0.0, %v2636
  %2638 = vmatmul.bf16.gmra.mxu0 %v2594
  %v2639 = vpop.f32.mrf.mxu0
  %v2640 = vadd.f32 0.0, %v2639
  %v2641 = vpop.f32.mrf.mxu0
  %v2642 = vadd.f32 0.0, %v2641
  %2643 = vmatmul.bf16.gmra.mxu0 %v2597
  %v2644 = vpop.f32.mrf.mxu0
  %v2645 = vadd.f32 0.0, %v2644
  %v2646 = vpop.f32.mrf.mxu0
  %v2647 = vadd.f32 0.0, %v2646
  %2648 = vmatmul.bf16.gmra.mxu0 %v2600
  %v2649 = vpop.f32.mrf.mxu0
  %v2650 = vadd.f32 0.0, %v2649
  %v2651 = vpop.f32.mrf.mxu0
  %v2652 = vadd.f32 0.0, %v2651
  %2653 = vdwg.mxu0
  %v2654 = vadd.f32 %v2538, %v2615
  %v2655 = vadd.f32 %v2539, %v2617
  %v2656 = vadd.f32 %v2540, %v2620
  %v2657 = vadd.f32 %v2541, %v2622
  %v2658 = vadd.f32 %v2542, %v2625
  %v2659 = vadd.f32 %v2543, %v2627
  %v2660 = vadd.f32 %v2544, %v2630
  %v2661 = vadd.f32 %v2545, %v2632
  %v2662 = vadd.f32 %v2546, %v2635
  %v2663 = vadd.f32 %v2547, %v2637
  %v2664 = vadd.f32 %v2548, %v2640
  %v2665 = vadd.f32 %v2549, %v2642
  %v2666 = vadd.f32 %v2550, %v2645
  %v2667 = vadd.f32 %v2551, %v2647
  %v2668 = vadd.f32 %v2552, %v2650
  %v2669 = vadd.f32 %v2553, %v2652
  %v2670 = vld [vmem:[%s1294 + $0x2] sm:$0xff]
  %v2671 = vld [vmem:[%s1294 + $0x12] sm:$0xff]
  %v2672 = vld [vmem:[%s1294 + $0x22] sm:$0xff]
  %v2673 = vld [vmem:[%s1294 + $0x32] sm:$0xff]
  %v2674 = vld [vmem:[%s1294 + $0x42] sm:$0xff]
  %v2675 = vld [vmem:[%s1294 + $0x52] sm:$0xff]
  %v2676 = vld [vmem:[%s1294 + $0x62] sm:$0xff]
  %v2677 = vld [vmem:[%s1294 + $0x72] sm:$0xff]
  %v2678 = vld [vmem:[%s1294 + $0xa2] sm:$0xff]
  %v2679 = vld [vmem:[%s1294 + $0xb2] sm:$0xff]
  %v2680 = vld [vmem:[%s1294 + $0xc2] sm:$0xff]
  %v2681 = vld [vmem:[%s1294 + $0xd2] sm:$0xff]
  %v2682 = vld [vmem:[%s1294 + $0xe2] sm:$0xff]
  %v2683 = vld [vmem:[%s1294 + $0xf2] sm:$0xff]
  %v2684 = vld [vmem:[%s1294 + $0x102] sm:$0xff]
  %v2685 = vld [vmem:[%s1294 + $0x112] sm:$0xff]
  %v2686 = vpack.c.bf16 %v2671, %v2670
  %v2687 = vpack.c.bf16 %v2673, %v2672
  %v2688 = vpack.c.bf16 %v2675, %v2674
  %v2689 = vpack.c.bf16 %v2677, %v2676
  %v2690 = vpack.c.bf16 %v2679, %v2678
  %v2691 = vpack.c.bf16 %v2681, %v2680
  %v2692 = vpack.c.bf16 %v2683, %v2682
  %v2693 = vpack.c.bf16 %v2685, %v2684
  %v2695 = vsel %vm58, %v2686, 0
  %v2698 = vsel %vm58, %v2687, 0
  %v2701 = vsel %vm58, %v2688, 0
  %v2704 = vsel %vm58, %v2689, 0
  %v2707 = vsel %vm58, %v2690, 0
  %v2710 = vsel %vm58, %v2691, 0
  %v2713 = vsel %vm58, %v2692, 0
  %v2716 = vsel %vm58, %v2693, 0
  %v2719 = vsel %vm701, %v48, 0
  %2721 = vmatpush.bf16.msra.mxu0 0
  %2722 = vmatpush.bf16.msra.mxu0 0
  %2723 = vmatpush.bf16.msra.mxu0 0
  %2724 = vmatpush.bf16.msra.mxu0 0
  %2725 = vmatpush.bf16.msra.mxu0 0
  %2726 = vmatpush.bf16.msra.mxu0 0
  %2727 = vmatpush.bf16.msra.mxu0 0
  %2728 = vmatpush.bf16.msra.mxu0 %v2719
  %2729 = vmatmul.bf16.gmra.mxu0 %v2695
  %v2730 = vpop.f32.mrf.mxu0
  %v2731 = vadd.f32 0.0, %v2730
  %v2732 = vpop.f32.mrf.mxu0
  %v2733 = vadd.f32 0.0, %v2732
  %2734 = vmatmul.bf16.gmra.mxu0 %v2698
  %v2735 = vpop.f32.mrf.mxu0
  %v2736 = vadd.f32 0.0, %v2735
  %v2737 = vpop.f32.mrf.mxu0
  %v2738 = vadd.f32 0.0, %v2737
  %2739 = vmatmul.bf16.gmra.mxu0 %v2701
  %v2740 = vpop.f32.mrf.mxu0
  %v2741 = vadd.f32 0.0, %v2740
  %v2742 = vpop.f32.mrf.mxu0
  %v2743 = vadd.f32 0.0, %v2742
  %2744 = vmatmul.bf16.gmra.mxu0 %v2704
  %v2745 = vpop.f32.mrf.mxu0
  %v2746 = vadd.f32 0.0, %v2745
  %v2747 = vpop.f32.mrf.mxu0
  %v2748 = vadd.f32 0.0, %v2747
  %2749 = vmatmul.bf16.gmra.mxu0 %v2707
  %v2750 = vpop.f32.mrf.mxu0
  %v2751 = vadd.f32 0.0, %v2750
  %v2752 = vpop.f32.mrf.mxu0
  %v2753 = vadd.f32 0.0, %v2752
  %2754 = vmatmul.bf16.gmra.mxu0 %v2710
  %v2755 = vpop.f32.mrf.mxu0
  %v2756 = vadd.f32 0.0, %v2755
  %v2757 = vpop.f32.mrf.mxu0
  %v2758 = vadd.f32 0.0, %v2757
  %2759 = vmatmul.bf16.gmra.mxu0 %v2713
  %v2760 = vpop.f32.mrf.mxu0
  %v2761 = vadd.f32 0.0, %v2760
  %v2762 = vpop.f32.mrf.mxu0
  %v2763 = vadd.f32 0.0, %v2762
  %2764 = vmatmul.bf16.gmra.mxu0 %v2716
  %v2765 = vpop.f32.mrf.mxu0
  %v2766 = vadd.f32 0.0, %v2765
  %v2767 = vpop.f32.mrf.mxu0
  %v2768 = vadd.f32 0.0, %v2767
  %2769 = vdwg.mxu0
  %v2770 = vadd.f32 %v2654, %v2731
  %v2771 = vadd.f32 %v2655, %v2733
  %v2772 = vadd.f32 %v2656, %v2736
  %v2773 = vadd.f32 %v2657, %v2738
  %v2774 = vadd.f32 %v2658, %v2741
  %v2775 = vadd.f32 %v2659, %v2743
  %v2776 = vadd.f32 %v2660, %v2746
  %v2777 = vadd.f32 %v2661, %v2748
  %v2778 = vadd.f32 %v2662, %v2751
  %v2779 = vadd.f32 %v2663, %v2753
  %v2780 = vadd.f32 %v2664, %v2756
  %v2781 = vadd.f32 %v2665, %v2758
  %v2782 = vadd.f32 %v2666, %v2761
  %v2783 = vadd.f32 %v2667, %v2763
  %v2784 = vadd.f32 %v2668, %v2766
  %v2785 = vadd.f32 %v2669, %v2768
  %v2787 = vperm.slane %v21, 0
  %v2789 = vadd.f32 %v2770, %v2787
  %v2790 = vadd.f32 %v2771, %v2787
  %v2791 = vadd.f32 %v2772, %v2787
  %v2792 = vadd.f32 %v2773, %v2787
  %v2793 = vadd.f32 %v2774, %v2787
  %v2794 = vadd.f32 %v2775, %v2787
  %v2795 = vadd.f32 %v2776, %v2787
  %v2796 = vadd.f32 %v2777, %v2787
  %v2797 = vadd.f32 %v2778, %v2787
  %v2798 = vadd.f32 %v2779, %v2787
  %v2799 = vadd.f32 %v2780, %v2787
  %v2800 = vadd.f32 %v2781, %v2787
  %v2801 = vadd.f32 %v2782, %v2787
  %v2802 = vadd.f32 %v2783, %v2787
  %v2803 = vadd.f32 %v2784, %v2787
  %v2804 = vadd.f32 %v2785, %v2787
  %v2805 = vmax.f32 %v2789, 0.0
  %v2806 = vmax.f32 %v2790, 0.0
  %v2807 = vmax.f32 %v2791, 0.0
  %v2808 = vmax.f32 %v2792, 0.0
  %v2809 = vmax.f32 %v2793, 0.0
  %v2810 = vmax.f32 %v2794, 0.0
  %v2811 = vmax.f32 %v2795, 0.0
  %v2812 = vmax.f32 %v2796, 0.0
  %v2813 = vmax.f32 %v2797, 0.0
  %v2814 = vmax.f32 %v2798, 0.0
  %v2815 = vmax.f32 %v2799, 0.0
  %v2816 = vmax.f32 %v2800, 0.0
  %v2817 = vmax.f32 %v2801, 0.0
  %v2818 = vmax.f32 %v2802, 0.0
  %v2819 = vmax.f32 %v2803, 0.0
  %v2820 = vmax.f32 %v2804, 0.0
  %2821 = vst.msk [vmem:[%s612 + $0x1] sm:$0xff] %vm58, %v2805
  %2822 = vst.msk [vmem:[%s612 + $0x11] sm:$0xff] %vm58, %v2806
  %2823 = vst.msk [vmem:[%s612 + $0x21] sm:$0xff] %vm58, %v2807
  %2824 = vst.msk [vmem:[%s612 + $0x31] sm:$0xff] %vm58, %v2808
  %2825 = vst.msk [vmem:[%s612 + $0x41] sm:$0xff] %vm58, %v2809
  %2826 = vst.msk [vmem:[%s612 + $0x51] sm:$0xff] %vm58, %v2810
  %2827 = vst.msk [vmem:[%s612 + $0x61] sm:$0xff] %vm58, %v2811
  %2828 = vst.msk [vmem:[%s612 + $0x71] sm:$0xff] %vm58, %v2812
  %2829 = vst.msk [vmem:[%s612 + $0xa1] sm:$0xff] %vm58, %v2813
  %2830 = vst.msk [vmem:[%s612 + $0xb1] sm:$0xff] %vm58, %v2814
  %2831 = vst.msk [vmem:[%s612 + $0xc1] sm:$0xff] %vm58, %v2815
  %2832 = vst.msk [vmem:[%s612 + $0xd1] sm:$0xff] %vm58, %v2816
  %2833 = vst.msk [vmem:[%s612 + $0xe1] sm:$0xff] %vm58, %v2817
  %2834 = vst.msk [vmem:[%s612 + $0xf1] sm:$0xff] %vm58, %v2818
  %2835 = vst.msk [vmem:[%s612 + $0x101] sm:$0xff] %vm58, %v2819
  %2836 = vst.msk [vmem:[%s612 + $0x111] sm:$0xff] %vm58, %v2820
  %v2837 = vld [vmem:[#allocation2] sm:$0xff]
  %v2838 = vld [vmem:[#allocation2 + $0x10] sm:$0xff]
  %v2839 = vld [vmem:[#allocation2 + $0x20] sm:$0xff]
  %v2840 = vld [vmem:[#allocation2 + $0x30] sm:$0xff]
  %v2841 = vld [vmem:[#allocation2 + $0x40] sm:$0xff]
  %v2842 = vld [vmem:[#allocation2 + $0x50] sm:$0xff]
  %v2843 = vld [vmem:[#allocation2 + $0x60] sm:$0xff]
  %v2844 = vld [vmem:[#allocation2 + $0x70] sm:$0xff]
  %v2845 = vld [vmem:[#allocation2 + $0xa0] sm:$0xff]
  %v2846 = vld [vmem:[#allocation2 + $0xb0] sm:$0xff]
  %v2847 = vld [vmem:[#allocation2 + $0xc0] sm:$0xff]
  %v2848 = vld [vmem:[#allocation2 + $0xd0] sm:$0xff]
  %v2849 = vld [vmem:[#allocation2 + $0xe0] sm:$0xff]
  %v2850 = vld [vmem:[#allocation2 + $0xf0] sm:$0xff]
  %v2851 = vld [vmem:[#allocation2 + $0x100] sm:$0xff]
  %v2852 = vld [vmem:[#allocation2 + $0x110] sm:$0xff]
  %v2853 = vpack.c.bf16 %v2838, %v2837
  %v2854 = vpack.c.bf16 %v2840, %v2839
  %v2855 = vpack.c.bf16 %v2842, %v2841
  %v2856 = vpack.c.bf16 %v2844, %v2843
  %v2857 = vpack.c.bf16 %v2846, %v2845
  %v2858 = vpack.c.bf16 %v2848, %v2847
  %v2859 = vpack.c.bf16 %v2850, %v2849
  %v2860 = vpack.c.bf16 %v2852, %v2851
  %v2861 = vld [vmem:[#allocation2 + $0x1] sm:$0xff]
  %v2862 = vld [vmem:[#allocation2 + $0x11] sm:$0xff]
  %v2863 = vld [vmem:[#allocation2 + $0x21] sm:$0xff]
  %v2864 = vld [vmem:[#allocation2 + $0x31] sm:$0xff]
  %v2865 = vld [vmem:[#allocation2 + $0x41] sm:$0xff]
  %v2866 = vld [vmem:[#allocation2 + $0x51] sm:$0xff]
  %v2867 = vld [vmem:[#allocation2 + $0x61] sm:$0xff]
  %v2868 = vld [vmem:[#allocation2 + $0x71] sm:$0xff]
  %v2869 = vld [vmem:[#allocation2 + $0xa1] sm:$0xff]
  %v2870 = vld [vmem:[#allocation2 + $0xb1] sm:$0xff]
  %v2871 = vld [vmem:[#allocation2 + $0xc1] sm:$0xff]
  %v2872 = vld [vmem:[#allocation2 + $0xd1] sm:$0xff]
  %v2873 = vld [vmem:[#allocation2 + $0xe1] sm:$0xff]
  %v2874 = vld [vmem:[#allocation2 + $0xf1] sm:$0xff]
  %v2875 = vld [vmem:[#allocation2 + $0x101] sm:$0xff]
  %v2876 = vld [vmem:[#allocation2 + $0x111] sm:$0xff]
  %v2877 = vpack.c.bf16 %v2862, %v2861
  %v2878 = vpack.c.bf16 %v2864, %v2863
  %v2879 = vpack.c.bf16 %v2866, %v2865
  %v2880 = vpack.c.bf16 %v2868, %v2867
  %v2881 = vpack.c.bf16 %v2870, %v2869
  %v2882 = vpack.c.bf16 %v2872, %v2871
  %v2883 = vpack.c.bf16 %v2874, %v2873
  %v2884 = vpack.c.bf16 %v2876, %v2875
  %v2886 = vsel %vm58, %v2877, 0
  %v2889 = vsel %vm58, %v2878, 0
  %v2892 = vsel %vm58, %v2879, 0
  %v2895 = vsel %vm58, %v2880, 0
  %v2898 = vsel %vm58, %v2881, 0
  %v2901 = vsel %vm58, %v2882, 0
  %v2904 = vsel %vm58, %v2883, 0
  %v2907 = vsel %vm58, %v2884, 0
  %v2910 = vsel %vm701, %v50, 0
  %2912 = vmatpush.bf16.msra.mxu0 0
  %2913 = vmatpush.bf16.msra.mxu0 0
  %2914 = vmatpush.bf16.msra.mxu0 0
  %2915 = vmatpush.bf16.msra.mxu0 0
  %2916 = vmatpush.bf16.msra.mxu0 0
  %2917 = vmatpush.bf16.msra.mxu0 0
  %2918 = vmatpush.bf16.msra.mxu0 0
  %2919 = vmatpush.bf16.msra.mxu0 %v2910
  %2920 = vmatmul.bf16.gmra.mxu0 %v2886
  %v2921 = vpop.f32.mrf.mxu0
  %v2922 = vadd.f32 0.0, %v2921
  %v2923 = vpop.f32.mrf.mxu0
  %v2924 = vadd.f32 0.0, %v2923
  %2925 = vmatmul.bf16.gmra.mxu0 %v2889
  %v2926 = vpop.f32.mrf.mxu0
  %v2927 = vadd.f32 0.0, %v2926
  %v2928 = vpop.f32.mrf.mxu0
  %v2929 = vadd.f32 0.0, %v2928
  %2930 = vmatmul.bf16.gmra.mxu0 %v2892
  %v2931 = vpop.f32.mrf.mxu0
  %v2932 = vadd.f32 0.0, %v2931
  %v2933 = vpop.f32.mrf.mxu0
  %v2934 = vadd.f32 0.0, %v2933
  %2935 = vmatmul.bf16.gmra.mxu0 %v2895
  %v2936 = vpop.f32.mrf.mxu0
  %v2937 = vadd.f32 0.0, %v2936
  %v2938 = vpop.f32.mrf.mxu0
  %v2939 = vadd.f32 0.0, %v2938
  %2940 = vmatmul.bf16.gmra.mxu0 %v2898
  %v2941 = vpop.f32.mrf.mxu0
  %v2942 = vadd.f32 0.0, %v2941
  %v2943 = vpop.f32.mrf.mxu0
  %v2944 = vadd.f32 0.0, %v2943
  %2945 = vmatmul.bf16.gmra.mxu0 %v2901
  %v2946 = vpop.f32.mrf.mxu0
  %v2947 = vadd.f32 0.0, %v2946
  %v2948 = vpop.f32.mrf.mxu0
  %v2949 = vadd.f32 0.0, %v2948
  %2950 = vmatmul.bf16.gmra.mxu0 %v2904
  %v2951 = vpop.f32.mrf.mxu0
  %v2952 = vadd.f32 0.0, %v2951
  %v2953 = vpop.f32.mrf.mxu0
  %v2954 = vadd.f32 0.0, %v2953
  %2955 = vmatmul.bf16.gmra.mxu0 %v2907
  %v2956 = vpop.f32.mrf.mxu0
  %v2957 = vadd.f32 0.0, %v2956
  %v2958 = vpop.f32.mrf.mxu0
  %v2959 = vadd.f32 0.0, %v2958
  %2960 = vdwg.mxu0
  %v2962 = vsel %vm58, %v2853, 0
  %v2965 = vsel %vm58, %v2854, 0
  %v2968 = vsel %vm58, %v2855, 0
  %v2971 = vsel %vm58, %v2856, 0
  %v2974 = vsel %vm58, %v2857, 0
  %v2977 = vsel %vm58, %v2858, 0
  %v2980 = vsel %vm58, %v2859, 0
  %v2983 = vsel %vm58, %v2860, 0
  %v2986 = vsel %vm701, %v49, 0
  %2988 = vmatpush.bf16.msra.mxu0 0
  %2989 = vmatpush.bf16.msra.mxu0 0
  %2990 = vmatpush.bf16.msra.mxu0 0
  %2991 = vmatpush.bf16.msra.mxu0 0
  %2992 = vmatpush.bf16.msra.mxu0 0
  %2993 = vmatpush.bf16.msra.mxu0 0
  %2994 = vmatpush.bf16.msra.mxu0 0
  %2995 = vmatpush.bf16.msra.mxu0 %v2986
  %2996 = vmatmul.bf16.gmra.mxu0 %v2962
  %v2997 = vpop.f32.mrf.mxu0
  %v2998 = vadd.f32 %v2922, %v2997
  %v2999 = vpop.f32.mrf.mxu0
  %v3000 = vadd.f32 %v2924, %v2999
  %3001 = vmatmul.bf16.gmra.mxu0 %v2965
  %v3002 = vpop.f32.mrf.mxu0
  %v3003 = vadd.f32 %v2927, %v3002
  %v3004 = vpop.f32.mrf.mxu0
  %v3005 = vadd.f32 %v2929, %v3004
  %3006 = vmatmul.bf16.gmra.mxu0 %v2968
  %v3007 = vpop.f32.mrf.mxu0
  %v3008 = vadd.f32 %v2932, %v3007
  %v3009 = vpop.f32.mrf.mxu0
  %v3010 = vadd.f32 %v2934, %v3009
  %3011 = vmatmul.bf16.gmra.mxu0 %v2971
  %v3012 = vpop.f32.mrf.mxu0
  %v3013 = vadd.f32 %v2937, %v3012
  %v3014 = vpop.f32.mrf.mxu0
  %v3015 = vadd.f32 %v2939, %v3014
  %3016 = vmatmul.bf16.gmra.mxu0 %v2974
  %v3017 = vpop.f32.mrf.mxu0
  %v3018 = vadd.f32 %v2942, %v3017
  %v3019 = vpop.f32.mrf.mxu0
  %v3020 = vadd.f32 %v2944, %v3019
  %3021 = vmatmul.bf16.gmra.mxu0 %v2977
  %v3022 = vpop.f32.mrf.mxu0
  %v3023 = vadd.f32 %v2947, %v3022
  %v3024 = vpop.f32.mrf.mxu0
  %v3025 = vadd.f32 %v2949, %v3024
  %3026 = vmatmul.bf16.gmra.mxu0 %v2980
  %v3027 = vpop.f32.mrf.mxu0
  %v3028 = vadd.f32 %v2952, %v3027
  %v3029 = vpop.f32.mrf.mxu0
  %v3030 = vadd.f32 %v2954, %v3029
  %3031 = vmatmul.bf16.gmra.mxu0 %v2983
  %v3032 = vpop.f32.mrf.mxu0
  %v3033 = vadd.f32 %v2957, %v3032
  %v3034 = vpop.f32.mrf.mxu0
  %v3035 = vadd.f32 %v2959, %v3034
  %3036 = vdwg.mxu0
  %v3037 = vld [vmem:[#allocation2 + $0x2] sm:$0xff]
  %v3038 = vld [vmem:[#allocation2 + $0x12] sm:$0xff]
  %v3039 = vld [vmem:[#allocation2 + $0x22] sm:$0xff]
  %v3040 = vld [vmem:[#allocation2 + $0x32] sm:$0xff]
  %v3041 = vld [vmem:[#allocation2 + $0x42] sm:$0xff]
  %v3042 = vld [vmem:[#allocation2 + $0x52] sm:$0xff]
  %v3043 = vld [vmem:[#allocation2 + $0x62] sm:$0xff]
  %v3044 = vld [vmem:[#allocation2 + $0x72] sm:$0xff]
  %v3045 = vld [vmem:[#allocation2 + $0xa2] sm:$0xff]
  %v3046 = vld [vmem:[#allocation2 + $0xb2] sm:$0xff]
  %v3047 = vld [vmem:[#allocation2 + $0xc2] sm:$0xff]
  %v3048 = vld [vmem:[#allocation2 + $0xd2] sm:$0xff]
  %v3049 = vld [vmem:[#allocation2 + $0xe2] sm:$0xff]
  %v3050 = vld [vmem:[#allocation2 + $0xf2] sm:$0xff]
  %v3051 = vld [vmem:[#allocation2 + $0x102] sm:$0xff]
  %v3052 = vld [vmem:[#allocation2 + $0x112] sm:$0xff]
  %v3053 = vpack.c.bf16 %v3038, %v3037
  %v3054 = vpack.c.bf16 %v3040, %v3039
  %v3055 = vpack.c.bf16 %v3042, %v3041
  %v3056 = vpack.c.bf16 %v3044, %v3043
  %v3057 = vpack.c.bf16 %v3046, %v3045
  %v3058 = vpack.c.bf16 %v3048, %v3047
  %v3059 = vpack.c.bf16 %v3050, %v3049
  %v3060 = vpack.c.bf16 %v3052, %v3051
  %v3062 = vsel %vm58, %v3053, 0
  %v3065 = vsel %vm58, %v3054, 0
  %v3068 = vsel %vm58, %v3055, 0
  %v3071 = vsel %vm58, %v3056, 0
  %v3074 = vsel %vm58, %v3057, 0
  %v3077 = vsel %vm58, %v3058, 0
  %v3080 = vsel %vm58, %v3059, 0
  %v3083 = vsel %vm58, %v3060, 0
  %v3086 = vsel %vm701, %v51, 0
  %3088 = vmatpush.bf16.msra.mxu0 0
  %3089 = vmatpush.bf16.msra.mxu0 0
  %3090 = vmatpush.bf16.msra.mxu0 0
  %3091 = vmatpush.bf16.msra.mxu0 0
  %3092 = vmatpush.bf16.msra.mxu0 0
  %3093 = vmatpush.bf16.msra.mxu0 0
  %3094 = vmatpush.bf16.msra.mxu0 0
  %3095 = vmatpush.bf16.msra.mxu0 %v3086
  %3096 = vmatmul.bf16.gmra.mxu0 %v3062
  %v3097 = vpop.f32.mrf.mxu0
  %v3098 = vadd.f32 0.0, %v3097
  %v3099 = vpop.f32.mrf.mxu0
  %v3100 = vadd.f32 0.0, %v3099
  %3101 = vmatmul.bf16.gmra.mxu0 %v3065
  %v3102 = vpop.f32.mrf.mxu0
  %v3103 = vadd.f32 0.0, %v3102
  %v3104 = vpop.f32.mrf.mxu0
  %v3105 = vadd.f32 0.0, %v3104
  %3106 = vmatmul.bf16.gmra.mxu0 %v3068
  %v3107 = vpop.f32.mrf.mxu0
  %v3108 = vadd.f32 0.0, %v3107
  %v3109 = vpop.f32.mrf.mxu0
  %v3110 = vadd.f32 0.0, %v3109
  %3111 = vmatmul.bf16.gmra.mxu0 %v3071
  %v3112 = vpop.f32.mrf.mxu0
  %v3113 = vadd.f32 0.0, %v3112
  %v3114 = vpop.f32.mrf.mxu0
  %v3115 = vadd.f32 0.0, %v3114
  %3116 = vmatmul.bf16.gmra.mxu0 %v3074
  %v3117 = vpop.f32.mrf.mxu0
  %v3118 = vadd.f32 0.0, %v3117
  %v3119 = vpop.f32.mrf.mxu0
  %v3120 = vadd.f32 0.0, %v3119
  %3121 = vmatmul.bf16.gmra.mxu0 %v3077
  %v3122 = vpop.f32.mrf.mxu0
  %v3123 = vadd.f32 0.0, %v3122
  %v3124 = vpop.f32.mrf.mxu0
  %v3125 = vadd.f32 0.0, %v3124
  %3126 = vmatmul.bf16.gmra.mxu0 %v3080
  %v3127 = vpop.f32.mrf.mxu0
  %v3128 = vadd.f32 0.0, %v3127
  %v3129 = vpop.f32.mrf.mxu0
  %v3130 = vadd.f32 0.0, %v3129
  %3131 = vmatmul.bf16.gmra.mxu0 %v3083
  %v3132 = vpop.f32.mrf.mxu0
  %v3133 = vadd.f32 0.0, %v3132
  %v3134 = vpop.f32.mrf.mxu0
  %v3135 = vadd.f32 0.0, %v3134
  %3136 = vdwg.mxu0
  %v3137 = vadd.f32 %v2998, %v3098
  %v3138 = vadd.f32 %v3000, %v3100
  %v3139 = vadd.f32 %v3003, %v3103
  %v3140 = vadd.f32 %v3005, %v3105
  %v3141 = vadd.f32 %v3008, %v3108
  %v3142 = vadd.f32 %v3010, %v3110
  %v3143 = vadd.f32 %v3013, %v3113
  %v3144 = vadd.f32 %v3015, %v3115
  %v3145 = vadd.f32 %v3018, %v3118
  %v3146 = vadd.f32 %v3020, %v3120
  %v3147 = vadd.f32 %v3023, %v3123
  %v3148 = vadd.f32 %v3025, %v3125
  %v3149 = vadd.f32 %v3028, %v3128
  %v3150 = vadd.f32 %v3030, %v3130
  %v3151 = vadd.f32 %v3033, %v3133
  %v3152 = vadd.f32 %v3035, %v3135
  %v3153 = vld [vmem:[%s612] sm:$0xff]
  %v3154 = vld [vmem:[%s612 + $0x10] sm:$0xff]
  %v3155 = vld [vmem:[%s612 + $0x20] sm:$0xff]
  %v3156 = vld [vmem:[%s612 + $0x30] sm:$0xff]
  %v3157 = vld [vmem:[%s612 + $0x40] sm:$0xff]
  %v3158 = vld [vmem:[%s612 + $0x50] sm:$0xff]
  %v3159 = vld [vmem:[%s612 + $0x60] sm:$0xff]
  %v3160 = vld [vmem:[%s612 + $0x70] sm:$0xff]
  %v3161 = vld [vmem:[%s612 + $0xa0] sm:$0xff]
  %v3162 = vld [vmem:[%s612 + $0xb0] sm:$0xff]
  %v3163 = vld [vmem:[%s612 + $0xc0] sm:$0xff]
  %v3164 = vld [vmem:[%s612 + $0xd0] sm:$0xff]
  %v3165 = vld [vmem:[%s612 + $0xe0] sm:$0xff]
  %v3166 = vld [vmem:[%s612 + $0xf0] sm:$0xff]
  %v3167 = vld [vmem:[%s612 + $0x100] sm:$0xff]
  %v3168 = vld [vmem:[%s612 + $0x110] sm:$0xff]
  %v3169 = vpack.c.bf16 %v3154, %v3153
  %v3170 = vpack.c.bf16 %v3156, %v3155
  %v3171 = vpack.c.bf16 %v3158, %v3157
  %v3172 = vpack.c.bf16 %v3160, %v3159
  %v3173 = vpack.c.bf16 %v3162, %v3161
  %v3174 = vpack.c.bf16 %v3164, %v3163
  %v3175 = vpack.c.bf16 %v3166, %v3165
  %v3176 = vpack.c.bf16 %v3168, %v3167
  %v3178 = vsel %vm58, %v3169, 0
  %v3181 = vsel %vm58, %v3170, 0
  %v3184 = vsel %vm58, %v3171, 0
  %v3187 = vsel %vm58, %v3172, 0
  %v3190 = vsel %vm58, %v3173, 0
  %v3193 = vsel %vm58, %v3174, 0
  %v3196 = vsel %vm58, %v3175, 0
  %v3199 = vsel %vm58, %v3176, 0
  %v3202 = vsel %vm701, %v52, 0
  %3204 = vmatpush.bf16.msra.mxu0 0
  %3205 = vmatpush.bf16.msra.mxu0 0
  %3206 = vmatpush.bf16.msra.mxu0 0
  %3207 = vmatpush.bf16.msra.mxu0 0
  %3208 = vmatpush.bf16.msra.mxu0 0
  %3209 = vmatpush.bf16.msra.mxu0 0
  %3210 = vmatpush.bf16.msra.mxu0 0
  %3211 = vmatpush.bf16.msra.mxu0 %v3202
  %3212 = vmatmul.bf16.gmra.mxu0 %v3178
  %v3213 = vpop.f32.mrf.mxu0
  %v3214 = vadd.f32 0.0, %v3213
  %v3215 = vpop.f32.mrf.mxu0
  %v3216 = vadd.f32 0.0, %v3215
  %3217 = vmatmul.bf16.gmra.mxu0 %v3181
  %v3218 = vpop.f32.mrf.mxu0
  %v3219 = vadd.f32 0.0, %v3218
  %v3220 = vpop.f32.mrf.mxu0
  %v3221 = vadd.f32 0.0, %v3220
  %3222 = vmatmul.bf16.gmra.mxu0 %v3184
  %v3223 = vpop.f32.mrf.mxu0
  %v3224 = vadd.f32 0.0, %v3223
  %v3225 = vpop.f32.mrf.mxu0
  %v3226 = vadd.f32 0.0, %v3225
  %3227 = vmatmul.bf16.gmra.mxu0 %v3187
  %v3228 = vpop.f32.mrf.mxu0
  %v3229 = vadd.f32 0.0, %v3228
  %v3230 = vpop.f32.mrf.mxu0
  %v3231 = vadd.f32 0.0, %v3230
  %3232 = vmatmul.bf16.gmra.mxu0 %v3190
  %v3233 = vpop.f32.mrf.mxu0
  %v3234 = vadd.f32 0.0, %v3233
  %v3235 = vpop.f32.mrf.mxu0
  %v3236 = vadd.f32 0.0, %v3235
  %3237 = vmatmul.bf16.gmra.mxu0 %v3193
  %v3238 = vpop.f32.mrf.mxu0
  %v3239 = vadd.f32 0.0, %v3238
  %v3240 = vpop.f32.mrf.mxu0
  %v3241 = vadd.f32 0.0, %v3240
  %3242 = vmatmul.bf16.gmra.mxu0 %v3196
  %v3243 = vpop.f32.mrf.mxu0
  %v3244 = vadd.f32 0.0, %v3243
  %v3245 = vpop.f32.mrf.mxu0
  %v3246 = vadd.f32 0.0, %v3245
  %3247 = vmatmul.bf16.gmra.mxu0 %v3199
  %v3248 = vpop.f32.mrf.mxu0
  %v3249 = vadd.f32 0.0, %v3248
  %v3250 = vpop.f32.mrf.mxu0
  %v3251 = vadd.f32 0.0, %v3250
  %3252 = vdwg.mxu0
  %v3253 = vadd.f32 %v3137, %v3214
  %v3254 = vadd.f32 %v3138, %v3216
  %v3255 = vadd.f32 %v3139, %v3219
  %v3256 = vadd.f32 %v3140, %v3221
  %v3257 = vadd.f32 %v3141, %v3224
  %v3258 = vadd.f32 %v3142, %v3226
  %v3259 = vadd.f32 %v3143, %v3229
  %v3260 = vadd.f32 %v3144, %v3231
  %v3261 = vadd.f32 %v3145, %v3234
  %v3262 = vadd.f32 %v3146, %v3236
  %v3263 = vadd.f32 %v3147, %v3239
  %v3264 = vadd.f32 %v3148, %v3241
  %v3265 = vadd.f32 %v3149, %v3244
  %v3266 = vadd.f32 %v3150, %v3246
  %v3267 = vadd.f32 %v3151, %v3249
  %v3268 = vadd.f32 %v3152, %v3251
  %v3269 = vld [vmem:[%s612 + $0x1] sm:$0xff]
  %v3270 = vld [vmem:[%s612 + $0x11] sm:$0xff]
  %v3271 = vld [vmem:[%s612 + $0x21] sm:$0xff]
  %v3272 = vld [vmem:[%s612 + $0x31] sm:$0xff]
  %v3273 = vld [vmem:[%s612 + $0x41] sm:$0xff]
  %v3274 = vld [vmem:[%s612 + $0x51] sm:$0xff]
  %v3275 = vld [vmem:[%s612 + $0x61] sm:$0xff]
  %v3276 = vld [vmem:[%s612 + $0x71] sm:$0xff]
  %v3277 = vld [vmem:[%s612 + $0xa1] sm:$0xff]
  %v3278 = vld [vmem:[%s612 + $0xb1] sm:$0xff]
  %v3279 = vld [vmem:[%s612 + $0xc1] sm:$0xff]
  %v3280 = vld [vmem:[%s612 + $0xd1] sm:$0xff]
  %v3281 = vld [vmem:[%s612 + $0xe1] sm:$0xff]
  %v3282 = vld [vmem:[%s612 + $0xf1] sm:$0xff]
  %v3283 = vld [vmem:[%s612 + $0x101] sm:$0xff]
  %v3284 = vld [vmem:[%s612 + $0x111] sm:$0xff]
  %v3285 = vpack.c.bf16 %v3270, %v3269
  %v3286 = vpack.c.bf16 %v3272, %v3271
  %v3287 = vpack.c.bf16 %v3274, %v3273
  %v3288 = vpack.c.bf16 %v3276, %v3275
  %v3289 = vpack.c.bf16 %v3278, %v3277
  %v3290 = vpack.c.bf16 %v3280, %v3279
  %v3291 = vpack.c.bf16 %v3282, %v3281
  %v3292 = vpack.c.bf16 %v3284, %v3283
  %v3294 = vsel %vm58, %v3285, 0
  %v3297 = vsel %vm58, %v3286, 0
  %v3300 = vsel %vm58, %v3287, 0
  %v3303 = vsel %vm58, %v3288, 0
  %v3306 = vsel %vm58, %v3289, 0
  %v3309 = vsel %vm58, %v3290, 0
  %v3312 = vsel %vm58, %v3291, 0
  %v3315 = vsel %vm58, %v3292, 0
  %v3318 = vsel %vm701, %v53, 0
  %3320 = vmatpush.bf16.msra.mxu0 0
  %3321 = vmatpush.bf16.msra.mxu0 0
  %3322 = vmatpush.bf16.msra.mxu0 0
  %3323 = vmatpush.bf16.msra.mxu0 0
  %3324 = vmatpush.bf16.msra.mxu0 0
  %3325 = vmatpush.bf16.msra.mxu0 0
  %3326 = vmatpush.bf16.msra.mxu0 0
  %3327 = vmatpush.bf16.msra.mxu0 %v3318
  %3328 = vmatmul.bf16.gmra.mxu0 %v3294
  %v3329 = vpop.f32.mrf.mxu0
  %v3330 = vadd.f32 0.0, %v3329
  %v3331 = vpop.f32.mrf.mxu0
  %v3332 = vadd.f32 0.0, %v3331
  %3333 = vmatmul.bf16.gmra.mxu0 %v3297
  %v3334 = vpop.f32.mrf.mxu0
  %v3335 = vadd.f32 0.0, %v3334
  %v3336 = vpop.f32.mrf.mxu0
  %v3337 = vadd.f32 0.0, %v3336
  %3338 = vmatmul.bf16.gmra.mxu0 %v3300
  %v3339 = vpop.f32.mrf.mxu0
  %v3340 = vadd.f32 0.0, %v3339
  %v3341 = vpop.f32.mrf.mxu0
  %v3342 = vadd.f32 0.0, %v3341
  %3343 = vmatmul.bf16.gmra.mxu0 %v3303
  %v3344 = vpop.f32.mrf.mxu0
  %v3345 = vadd.f32 0.0, %v3344
  %v3346 = vpop.f32.mrf.mxu0
  %v3347 = vadd.f32 0.0, %v3346
  %3348 = vmatmul.bf16.gmra.mxu0 %v3306
  %v3349 = vpop.f32.mrf.mxu0
  %v3350 = vadd.f32 0.0, %v3349
  %v3351 = vpop.f32.mrf.mxu0
  %v3352 = vadd.f32 0.0, %v3351
  %3353 = vmatmul.bf16.gmra.mxu0 %v3309
  %v3354 = vpop.f32.mrf.mxu0
  %v3355 = vadd.f32 0.0, %v3354
  %v3356 = vpop.f32.mrf.mxu0
  %v3357 = vadd.f32 0.0, %v3356
  %3358 = vmatmul.bf16.gmra.mxu0 %v3312
  %v3359 = vpop.f32.mrf.mxu0
  %v3360 = vadd.f32 0.0, %v3359
  %v3361 = vpop.f32.mrf.mxu0
  %v3362 = vadd.f32 0.0, %v3361
  %3363 = vmatmul.bf16.gmra.mxu0 %v3315
  %v3364 = vpop.f32.mrf.mxu0
  %v3365 = vadd.f32 0.0, %v3364
  %v3366 = vpop.f32.mrf.mxu0
  %v3367 = vadd.f32 0.0, %v3366
  %3368 = vdwg.mxu0
  %v3369 = vadd.f32 %v3253, %v3330
  %v3370 = vadd.f32 %v3254, %v3332
  %v3371 = vadd.f32 %v3255, %v3335
  %v3372 = vadd.f32 %v3256, %v3337
  %v3373 = vadd.f32 %v3257, %v3340
  %v3374 = vadd.f32 %v3258, %v3342
  %v3375 = vadd.f32 %v3259, %v3345
  %v3376 = vadd.f32 %v3260, %v3347
  %v3377 = vadd.f32 %v3261, %v3350
  %v3378 = vadd.f32 %v3262, %v3352
  %v3379 = vadd.f32 %v3263, %v3355
  %v3380 = vadd.f32 %v3264, %v3357
  %v3381 = vadd.f32 %v3265, %v3360
  %v3382 = vadd.f32 %v3266, %v3362
  %v3383 = vadd.f32 %v3267, %v3365
  %v3384 = vadd.f32 %v3268, %v3367
  %v3385 = vld [vmem:[%s612 + $0x2] sm:$0xff]
  %v3386 = vld [vmem:[%s612 + $0x12] sm:$0xff]
  %v3387 = vld [vmem:[%s612 + $0x22] sm:$0xff]
  %v3388 = vld [vmem:[%s612 + $0x32] sm:$0xff]
  %v3389 = vld [vmem:[%s612 + $0x42] sm:$0xff]
  %v3390 = vld [vmem:[%s612 + $0x52] sm:$0xff]
  %v3391 = vld [vmem:[%s612 + $0x62] sm:$0xff]
  %v3392 = vld [vmem:[%s612 + $0x72] sm:$0xff]
  %v3393 = vld [vmem:[%s612 + $0xa2] sm:$0xff]
  %v3394 = vld [vmem:[%s612 + $0xb2] sm:$0xff]
  %v3395 = vld [vmem:[%s612 + $0xc2] sm:$0xff]
  %v3396 = vld [vmem:[%s612 + $0xd2] sm:$0xff]
  %v3397 = vld [vmem:[%s612 + $0xe2] sm:$0xff]
  %v3398 = vld [vmem:[%s612 + $0xf2] sm:$0xff]
  %v3399 = vld [vmem:[%s612 + $0x102] sm:$0xff]
  %v3400 = vld [vmem:[%s612 + $0x112] sm:$0xff]
  %v3401 = vpack.c.bf16 %v3386, %v3385
  %v3402 = vpack.c.bf16 %v3388, %v3387
  %v3403 = vpack.c.bf16 %v3390, %v3389
  %v3404 = vpack.c.bf16 %v3392, %v3391
  %v3405 = vpack.c.bf16 %v3394, %v3393
  %v3406 = vpack.c.bf16 %v3396, %v3395
  %v3407 = vpack.c.bf16 %v3398, %v3397
  %v3408 = vpack.c.bf16 %v3400, %v3399
  %v3410 = vsel %vm58, %v3401, 0
  %v3413 = vsel %vm58, %v3402, 0
  %v3416 = vsel %vm58, %v3403, 0
  %v3419 = vsel %vm58, %v3404, 0
  %v3422 = vsel %vm58, %v3405, 0
  %v3425 = vsel %vm58, %v3406, 0
  %v3428 = vsel %vm58, %v3407, 0
  %v3431 = vsel %vm58, %v3408, 0
  %v3434 = vsel %vm701, %v54, 0
  %3436 = vmatpush.bf16.msra.mxu0 0
  %3437 = vmatpush.bf16.msra.mxu0 0
  %3438 = vmatpush.bf16.msra.mxu0 0
  %3439 = vmatpush.bf16.msra.mxu0 0
  %3440 = vmatpush.bf16.msra.mxu0 0
  %3441 = vmatpush.bf16.msra.mxu0 0
  %3442 = vmatpush.bf16.msra.mxu0 0
  %3443 = vmatpush.bf16.msra.mxu0 %v3434
  %3444 = vmatmul.bf16.gmra.mxu0 %v3410
  %v3445 = vpop.f32.mrf.mxu0
  %v3446 = vadd.f32 0.0, %v3445
  %v3447 = vpop.f32.mrf.mxu0
  %v3448 = vadd.f32 0.0, %v3447
  %3449 = vmatmul.bf16.gmra.mxu0 %v3413
  %v3450 = vpop.f32.mrf.mxu0
  %v3451 = vadd.f32 0.0, %v3450
  %v3452 = vpop.f32.mrf.mxu0
  %v3453 = vadd.f32 0.0, %v3452
  %3454 = vmatmul.bf16.gmra.mxu0 %v3416
  %v3455 = vpop.f32.mrf.mxu0
  %v3456 = vadd.f32 0.0, %v3455
  %v3457 = vpop.f32.mrf.mxu0
  %v3458 = vadd.f32 0.0, %v3457
  %3459 = vmatmul.bf16.gmra.mxu0 %v3419
  %v3460 = vpop.f32.mrf.mxu0
  %v3461 = vadd.f32 0.0, %v3460
  %v3462 = vpop.f32.mrf.mxu0
  %v3463 = vadd.f32 0.0, %v3462
  %3464 = vmatmul.bf16.gmra.mxu0 %v3422
  %v3465 = vpop.f32.mrf.mxu0
  %v3466 = vadd.f32 0.0, %v3465
  %v3467 = vpop.f32.mrf.mxu0
  %v3468 = vadd.f32 0.0, %v3467
  %3469 = vmatmul.bf16.gmra.mxu0 %v3425
  %v3470 = vpop.f32.mrf.mxu0
  %v3471 = vadd.f32 0.0, %v3470
  %v3472 = vpop.f32.mrf.mxu0
  %v3473 = vadd.f32 0.0, %v3472
  %3474 = vmatmul.bf16.gmra.mxu0 %v3428
  %v3475 = vpop.f32.mrf.mxu0
  %v3476 = vadd.f32 0.0, %v3475
  %v3477 = vpop.f32.mrf.mxu0
  %v3478 = vadd.f32 0.0, %v3477
  %3479 = vmatmul.bf16.gmra.mxu0 %v3431
  %v3480 = vpop.f32.mrf.mxu0
  %v3481 = vadd.f32 0.0, %v3480
  %v3482 = vpop.f32.mrf.mxu0
  %v3483 = vadd.f32 0.0, %v3482
  %3484 = vdwg.mxu0
  %v3485 = vadd.f32 %v3369, %v3446
  %v3486 = vadd.f32 %v3370, %v3448
  %v3487 = vadd.f32 %v3371, %v3451
  %v3488 = vadd.f32 %v3372, %v3453
  %v3489 = vadd.f32 %v3373, %v3456
  %v3490 = vadd.f32 %v3374, %v3458
  %v3491 = vadd.f32 %v3375, %v3461
  %v3492 = vadd.f32 %v3376, %v3463
  %v3493 = vadd.f32 %v3377, %v3466
  %v3494 = vadd.f32 %v3378, %v3468
  %v3495 = vadd.f32 %v3379, %v3471
  %v3496 = vadd.f32 %v3380, %v3473
  %v3497 = vadd.f32 %v3381, %v3476
  %v3498 = vadd.f32 %v3382, %v3478
  %v3499 = vadd.f32 %v3383, %v3481
  %v3500 = vadd.f32 %v3384, %v3483
  %v3501 = vld [vmem:[%s1294] sm:$0xff]
  %v3502 = vld [vmem:[%s1294 + $0x10] sm:$0xff]
  %v3503 = vld [vmem:[%s1294 + $0x20] sm:$0xff]
  %v3504 = vld [vmem:[%s1294 + $0x30] sm:$0xff]
  %v3505 = vld [vmem:[%s1294 + $0x40] sm:$0xff]
  %v3506 = vld [vmem:[%s1294 + $0x50] sm:$0xff]
  %v3507 = vld [vmem:[%s1294 + $0x60] sm:$0xff]
  %v3508 = vld [vmem:[%s1294 + $0x70] sm:$0xff]
  %v3509 = vld [vmem:[%s1294 + $0xa0] sm:$0xff]
  %v3510 = vld [vmem:[%s1294 + $0xb0] sm:$0xff]
  %v3511 = vld [vmem:[%s1294 + $0xc0] sm:$0xff]
  %v3512 = vld [vmem:[%s1294 + $0xd0] sm:$0xff]
  %v3513 = vld [vmem:[%s1294 + $0xe0] sm:$0xff]
  %v3514 = vld [vmem:[%s1294 + $0xf0] sm:$0xff]
  %v3515 = vld [vmem:[%s1294 + $0x100] sm:$0xff]
  %v3516 = vld [vmem:[%s1294 + $0x110] sm:$0xff]
  %v3517 = vpack.c.bf16 %v3502, %v3501
  %v3518 = vpack.c.bf16 %v3504, %v3503
  %v3519 = vpack.c.bf16 %v3506, %v3505
  %v3520 = vpack.c.bf16 %v3508, %v3507
  %v3521 = vpack.c.bf16 %v3510, %v3509
  %v3522 = vpack.c.bf16 %v3512, %v3511
  %v3523 = vpack.c.bf16 %v3514, %v3513
  %v3524 = vpack.c.bf16 %v3516, %v3515
  %v3526 = vsel %vm58, %v3517, 0
  %v3529 = vsel %vm58, %v3518, 0
  %v3532 = vsel %vm58, %v3519, 0
  %v3535 = vsel %vm58, %v3520, 0
  %v3538 = vsel %vm58, %v3521, 0
  %v3541 = vsel %vm58, %v3522, 0
  %v3544 = vsel %vm58, %v3523, 0
  %v3547 = vsel %vm58, %v3524, 0
  %v3550 = vsel %vm701, %v55, 0
  %3552 = vmatpush.bf16.msra.mxu0 0
  %3553 = vmatpush.bf16.msra.mxu0 0
  %3554 = vmatpush.bf16.msra.mxu0 0
  %3555 = vmatpush.bf16.msra.mxu0 0
  %3556 = vmatpush.bf16.msra.mxu0 0
  %3557 = vmatpush.bf16.msra.mxu0 0
  %3558 = vmatpush.bf16.msra.mxu0 0
  %3559 = vmatpush.bf16.msra.mxu0 %v3550
  %3560 = vmatmul.bf16.gmra.mxu0 %v3526
  %v3561 = vpop.f32.mrf.mxu0
  %v3562 = vadd.f32 0.0, %v3561
  %v3563 = vpop.f32.mrf.mxu0
  %v3564 = vadd.f32 0.0, %v3563
  %3565 = vmatmul.bf16.gmra.mxu0 %v3529
  %v3566 = vpop.f32.mrf.mxu0
  %v3567 = vadd.f32 0.0, %v3566
  %v3568 = vpop.f32.mrf.mxu0
  %v3569 = vadd.f32 0.0, %v3568
  %3570 = vmatmul.bf16.gmra.mxu0 %v3532
  %v3571 = vpop.f32.mrf.mxu0
  %v3572 = vadd.f32 0.0, %v3571
  %v3573 = vpop.f32.mrf.mxu0
  %v3574 = vadd.f32 0.0, %v3573
  %3575 = vmatmul.bf16.gmra.mxu0 %v3535
  %v3576 = vpop.f32.mrf.mxu0
  %v3577 = vadd.f32 0.0, %v3576
  %v3578 = vpop.f32.mrf.mxu0
  %v3579 = vadd.f32 0.0, %v3578
  %3580 = vmatmul.bf16.gmra.mxu0 %v3538
  %v3581 = vpop.f32.mrf.mxu0
  %v3582 = vadd.f32 0.0, %v3581
  %v3583 = vpop.f32.mrf.mxu0
  %v3584 = vadd.f32 0.0, %v3583
  %3585 = vmatmul.bf16.gmra.mxu0 %v3541
  %v3586 = vpop.f32.mrf.mxu0
  %v3587 = vadd.f32 0.0, %v3586
  %v3588 = vpop.f32.mrf.mxu0
  %v3589 = vadd.f32 0.0, %v3588
  %3590 = vmatmul.bf16.gmra.mxu0 %v3544
  %v3591 = vpop.f32.mrf.mxu0
  %v3592 = vadd.f32 0.0, %v3591
  %v3593 = vpop.f32.mrf.mxu0
  %v3594 = vadd.f32 0.0, %v3593
  %3595 = vmatmul.bf16.gmra.mxu0 %v3547
  %v3596 = vpop.f32.mrf.mxu0
  %v3597 = vadd.f32 0.0, %v3596
  %v3598 = vpop.f32.mrf.mxu0
  %v3599 = vadd.f32 0.0, %v3598
  %3600 = vdwg.mxu0
  %v3601 = vadd.f32 %v3485, %v3562
  %v3602 = vadd.f32 %v3486, %v3564
  %v3603 = vadd.f32 %v3487, %v3567
  %v3604 = vadd.f32 %v3488, %v3569
  %v3605 = vadd.f32 %v3489, %v3572
  %v3606 = vadd.f32 %v3490, %v3574
  %v3607 = vadd.f32 %v3491, %v3577
  %v3608 = vadd.f32 %v3492, %v3579
  %v3609 = vadd.f32 %v3493, %v3582
  %v3610 = vadd.f32 %v3494, %v3584
  %v3611 = vadd.f32 %v3495, %v3587
  %v3612 = vadd.f32 %v3496, %v3589
  %v3613 = vadd.f32 %v3497, %v3592
  %v3614 = vadd.f32 %v3498, %v3594
  %v3615 = vadd.f32 %v3499, %v3597
  %v3616 = vadd.f32 %v3500, %v3599
  %v3617 = vld [vmem:[%s1294 + $0x1] sm:$0xff]
  %v3618 = vld [vmem:[%s1294 + $0x11] sm:$0xff]
  %v3619 = vld [vmem:[%s1294 + $0x21] sm:$0xff]
  %v3620 = vld [vmem:[%s1294 + $0x31] sm:$0xff]
  %v3621 = vld [vmem:[%s1294 + $0x41] sm:$0xff]
  %v3622 = vld [vmem:[%s1294 + $0x51] sm:$0xff]
  %v3623 = vld [vmem:[%s1294 + $0x61] sm:$0xff]
  %v3624 = vld [vmem:[%s1294 + $0x71] sm:$0xff]
  %v3625 = vld [vmem:[%s1294 + $0xa1] sm:$0xff]
  %v3626 = vld [vmem:[%s1294 + $0xb1] sm:$0xff]
  %v3627 = vld [vmem:[%s1294 + $0xc1] sm:$0xff]
  %v3628 = vld [vmem:[%s1294 + $0xd1] sm:$0xff]
  %v3629 = vld [vmem:[%s1294 + $0xe1] sm:$0xff]
  %v3630 = vld [vmem:[%s1294 + $0xf1] sm:$0xff]
  %v3631 = vld [vmem:[%s1294 + $0x101] sm:$0xff]
  %v3632 = vld [vmem:[%s1294 + $0x111] sm:$0xff]
  %v3633 = vpack.c.bf16 %v3618, %v3617
  %v3634 = vpack.c.bf16 %v3620, %v3619
  %v3635 = vpack.c.bf16 %v3622, %v3621
  %v3636 = vpack.c.bf16 %v3624, %v3623
  %v3637 = vpack.c.bf16 %v3626, %v3625
  %v3638 = vpack.c.bf16 %v3628, %v3627
  %v3639 = vpack.c.bf16 %v3630, %v3629
  %v3640 = vpack.c.bf16 %v3632, %v3631
  %v3642 = vsel %vm58, %v3633, 0
  %v3645 = vsel %vm58, %v3634, 0
  %v3648 = vsel %vm58, %v3635, 0
  %v3651 = vsel %vm58, %v3636, 0
  %v3654 = vsel %vm58, %v3637, 0
  %v3657 = vsel %vm58, %v3638, 0
  %v3660 = vsel %vm58, %v3639, 0
  %v3663 = vsel %vm58, %v3640, 0
  %v3666 = vsel %vm701, %v56, 0
  %3668 = vmatpush.bf16.msra.mxu0 0
  %3669 = vmatpush.bf16.msra.mxu0 0
  %3670 = vmatpush.bf16.msra.mxu0 0
  %3671 = vmatpush.bf16.msra.mxu0 0
  %3672 = vmatpush.bf16.msra.mxu0 0
  %3673 = vmatpush.bf16.msra.mxu0 0
  %3674 = vmatpush.bf16.msra.mxu0 0
  %3675 = vmatpush.bf16.msra.mxu0 %v3666
  %3676 = vmatmul.bf16.gmra.mxu0 %v3642
  %v3677 = vpop.f32.mrf.mxu0
  %v3678 = vadd.f32 0.0, %v3677
  %v3679 = vpop.f32.mrf.mxu0
  %v3680 = vadd.f32 0.0, %v3679
  %3681 = vmatmul.bf16.gmra.mxu0 %v3645
  %v3682 = vpop.f32.mrf.mxu0
  %v3683 = vadd.f32 0.0, %v3682
  %v3684 = vpop.f32.mrf.mxu0
  %v3685 = vadd.f32 0.0, %v3684
  %3686 = vmatmul.bf16.gmra.mxu0 %v3648
  %v3687 = vpop.f32.mrf.mxu0
  %v3688 = vadd.f32 0.0, %v3687
  %v3689 = vpop.f32.mrf.mxu0
  %v3690 = vadd.f32 0.0, %v3689
  %3691 = vmatmul.bf16.gmra.mxu0 %v3651
  %v3692 = vpop.f32.mrf.mxu0
  %v3693 = vadd.f32 0.0, %v3692
  %v3694 = vpop.f32.mrf.mxu0
  %v3695 = vadd.f32 0.0, %v3694
  %3696 = vmatmul.bf16.gmra.mxu0 %v3654
  %v3697 = vpop.f32.mrf.mxu0
  %v3698 = vadd.f32 0.0, %v3697
  %v3699 = vpop.f32.mrf.mxu0
  %v3700 = vadd.f32 0.0, %v3699
  %3701 = vmatmul.bf16.gmra.mxu0 %v3657
  %v3702 = vpop.f32.mrf.mxu0
  %v3703 = vadd.f32 0.0, %v3702
  %v3704 = vpop.f32.mrf.mxu0
  %v3705 = vadd.f32 0.0, %v3704
  %3706 = vmatmul.bf16.gmra.mxu0 %v3660
  %v3707 = vpop.f32.mrf.mxu0
  %v3708 = vadd.f32 0.0, %v3707
  %v3709 = vpop.f32.mrf.mxu0
  %v3710 = vadd.f32 0.0, %v3709
  %3711 = vmatmul.bf16.gmra.mxu0 %v3663
  %v3712 = vpop.f32.mrf.mxu0
  %v3713 = vadd.f32 0.0, %v3712
  %v3714 = vpop.f32.mrf.mxu0
  %v3715 = vadd.f32 0.0, %v3714
  %3716 = vdwg.mxu0
  %v3717 = vadd.f32 %v3601, %v3678
  %v3718 = vadd.f32 %v3602, %v3680
  %v3719 = vadd.f32 %v3603, %v3683
  %v3720 = vadd.f32 %v3604, %v3685
  %v3721 = vadd.f32 %v3605, %v3688
  %v3722 = vadd.f32 %v3606, %v3690
  %v3723 = vadd.f32 %v3607, %v3693
  %v3724 = vadd.f32 %v3608, %v3695
  %v3725 = vadd.f32 %v3609, %v3698
  %v3726 = vadd.f32 %v3610, %v3700
  %v3727 = vadd.f32 %v3611, %v3703
  %v3728 = vadd.f32 %v3612, %v3705
  %v3729 = vadd.f32 %v3613, %v3708
  %v3730 = vadd.f32 %v3614, %v3710
  %v3731 = vadd.f32 %v3615, %v3713
  %v3732 = vadd.f32 %v3616, %v3715
  %v3733 = vld [vmem:[%s1294 + $0x2] sm:$0xff]
  %v3734 = vld [vmem:[%s1294 + $0x12] sm:$0xff]
  %v3735 = vld [vmem:[%s1294 + $0x22] sm:$0xff]
  %v3736 = vld [vmem:[%s1294 + $0x32] sm:$0xff]
  %v3737 = vld [vmem:[%s1294 + $0x42] sm:$0xff]
  %v3738 = vld [vmem:[%s1294 + $0x52] sm:$0xff]
  %v3739 = vld [vmem:[%s1294 + $0x62] sm:$0xff]
  %v3740 = vld [vmem:[%s1294 + $0x72] sm:$0xff]
  %v3741 = vld [vmem:[%s1294 + $0xa2] sm:$0xff]
  %v3742 = vld [vmem:[%s1294 + $0xb2] sm:$0xff]
  %v3743 = vld [vmem:[%s1294 + $0xc2] sm:$0xff]
  %v3744 = vld [vmem:[%s1294 + $0xd2] sm:$0xff]
  %v3745 = vld [vmem:[%s1294 + $0xe2] sm:$0xff]
  %v3746 = vld [vmem:[%s1294 + $0xf2] sm:$0xff]
  %v3747 = vld [vmem:[%s1294 + $0x102] sm:$0xff]
  %v3748 = vld [vmem:[%s1294 + $0x112] sm:$0xff]
  %v3749 = vpack.c.bf16 %v3734, %v3733
  %v3750 = vpack.c.bf16 %v3736, %v3735
  %v3751 = vpack.c.bf16 %v3738, %v3737
  %v3752 = vpack.c.bf16 %v3740, %v3739
  %v3753 = vpack.c.bf16 %v3742, %v3741
  %v3754 = vpack.c.bf16 %v3744, %v3743
  %v3755 = vpack.c.bf16 %v3746, %v3745
  %v3756 = vpack.c.bf16 %v3748, %v3747
  %v3758 = vsel %vm58, %v3749, 0
  %v3761 = vsel %vm58, %v3750, 0
  %v3764 = vsel %vm58, %v3751, 0
  %v3767 = vsel %vm58, %v3752, 0
  %v3770 = vsel %vm58, %v3753, 0
  %v3773 = vsel %vm58, %v3754, 0
  %v3776 = vsel %vm58, %v3755, 0
  %v3779 = vsel %vm58, %v3756, 0
  %v3782 = vsel %vm701, %v57, 0
  %3784 = vmatpush.bf16.msra.mxu0 0
  %3785 = vmatpush.bf16.msra.mxu0 0
  %3786 = vmatpush.bf16.msra.mxu0 0
  %3787 = vmatpush.bf16.msra.mxu0 0
  %3788 = vmatpush.bf16.msra.mxu0 0
  %3789 = vmatpush.bf16.msra.mxu0 0
  %3790 = vmatpush.bf16.msra.mxu0 0
  %3791 = vmatpush.bf16.msra.mxu0 %v3782
  %3792 = vmatmul.bf16.gmra.mxu0 %v3758
  %v3793 = vpop.f32.mrf.mxu0
  %v3794 = vadd.f32 0.0, %v3793
  %v3795 = vpop.f32.mrf.mxu0
  %v3796 = vadd.f32 0.0, %v3795
  %3797 = vmatmul.bf16.gmra.mxu0 %v3761
  %v3798 = vpop.f32.mrf.mxu0
  %v3799 = vadd.f32 0.0, %v3798
  %v3800 = vpop.f32.mrf.mxu0
  %v3801 = vadd.f32 0.0, %v3800
  %3802 = vmatmul.bf16.gmra.mxu0 %v3764
  %v3803 = vpop.f32.mrf.mxu0
  %v3804 = vadd.f32 0.0, %v3803
  %v3805 = vpop.f32.mrf.mxu0
  %v3806 = vadd.f32 0.0, %v3805
  %3807 = vmatmul.bf16.gmra.mxu0 %v3767
  %v3808 = vpop.f32.mrf.mxu0
  %v3809 = vadd.f32 0.0, %v3808
  %v3810 = vpop.f32.mrf.mxu0
  %v3811 = vadd.f32 0.0, %v3810
  %3812 = vmatmul.bf16.gmra.mxu0 %v3770
  %v3813 = vpop.f32.mrf.mxu0
  %v3814 = vadd.f32 0.0, %v3813
  %v3815 = vpop.f32.mrf.mxu0
  %v3816 = vadd.f32 0.0, %v3815
  %3817 = vmatmul.bf16.gmra.mxu0 %v3773
  %v3818 = vpop.f32.mrf.mxu0
  %v3819 = vadd.f32 0.0, %v3818
  %v3820 = vpop.f32.mrf.mxu0
  %v3821 = vadd.f32 0.0, %v3820
  %3822 = vmatmul.bf16.gmra.mxu0 %v3776
  %v3823 = vpop.f32.mrf.mxu0
  %v3824 = vadd.f32 0.0, %v3823
  %v3825 = vpop.f32.mrf.mxu0
  %v3826 = vadd.f32 0.0, %v3825
  %3827 = vmatmul.bf16.gmra.mxu0 %v3779
  %v3828 = vpop.f32.mrf.mxu0
  %v3829 = vadd.f32 0.0, %v3828
  %v3830 = vpop.f32.mrf.mxu0
  %v3831 = vadd.f32 0.0, %v3830
  %3832 = vdwg.mxu0
  %v3833 = vadd.f32 %v3717, %v3794
  %v3834 = vadd.f32 %v3718, %v3796
  %v3835 = vadd.f32 %v3719, %v3799
  %v3836 = vadd.f32 %v3720, %v3801
  %v3837 = vadd.f32 %v3721, %v3804
  %v3838 = vadd.f32 %v3722, %v3806
  %v3839 = vadd.f32 %v3723, %v3809
  %v3840 = vadd.f32 %v3724, %v3811
  %v3841 = vadd.f32 %v3725, %v3814
  %v3842 = vadd.f32 %v3726, %v3816
  %v3843 = vadd.f32 %v3727, %v3819
  %v3844 = vadd.f32 %v3728, %v3821
  %v3845 = vadd.f32 %v3729, %v3824
  %v3846 = vadd.f32 %v3730, %v3826
  %v3847 = vadd.f32 %v3731, %v3829
  %v3848 = vadd.f32 %v3732, %v3831
  %v3850 = vperm.slane %v22, 0
  %v3852 = vadd.f32 %v3833, %v3850
  %v3853 = vadd.f32 %v3834, %v3850
  %v3854 = vadd.f32 %v3835, %v3850
  %v3855 = vadd.f32 %v3836, %v3850
  %v3856 = vadd.f32 %v3837, %v3850
  %v3857 = vadd.f32 %v3838, %v3850
  %v3858 = vadd.f32 %v3839, %v3850
  %v3859 = vadd.f32 %v3840, %v3850
  %v3860 = vadd.f32 %v3841, %v3850
  %v3861 = vadd.f32 %v3842, %v3850
  %v3862 = vadd.f32 %v3843, %v3850
  %v3863 = vadd.f32 %v3844, %v3850
  %v3864 = vadd.f32 %v3845, %v3850
  %v3865 = vadd.f32 %v3846, %v3850
  %v3866 = vadd.f32 %v3847, %v3850
  %v3867 = vadd.f32 %v3848, %v3850
  %v3868 = vadd.f32 %v3852, %v1742
  %v3869 = vadd.f32 %v3853, %v1743
  %v3870 = vadd.f32 %v3854, %v1744
  %v3871 = vadd.f32 %v3855, %v1745
  %v3872 = vadd.f32 %v3856, %v1746
  %v3873 = vadd.f32 %v3857, %v1747
  %v3874 = vadd.f32 %v3858, %v1748
  %v3875 = vadd.f32 %v3859, %v1749
  %v3876 = vadd.f32 %v3860, %v1750
  %v3877 = vadd.f32 %v3861, %v1751
  %v3878 = vadd.f32 %v3862, %v1752
  %v3879 = vadd.f32 %v3863, %v1753
  %v3880 = vadd.f32 %v3864, %v1754
  %v3881 = vadd.f32 %v3865, %v1755
  %v3882 = vadd.f32 %v3866, %v1756
  %v3883 = vadd.f32 %v3867, %v1757
  %v3884 = vmax.f32 %v3868, 0.0
  %v3885 = vmax.f32 %v3869, 0.0
  %v3886 = vmax.f32 %v3870, 0.0
  %v3887 = vmax.f32 %v3871, 0.0
  %v3888 = vmax.f32 %v3872, 0.0
  %v3889 = vmax.f32 %v3873, 0.0
  %v3890 = vmax.f32 %v3874, 0.0
  %v3891 = vmax.f32 %v3875, 0.0
  %v3892 = vmax.f32 %v3876, 0.0
  %v3893 = vmax.f32 %v3877, 0.0
  %v3894 = vmax.f32 %v3878, 0.0
  %v3895 = vmax.f32 %v3879, 0.0
  %v3896 = vmax.f32 %v3880, 0.0
  %v3897 = vmax.f32 %v3881, 0.0
  %v3898 = vmax.f32 %v3882, 0.0
  %v3899 = vmax.f32 %v3883, 0.0
  %3900 = vxpose.xlu0.b32.start [1/16] %v3884, 128
  %3901 = vxpose.xlu0.b32.cont [2/16] %v3885, 128
  %3902 = vxpose.xlu0.b32.cont [3/16] %v3886, 128
  %3903 = vxpose.xlu0.b32.cont [4/16] %v3887, 128
  %3904 = vxpose.xlu0.b32.cont [5/16] %v3888, 128
  %3905 = vxpose.xlu0.b32.cont [6/16] %v3889, 128
  %3906 = vxpose.xlu0.b32.cont [7/16] %v3890, 128
  %3907 = vxpose.xlu0.b32.cont [8/16] %v3891, 128
  %3908 = vxpose.xlu0.b32.cont [9/16] %v3892, 128
  %3909 = vxpose.xlu0.b32.cont [10/16] %v3893, 128
  %3910 = vxpose.xlu0.b32.cont [11/16] %v3894, 128
  %3911 = vxpose.xlu0.b32.cont [12/16] %v3895, 128
  %3912 = vxpose.xlu0.b32.cont [13/16] %v3896, 128
  %3913 = vxpose.xlu0.b32.cont [14/16] %v3897, 128
  %3914 = vxpose.xlu0.b32.cont [15/16] %v3898, 128
  %3915 = vxpose.xlu0.b32.end [16/16] %v3899, 128
  %v3916 = vpop.trf.xlu0
  %v3917 = vpop.trf.xlu0
  %v3918 = vpop.trf.xlu0
  %v3919 = vpop.trf.xlu0
  %v3920 = vpop.trf.xlu0
  %v3921 = vpop.trf.xlu0
  %v3922 = vpop.trf.xlu0
  %v3923 = vpop.trf.xlu0
  %v3924 = vpop.trf.xlu0
  %v3925 = vpop.trf.xlu0
  %v3926 = vpop.trf.xlu0
  %v3927 = vpop.trf.xlu0
  %v3928 = vpop.trf.xlu0
  %v3929 = vpop.trf.xlu0
  %v3930 = vpop.trf.xlu0
  %v3931 = vpop.trf.xlu0
  %3932 = vst [vmem:[%s4] sm:$0xff] %v3916
  // Predicated region
  $region18: #{resblock_c.1} parent=0 // pred_check
    _
  $region19: #{resblock_c.1} parent=0 // pred_check_branch
    %3934 = sbr.rel (0) target = $region21
  $region20: #{resblock_c.1} parent=0 // pred_region
    _
  $region21: #{resblock_c.1} parent=0 // pred_fallthru
    _
  // Predicated region
  $region22: #{resblock_c.1} parent=0 // pred_check
    _
  $region23: #{resblock_c.1} parent=0 // pred_check_branch
    %3936 = sbr.rel (0) target = $region25
  $region24: #{resblock_c.1} parent=0 // pred_region
    _
  $region25: #{resblock_c.1} parent=0 // pred_fallthru
    _

</llo_original>
